<compile_context>
chip_gen: v5e
topology: v5e:2x2
jax: 0.10.0
libtpu: 0.0.40
codegen_flags: <defaults>
</compile_context>

<pallas_src>
import functools

import numpy as np
import jax
import jax.numpy as jnp
from jax import lax
from jax.experimental import pallas as pl
from jax.experimental.pallas import tpu as pltpu


_BRANCHES = ("b1_wh", "b1_reg", "b2_wh", "b2_reg")


# ---------------------------------------------------------------------------
# Fused Pallas kernel (one grid step = NB batch elements)
# ---------------------------------------------------------------------------
def _local_head_kernel(p_ref, w1_ref, s1_ref, b1_ref,
                       w2_ref, s2_ref, b2_ref,
                       w3_ref, s3_ref, b3_ref,
                       whb_ref, bhb_ref, whc_ref, bhc_ref,
                       out_ref, s_ref, *, H, W, C, NC, NB):
    """Entire Local_Head forward for NB batch elements.

    p_ref  : (1, NB*H*W, KP1) bf16  pre-im2col'd input patches (conv1, K padded)
    w1_ref : (KP1, 5*C)  bf16       fused conv1 [b1_wh|b1_reg|b2_wh|b2_reg|cls0]
    s1/b1  : (1, 5*C)    f32        folded BN scale / bias for conv1
    w2/w3  : (3, KP2, C) bf16       cls blocks 1/2 (K = 3*C zero-padded to KP2)
    whb    : (6, 4*C)    bf16       block-diag transposed branch 1x1 heads,
                                    rows = [b1_wh, b2_wh, b1_reg(2), b2_reg(2)]
    whc    : (NC, C)     bf16       transposed cls 1x1 head
    out_ref: (1, NC+6, NB*H*W) f32  channel-major, lane-dense output
    s_ref  : (H+2, W, KP2) f32      lane-partitioned im2col scratch (zero halo)
    """
    HW = H * W
    KP2 = s_ref.shape[-1]
    bf16 = jnp.bfloat16
    f32 = jnp.float32

    def sigmoid(v):
        # exp + approximate reciprocal both run on the EUP slot.
        return pl.reciprocal(1.0 + jnp.exp(-v), approx=True)

    # ---- fused first 3x3 conv (4 branches + cls block 0): ONE matmul ------
    y1 = jnp.dot(p_ref[0], w1_ref[...], preferred_element_type=f32)   # (M, 5C)
    y1 = jnp.maximum(y1 * s1_ref[0] + b1_ref[0], 0.0)
    feat_br = y1[:, :4 * C]                       # (M, 4C)  lanes 0:128
    feat_cls = y1[:, 4 * C:]                      # (M, C)   lanes 128:160

    # ---- branch 1x1 heads: channel-major (6, M), lane-dense ---------------
    yb = lax.dot_general(whb_ref[...], feat_br.astype(bf16),
                         (((1,), (1,)), ((), ())),
                         preferred_element_type=f32) + bhb_ref[...]   # (6, M)

    # ---- cls blocks 1 & 2: im2col via lane-partitioned scratch ------------
    # Halo rows/cols and the zero-padded lanes [3C:KP2) are never written by
    # the interior stores below, so zeroing once per invocation keeps them
    # clean for both convs and all NB batch elements.
    s_ref[...] = jnp.zeros(s_ref.shape, s_ref.dtype)
    cls_feats = []
    for nb in range(NB):
        feat = feat_cls[nb * HW:(nb + 1) * HW]                        # (HW, C)
        for w_ref, scale_ref, bias_ref in ((w2_ref, s2_ref, b2_ref),
                                           (w3_ref, s3_ref, b3_ref)):
            fsp = feat.reshape(H, W, C)
            # S[r, x, kw*C:(kw+1)*C] = padded_input[r, x + kw, :]
            s_ref[1:H + 1, 1:W, 0:C] = fsp[:, 0:W - 1, :]             # kw = 0
            s_ref[1:H + 1, :, C:2 * C] = fsp                          # kw = 1
            s_ref[1:H + 1, 0:W - 1, 2 * C:3 * C] = fsp[:, 1:W, :]     # kw = 2
            acc = None
            for kh in range(3):          # 3 full-K matmuls, acc init from 1st
                patch = s_ref[kh:kh + H, :, :].reshape(HW, KP2).astype(bf16)
                t = jnp.dot(patch, w_ref[kh], preferred_element_type=f32)
                acc = t if acc is None else acc + t
            feat = jnp.maximum(acc * scale_ref[0] + bias_ref[0], 0.0)
        cls_feats.append(feat)
    feat3 = cls_feats[0] if NB == 1 else jnp.concatenate(cls_feats, axis=0)

    # ---- cls 1x1 head ------------------------------------------------------
    yc = lax.dot_general(whc_ref[...], feat3.astype(bf16),
                         (((1,), (1,)), ((), ())),
                         preferred_element_type=f32) + bhc_ref[...]   # (NC, M)

    # ---- activations (static per-row groups) + single lane-dense store ----
    out_ref[0] = jnp.concatenate([
        sigmoid(yc),            # rows 0:NC        heatmap
        jnp.exp(yb[0:1]),       # row  NC          inner_radii
        yb[1:2],                # row  NC+1        outer_radii (identity)
        sigmoid(yb[2:6]),       # rows NC+2:NC+6   inner_offset(2)+outer_offset(2)
    ], axis=0).astype(out_ref.dtype)


# ---------------------------------------------------------------------------
# Parameter folding into the fused bf16 layout consumed by the kernel
# ---------------------------------------------------------------------------
def _fold_params(params):
    C = params["cls"]["blocks"][0][0].shape[2]
    NC = params["cls"]["head"][0].shape[1]
    KP1 = ((9 * C + 127) // 128) * 128          # conv1 K padded to lane multiple
    KP2 = max(128, ((3 * C + 127) // 128) * 128)  # cls-conv K padded
    bf16 = jnp.bfloat16

    # fused conv1: Cout order = [b1_wh | b1_reg | b2_wh | b2_reg | cls block 0]
    ws, ss, bs = [], [], []
    for name in _BRANCHES:
        w, s, b = params[name]["blocks"][0]
        ws.append(w); ss.append(s); bs.append(b)
    w, s, b = params["cls"]["blocks"][0]
    ws.append(w); ss.append(s); bs.append(b)
    w1 = jnp.concatenate(ws, axis=-1).reshape(9 * C, 5 * C)   # (kh,kw,ci)-major
    w1 = jnp.pad(w1, ((0, KP1 - 9 * C), (0, 0))).astype(bf16)
    s1 = jnp.concatenate(ss).reshape(1, 5 * C)
    b1 = jnp.concatenate(bs).reshape(1, 5 * C)

    def fold_cls_block(blk):
        wv, sv, bv = blk
        wk = jnp.pad(wv.reshape(3, 3 * C, C),          # rows = kw*C + ci
                     ((0, 0), (0, KP2 - 3 * C), (0, 0))).astype(bf16)
        return wk, sv.reshape(1, C), bv.reshape(1, C)

    w2, s2, b2 = fold_cls_block(params["cls"]["blocks"][1])
    w3, s3, b3 = fold_cls_block(params["cls"]["blocks"][2])

    # block-diagonal transposed branch heads.
    # row order = [b1_wh, b2_wh, b1_reg(2), b2_reg(2)] (same-activation groups)
    # column blocks follow feat_br order = [b1_wh, b1_reg, b2_wh, b2_reg].
    hw1, hb1 = params["b1_wh"]["head"]
    hr1, br1 = params["b1_reg"]["head"]
    hw2, hb2 = params["b2_wh"]["head"]
    hr2, br2 = params["b2_reg"]["head"]
    whb = jnp.zeros((6, 4 * C), jnp.float32)
    whb = whb.at[0:1, 0 * C:1 * C].set(hw1.T)
    whb = whb.at[1:2, 2 * C:3 * C].set(hw2.T)
    whb = whb.at[2:4, 1 * C:2 * C].set(hr1.T)
    whb = whb.at[4:6, 3 * C:4 * C].set(hr2.T)
    whb = whb.astype(bf16)
    bhb = jnp.concatenate([hb1, hb2, br1, br2]).reshape(6, 1)

    hwc, hbc = params["cls"]["head"]
    whc = hwc.T.astype(bf16)                     # (NC, C)
    bhc = hbc.reshape(NC, 1)

    return dict(w1=w1, s1=s1, b1=b1, w2=w2, s2=s2, b2=b2, w3=w3, s3=s3, b3=b3,
                whb=whb, bhb=bhb, whc=whc, bhc=bhc, KP1=KP1, KP2=KP2, NC=NC)


def _single_tensorcore_chip() -> bool:
    """True on chips with one TensorCore (v5e/v6e): fold batch into M there."""
    try:
        kind = jax.devices()[0].device_kind.lower()
    except Exception:
        return False
    return any(t in kind for t in
               ("v5 lite", "v5litepod", "v5e", "v6 lite", "v6e"))


# ---------------------------------------------------------------------------
# Public wrapper: NCHW in, five NCHW tensors out
# ---------------------------------------------------------------------------
def local_head_pallas(x_nchw, params):
    B, C, H, W = x_nchw.shape
    HW = H * W
    fp = _fold_params(params)
    NC, KP1, KP2 = fp["NC"], fp["KP1"], fp["KP2"]

    # v5e/v6e: one grid step, batch folded into matmul M.  v7x (or unknown):
    # grid=(B,) "parallel" -> batch shards across the two TensorCores.
    grid_b = 1 if (_single_tensorcore_chip() or B == 1) else B
    NB = B // grid_b
    M = NB * HW

    # conv1 im2col hoisted out of the kernel: dense full-lane bf16 patches.
    xp = jnp.pad(jnp.transpose(x_nchw, (0, 2, 3, 1)).astype(jnp.bfloat16),
                 ((0, 0), (1, 1), (1, 1), (0, 0)))
    cols = [xp[:, kh:kh + H, kw:kw + W, :] for kh in range(3) for kw in range(3)]
    patches = jnp.concatenate(cols, axis=-1).reshape(B, HW, 9 * C)
    patches = jnp.pad(patches, ((0, 0), (0, 0), (0, KP1 - 9 * C)))
    patches = patches.reshape(grid_b, M, KP1)

    kern = functools.partial(_local_head_kernel, H=H, W=W, C=C, NC=NC, NB=NB)
    out = pl.pallas_call(
        kern,
        out_shape=jax.ShapeDtypeStruct((grid_b, NC + 6, M), jnp.float32),
        grid=(grid_b,),
        in_specs=[
            pl.BlockSpec((1, M, KP1), lambda b: (b, 0, 0)),
            pl.BlockSpec((KP1, 5 * C), lambda b: (0, 0)),
            pl.BlockSpec((1, 5 * C), lambda b: (0, 0)),
            pl.BlockSpec((1, 5 * C), lambda b: (0, 0)),
            pl.BlockSpec((3, KP2, C), lambda b: (0, 0, 0)),
            pl.BlockSpec((1, C), lambda b: (0, 0)),
            pl.BlockSpec((1, C), lambda b: (0, 0)),
            pl.BlockSpec((3, KP2, C), lambda b: (0, 0, 0)),
            pl.BlockSpec((1, C), lambda b: (0, 0)),
            pl.BlockSpec((1, C), lambda b: (0, 0)),
            pl.BlockSpec((6, 4 * C), lambda b: (0, 0)),
            pl.BlockSpec((6, 1), lambda b: (0, 0)),
            pl.BlockSpec((NC, C), lambda b: (0, 0)),
            pl.BlockSpec((NC, 1), lambda b: (0, 0)),
        ],
        out_specs=pl.BlockSpec((1, NC + 6, M), lambda b: (b, 0, 0)),
        scratch_shapes=[pltpu.VMEM((H + 2, W, KP2), jnp.float32)],
        compiler_params=pltpu.CompilerParams(
            dimension_semantics=("parallel",)),
    )(patches, fp["w1"], fp["s1"], fp["b1"], fp["w2"], fp["s2"], fp["b2"],
      fp["w3"], fp["s3"], fp["b3"], fp["whb"], fp["bhb"], fp["whc"], fp["bhc"])

    # (grid_b, NC+6, NB*HW) -> (B, NC+6, H, W); channel-major, no in-kernel
    # transpose (only a tiny wrapper-side reshape/transpose when NB > 1).
    out = out.reshape(grid_b, NC + 6, NB, H, W).transpose(0, 2, 1, 3, 4)
    out = out.reshape(B, NC + 6, H, W)
    heatmap = out[:, 0:NC]
    inner_radii = out[:, NC:NC + 1]
    outer_radii = out[:, NC + 1:NC + 2]
    inner_offset = out[:, NC + 2:NC + 4]
    outer_offset = out[:, NC + 4:NC + 6]
    return heatmap, inner_radii, inner_offset, outer_radii, outer_offset


# ---------------------------------------------------------------------------
# Pure-JAX reference (high precision) for the correctness check
# ---------------------------------------------------------------------------
def _ref_conv3x3_bn_relu(x_nhwc, w, scale, bias):
    y = lax.conv_general_dilated(
        x_nhwc, w, window_strides=(1, 1), padding="SAME",
        dimension_numbers=("NHWC", "HWIO", "NHWC"),
        precision=lax.Precision.HIGHEST)
    return jnp.maximum(y * scale + bias, 0.0)


def _ref_conv1x1(x_nhwc, w, b, act):
    y = jnp.einsum("bhwc,cd->bhwd", x_nhwc, w,
                   precision=lax.Precision.HIGHEST) + b
    if act == "sigmoid":
        y = 1.0 / (1.0 + jnp.exp(-y))
    elif act == "exp":
        y = jnp.exp(y)
    return y


def local_head_ref(x_nchw, params):
    x = jnp.transpose(x_nchw, (0, 2, 3, 1))   # NCHW -> NHWC

    def branch(name, act):
        f = x
        for (w, s, b) in params[name]["blocks"]:
            f = _ref_conv3x3_bn_relu(f, w, s, b)
        w, b = params[name]["head"]
        return _ref_conv1x1(f, w, b, act)

    heatmap = branch("cls", "sigmoid")
    inner_radii = branch("b1_wh", "exp")
    inner_offset = branch("b1_reg", "sigmoid")
    outer_radii = branch("b2_wh", "none")
    outer_offset = branch("b2_reg", "sigmoid")

    to_nchw = lambda t: jnp.transpose(t, (0, 3, 1, 2))
    return tuple(to_nchw(t) for t in (heatmap, inner_radii, inner_offset,
                                      outer_radii, outer_offset))


# ---------------------------------------------------------------------------
# Parameter initialization (BN folded to inference scale/bias)
# ---------------------------------------------------------------------------
def _make_bn(key, c, eps=1e-5):
    kg, kb, km, kv = jax.random.split(key, 4)
    gamma = 1.0 + 0.1 * jax.random.normal(kg, (c,), jnp.float32)
    beta = 0.1 * jax.random.normal(kb, (c,), jnp.float32)
    mean = 0.1 * jax.random.normal(km, (c,), jnp.float32)
    var = jnp.abs(1.0 + 0.1 * jax.random.normal(kv, (c,), jnp.float32))
    scale = gamma / jnp.sqrt(var + eps)
    bias = beta - mean * scale
    return scale, bias


def _make_conv3_block(key, cin, cout):
    kw, kbn = jax.random.split(key)
    w = 0.05 * jax.random.normal(kw, (3, 3, cin, cout), jnp.float32)
    s, b = _make_bn(kbn, cout)
    return (w, s, b)


def _make_conv1(key, cin, cout):
    kw, kb = jax.random.split(key)
    w = 0.05 * jax.random.normal(kw, (cin, cout), jnp.float32)
    b = 0.05 * jax.random.normal(kb, (cout,), jnp.float32)
    return (w, b)


def init_params(key, channel, num_classes):
    keys = jax.random.split(key, 12)
    return {
        "cls": {
            "blocks": [_make_conv3_block(keys[0], channel, channel),
                       _make_conv3_block(keys[1], channel, channel),
                       _make_conv3_block(keys[2], channel, channel)],
            "head": _make_conv1(keys[3], channel, num_classes),
        },
        "b1_wh": {"blocks": [_make_conv3_block(keys[4], channel, channel)],
                  "head": _make_conv1(keys[5], channel, 1)},
        "b1_reg": {"blocks": [_make_conv3_block(keys[6], channel, channel)],
                   "head": _make_conv1(keys[7], channel, 2)},
        "b2_wh": {"blocks": [_make_conv3_block(keys[8], channel, channel)],
                  "head": _make_conv1(keys[9], channel, 1)},
        "b2_reg": {"blocks": [_make_conv3_block(keys[10], channel, channel)],
                   "head": _make_conv1(keys[11], channel, 2)},
    }


# ---------------------------------------------------------------------------
if __name__ == "__main__":
    # NOTE: C is chosen as a multiple of 32 so the fused lane slices
    # (branch slab = 4*C, cls slab at lane offset 4*C) stay vreg-friendly.
    B, C, H, W = 2, 32, 16, 16
    num_classes = 2

    key = jax.random.PRNGKey(0)
    kx, kp = jax.random.split(key)
    x = jax.random.normal(kx, (B, C, H, W), jnp.float32)
    params = init_params(kp, C, num_classes)

    outs = jax.jit(lambda a: local_head_pallas(a, params))(x)
    outs = jax.block_until_ready(outs)
    refs = jax.block_until_ready(local_head_ref(x, params))

    expected_shapes = [(B, num_classes, H, W), (B, 1, H, W), (B, 2, H, W),
                       (B, 1, H, W), (B, 2, H, W)]
    # Kernel uses bf16 MXU operands (f32 accumulation) and an approximate
    # EUP reciprocal in sigmoid; the reference is HIGHEST-precision f32, so
    # the tolerance is loosened accordingly.
    for o, r, s in zip(outs, refs, expected_shapes):
        assert o.shape == s, (o.shape, s)
        np.testing.assert_allclose(np.asarray(o), np.asarray(r),
                                   rtol=4e-2, atol=4e-2)

    print("KERNEL_OK")
</pallas_src>

<mosaic_0001>
module attributes {stable_mosaic.version = 11 : i64} {
  func.func @_local_head_kernel(%arg0: i32, %arg1: memref<1x256x384xbf16, #tpu.memory_space<vmem>>, %arg2: memref<384x160xbf16, #tpu.memory_space<vmem>>, %arg3: memref<1x160xf32, #tpu.memory_space<vmem>>, %arg4: memref<1x160xf32, #tpu.memory_space<vmem>>, %arg5: memref<3x128x32xbf16, #tpu.memory_space<vmem>>, %arg6: memref<1x32xf32, #tpu.memory_space<vmem>>, %arg7: memref<1x32xf32, #tpu.memory_space<vmem>>, %arg8: memref<3x128x32xbf16, #tpu.memory_space<vmem>>, %arg9: memref<1x32xf32, #tpu.memory_space<vmem>>, %arg10: memref<1x32xf32, #tpu.memory_space<vmem>>, %arg11: memref<6x128xbf16, #tpu.memory_space<vmem>>, %arg12: memref<6x1xf32, #tpu.memory_space<vmem>>, %arg13: memref<2x32xbf16, #tpu.memory_space<vmem>>, %arg14: memref<2x1xf32, #tpu.memory_space<vmem>>, %arg15: memref<1x8x256xf32, #tpu.memory_space<vmem>>, %arg16: memref<18x16x128xf32, #tpu.memory_space<vmem>>) attributes {dimension_semantics = [#tpu.dimension_semantics<parallel>], iteration_bounds = array<i64: 2>, scalar_prefetch = 0 : i64, scratch_operands = 1 : i64, tpu.core_type = #tpu.core_type<tc>, window_params = [{transform_indices = @transform_0, window_bounds = array<i64: 1, 256, 384>}, {pipeline_mode = #tpu.pipeline_mode<synchronous>, transform_indices = @transform_1, window_bounds = array<i64: 384, 160>}, {pipeline_mode = #tpu.pipeline_mode<synchronous>, transform_indices = @transform_2, window_bounds = array<i64: 1, 160>}, {pipeline_mode = #tpu.pipeline_mode<synchronous>, transform_indices = @transform_3, window_bounds = array<i64: 1, 160>}, {pipeline_mode = #tpu.pipeline_mode<synchronous>, transform_indices = @transform_4, window_bounds = array<i64: 3, 128, 32>}, {pipeline_mode = #tpu.pipeline_mode<synchronous>, transform_indices = @transform_5, window_bounds = array<i64: 1, 32>}, {pipeline_mode = #tpu.pipeline_mode<synchronous>, transform_indices = @transform_6, window_bounds = array<i64: 1, 32>}, {pipeline_mode = #tpu.pipeline_mode<synchronous>, transform_indices = @transform_7, window_bounds = array<i64: 3, 128, 32>}, {pipeline_mode = #tpu.pipeline_mode<synchronous>, transform_indices = @transform_8, window_bounds = array<i64: 1, 32>}, {pipeline_mode = #tpu.pipeline_mode<synchronous>, transform_indices = @transform_9, window_bounds = array<i64: 1, 32>}, {pipeline_mode = #tpu.pipeline_mode<synchronous>, transform_indices = @transform_10, window_bounds = array<i64: 6, 128>}, {pipeline_mode = #tpu.pipeline_mode<synchronous>, transform_indices = @transform_11, window_bounds = array<i64: 6, 1>}, {pipeline_mode = #tpu.pipeline_mode<synchronous>, transform_indices = @transform_12, window_bounds = array<i64: 2, 32>}, {pipeline_mode = #tpu.pipeline_mode<synchronous>, transform_indices = @transform_13, window_bounds = array<i64: 2, 1>}, {transform_indices = @transform_14, window_bounds = array<i64: 1, 8, 256>}]} {
    %c0 = arith.constant 0 : index
    %c0_0 = arith.constant 0 : index
    %c0_1 = arith.constant 0 : index
    %0 = vector.load %arg1[%c0, %c0_0, %c0_1] : memref<1x256x384xbf16, #tpu.memory_space<vmem>>, vector<1x256x384xbf16>
    %1 = vector.shape_cast %0 : vector<1x256x384xbf16> to vector<256x384xbf16>
    %c0_2 = arith.constant 0 : index
    %c0_3 = arith.constant 0 : index
    %2 = vector.load %arg2[%c0_2, %c0_3] : memref<384x160xbf16, #tpu.memory_space<vmem>>, vector<384x160xbf16>
    %cst = arith.constant dense<0.000000e+00> : vector<256x160xf32>
    %3 = tpu.matmul %1, %2, %cst {dimension_numbers = #tpu.dot_dimension_numbers<[1], [0], [0], [1], [0, 0, 1, 1], [], []>} : vector<256x384xbf16>, vector<384x160xbf16>, vector<256x160xf32> -> vector<256x160xf32>
    %c0_4 = arith.constant 0 : index
    %c0_5 = arith.constant 0 : index
    %4 = vector.load %arg3[%c0_4, %c0_5] : memref<1x160xf32, #tpu.memory_space<vmem>>, vector<1x160xf32>
    %5 = vector.shape_cast %4 : vector<1x160xf32> to vector<160xf32>
    %6 = vector.shape_cast %5 : vector<160xf32> to vector<1x160xf32>
    %7 = vector.broadcast %6 : vector<1x160xf32> to vector<256x160xf32>
    %8 = arith.mulf %3, %7 : vector<256x160xf32>
    %c0_6 = arith.constant 0 : index
    %c0_7 = arith.constant 0 : index
    %9 = vector.load %arg4[%c0_6, %c0_7] : memref<1x160xf32, #tpu.memory_space<vmem>>, vector<1x160xf32>
    %10 = vector.shape_cast %9 : vector<1x160xf32> to vector<160xf32>
    %11 = vector.shape_cast %10 : vector<160xf32> to vector<1x160xf32>
    %12 = vector.broadcast %11 : vector<1x160xf32> to vector<256x160xf32>
    %13 = arith.addf %8, %12 : vector<256x160xf32>
    %cst_8 = arith.constant 0.000000e+00 : f32
    %14 = vector.broadcast %cst_8 : f32 to vector<256x160xf32>
    %15 = arith.maximumf %13, %14 : vector<256x160xf32>
    %16 = vector.extract_strided_slice %15 {offsets = [0, 0], sizes = [256, 128], strides = [1, 1]} : vector<256x160xf32> to vector<256x128xf32>
    %17 = vector.extract_strided_slice %15 {offsets = [0, 128], sizes = [256, 32], strides = [1, 1]} : vector<256x160xf32> to vector<256x32xf32>
    %c0_9 = arith.constant 0 : index
    %c0_10 = arith.constant 0 : index
    %18 = vector.load %arg11[%c0_9, %c0_10] : memref<6x128xbf16, #tpu.memory_space<vmem>>, vector<6x128xbf16>
    %19 = arith.truncf %16 : vector<256x128xf32> to vector<256x128xbf16>
    %cst_11 = arith.constant dense<0.000000e+00> : vector<6x256xf32>
    %20 = tpu.matmul %18, %19, %cst_11 {dimension_numbers = #tpu.dot_dimension_numbers<[1], [1], [0], [0], [0, 0, 1, 0], [], []>} : vector<6x128xbf16>, vector<256x128xbf16>, vector<6x256xf32> -> vector<6x256xf32>
    %c0_12 = arith.constant 0 : index
    %c0_13 = arith.constant 0 : index
    %21 = vector.load %arg12[%c0_12, %c0_13] : memref<6x1xf32, #tpu.memory_space<vmem>>, vector<6x1xf32>
    %22 = vector.broadcast %21 : vector<6x1xf32> to vector<6x256xf32>
    %23 = arith.addf %20, %22 : vector<6x256xf32>
    %cst_14 = arith.constant 0.000000e+00 : f32
    %24 = vector.broadcast %cst_14 : f32 to vector<18x16x128xf32>
    %c0_15 = arith.constant 0 : index
    %c0_16 = arith.constant 0 : index
    %c0_17 = arith.constant 0 : index
    %25 = vector.load %arg16[%c0_15, %c0_16, %c0_17] : memref<18x16x128xf32, #tpu.memory_space<vmem>>, vector<18x16x128xf32>
    tpu.vector_store %arg16[%c0_15, %c0_16, %c0_17], %24 {strides = array<i32>} : memref<18x16x128xf32, #tpu.memory_space<vmem>>, vector<18x16x128xf32>,
    %26 = vector.shape_cast %17 : vector<256x32xf32> to vector<16x16x32xf32>
    %27 = vector.extract_strided_slice %26 {offsets = [0, 0, 0], sizes = [16, 15, 32], strides = [1, 1, 1]} : vector<16x16x32xf32> to vector<16x15x32xf32>
    %c1 = arith.constant 1 : index
    %c1_18 = arith.constant 1 : index
    %c0_19 = arith.constant 0 : index
    %28 = vector.load %arg16[%c1, %c1_18, %c0_19] : memref<18x16x128xf32, #tpu.memory_space<vmem>>, vector<16x15x32xf32>
    tpu.vector_store %arg16[%c1, %c1_18, %c0_19], %27 {strides = array<i32>} : memref<18x16x128xf32, #tpu.memory_space<vmem>>, vector<16x15x32xf32>,
    %c1_20 = arith.constant 1 : index
    %c0_21 = arith.constant 0 : index
    %c32 = arith.constant 32 : index
    %29 = vector.load %arg16[%c1_20, %c0_21, %c32] : memref<18x16x128xf32, #tpu.memory_space<vmem>>, vector<16x16x32xf32>
    tpu.vector_store %arg16[%c1_20, %c0_21, %c32], %26 {strides = array<i32>} : memref<18x16x128xf32, #tpu.memory_space<vmem>>, vector<16x16x32xf32>,
    %30 = vector.extract_strided_slice %26 {offsets = [0, 1, 0], sizes = [16, 15, 32], strides = [1, 1, 1]} : vector<16x16x32xf32> to vector<16x15x32xf32>
    %c1_22 = arith.constant 1 : index
    %c0_23 = arith.constant 0 : index
    %c64 = arith.constant 64 : index
    %31 = vector.load %arg16[%c1_22, %c0_23, %c64] : memref<18x16x128xf32, #tpu.memory_space<vmem>>, vector<16x15x32xf32>
    tpu.vector_store %arg16[%c1_22, %c0_23, %c64], %30 {strides = array<i32>} : memref<18x16x128xf32, #tpu.memory_space<vmem>>, vector<16x15x32xf32>,
    %c0_24 = arith.constant 0 : index
    %c0_25 = arith.constant 0 : index
    %c0_26 = arith.constant 0 : index
    %32 = vector.load %arg16[%c0_24, %c0_25, %c0_26] : memref<18x16x128xf32, #tpu.memory_space<vmem>>, vector<16x16x128xf32>
    %33 = vector.shape_cast %32 : vector<16x16x128xf32> to vector<256x128xf32>
    %34 = arith.truncf %33 : vector<256x128xf32> to vector<256x128xbf16>
    %c0_27 = arith.constant 0 : index
    %c0_28 = arith.constant 0 : index
    %c0_29 = arith.constant 0 : index
    %35 = vector.load %arg5[%c0_27, %c0_28, %c0_29] : memref<3x128x32xbf16, #tpu.memory_space<vmem>>, vector<1x128x32xbf16>
    %36 = vector.shape_cast %35 : vector<1x128x32xbf16> to vector<128x32xbf16>
    %cst_30 = arith.constant dense<0.000000e+00> : vector<256x32xf32>
    %37 = tpu.matmul %34, %36, %cst_30 {dimension_numbers = #tpu.dot_dimension_numbers<[1], [0], [0], [1], [0, 0, 1, 1], [], []>} : vector<256x128xbf16>, vector<128x32xbf16>, vector<256x32xf32> -> vector<256x32xf32>
    %c1_31 = arith.constant 1 : index
    %c0_32 = arith.constant 0 : index
    %c0_33 = arith.constant 0 : index
    %38 = vector.load %arg16[%c1_31, %c0_32, %c0_33] : memref<18x16x128xf32, #tpu.memory_space<vmem>>, vector<16x16x128xf32>
    %39 = vector.shape_cast %38 : vector<16x16x128xf32> to vector<256x128xf32>
    %40 = arith.truncf %39 : vector<256x128xf32> to vector<256x128xbf16>
    %c1_34 = arith.constant 1 : index
    %c0_35 = arith.constant 0 : index
    %c0_36 = arith.constant 0 : index
    %41 = vector.load %arg5[%c1_34, %c0_35, %c0_36] : memref<3x128x32xbf16, #tpu.memory_space<vmem>>, vector<1x128x32xbf16>
    %42 = vector.shape_cast %41 : vector<1x128x32xbf16> to vector<128x32xbf16>
    %cst_37 = arith.constant dense<0.000000e+00> : vector<256x32xf32>
    %43 = tpu.matmul %40, %42, %cst_37 {dimension_numbers = #tpu.dot_dimension_numbers<[1], [0], [0], [1], [0, 0, 1, 1], [], []>} : vector<256x128xbf16>, vector<128x32xbf16>, vector<256x32xf32> -> vector<256x32xf32>
    %44 = arith.addf %37, %43 : vector<256x32xf32>
    %c2 = arith.constant 2 : index
    %c0_38 = arith.constant 0 : index
    %c0_39 = arith.constant 0 : index
    %45 = vector.load %arg16[%c2, %c0_38, %c0_39] : memref<18x16x128xf32, #tpu.memory_space<vmem>>, vector<16x16x128xf32>
    %46 = vector.shape_cast %45 : vector<16x16x128xf32> to vector<256x128xf32>
    %47 = arith.truncf %46 : vector<256x128xf32> to vector<256x128xbf16>
    %c2_40 = arith.constant 2 : index
    %c0_41 = arith.constant 0 : index
    %c0_42 = arith.constant 0 : index
    %48 = vector.load %arg5[%c2_40, %c0_41, %c0_42] : memref<3x128x32xbf16, #tpu.memory_space<vmem>>, vector<1x128x32xbf16>
    %49 = vector.shape_cast %48 : vector<1x128x32xbf16> to vector<128x32xbf16>
    %cst_43 = arith.constant dense<0.000000e+00> : vector<256x32xf32>
    %50 = tpu.matmul %47, %49, %cst_43 {dimension_numbers = #tpu.dot_dimension_numbers<[1], [0], [0], [1], [0, 0, 1, 1], [], []>} : vector<256x128xbf16>, vector<128x32xbf16>, vector<256x32xf32> -> vector<256x32xf32>
    %51 = arith.addf %44, %50 : vector<256x32xf32>
    %c0_44 = arith.constant 0 : index
    %c0_45 = arith.constant 0 : index
    %52 = vector.load %arg6[%c0_44, %c0_45] : memref<1x32xf32, #tpu.memory_space<vmem>>, vector<1x32xf32>
    %53 = vector.shape_cast %52 : vector<1x32xf32> to vector<32xf32>
    %54 = vector.shape_cast %53 : vector<32xf32> to vector<1x32xf32>
    %55 = vector.broadcast %54 : vector<1x32xf32> to vector<256x32xf32>
    %56 = arith.mulf %51, %55 : vector<256x32xf32>
    %c0_46 = arith.constant 0 : index
    %c0_47 = arith.constant 0 : index
    %57 = vector.load %arg7[%c0_46, %c0_47] : memref<1x32xf32, #tpu.memory_space<vmem>>, vector<1x32xf32>
    %58 = vector.shape_cast %57 : vector<1x32xf32> to vector<32xf32>
    %59 = vector.shape_cast %58 : vector<32xf32> to vector<1x32xf32>
    %60 = vector.broadcast %59 : vector<1x32xf32> to vector<256x32xf32>
    %61 = arith.addf %56, %60 : vector<256x32xf32>
    %cst_48 = arith.constant 0.000000e+00 : f32
    %62 = vector.broadcast %cst_48 : f32 to vector<256x32xf32>
    %63 = arith.maximumf %61, %62 : vector<256x32xf32>
    %64 = vector.shape_cast %63 : vector<256x32xf32> to vector<16x16x32xf32>
    %65 = vector.extract_strided_slice %64 {offsets = [0, 0, 0], sizes = [16, 15, 32], strides = [1, 1, 1]} : vector<16x16x32xf32> to vector<16x15x32xf32>
    %c1_49 = arith.constant 1 : index
    %c1_50 = arith.constant 1 : index
    %c0_51 = arith.constant 0 : index
    %66 = vector.load %arg16[%c1_49, %c1_50, %c0_51] : memref<18x16x128xf32, #tpu.memory_space<vmem>>, vector<16x15x32xf32>
    tpu.vector_store %arg16[%c1_49, %c1_50, %c0_51], %65 {strides = array<i32>} : memref<18x16x128xf32, #tpu.memory_space<vmem>>, vector<16x15x32xf32>,
    %c1_52 = arith.constant 1 : index
    %c0_53 = arith.constant 0 : index
    %c32_54 = arith.constant 32 : index
    %67 = vector.load %arg16[%c1_52, %c0_53, %c32_54] : memref<18x16x128xf32, #tpu.memory_space<vmem>>, vector<16x16x32xf32>
    tpu.vector_store %arg16[%c1_52, %c0_53, %c32_54], %64 {strides = array<i32>} : memref<18x16x128xf32, #tpu.memory_space<vmem>>, vector<16x16x32xf32>,
    %68 = vector.extract_strided_slice %64 {offsets = [0, 1, 0], sizes = [16, 15, 32], strides = [1, 1, 1]} : vector<16x16x32xf32> to vector<16x15x32xf32>
    %c1_55 = arith.constant 1 : index
    %c0_56 = arith.constant 0 : index
    %c64_57 = arith.constant 64 : index
    %69 = vector.load %arg16[%c1_55, %c0_56, %c64_57] : memref<18x16x128xf32, #tpu.memory_space<vmem>>, vector<16x15x32xf32>
    tpu.vector_store %arg16[%c1_55, %c0_56, %c64_57], %68 {strides = array<i32>} : memref<18x16x128xf32, #tpu.memory_space<vmem>>, vector<16x15x32xf32>,
    %c0_58 = arith.constant 0 : index
    %c0_59 = arith.constant 0 : index
    %c0_60 = arith.constant 0 : index
    %70 = vector.load %arg16[%c0_58, %c0_59, %c0_60] : memref<18x16x128xf32, #tpu.memory_space<vmem>>, vector<16x16x128xf32>
    %71 = vector.shape_cast %70 : vector<16x16x128xf32> to vector<256x128xf32>
    %72 = arith.truncf %71 : vector<256x128xf32> to vector<256x128xbf16>
    %c0_61 = arith.constant 0 : index
    %c0_62 = arith.constant 0 : index
    %c0_63 = arith.constant 0 : index
    %73 = vector.load %arg8[%c0_61, %c0_62, %c0_63] : memref<3x128x32xbf16, #tpu.memory_space<vmem>>, vector<1x128x32xbf16>
    %74 = vector.shape_cast %73 : vector<1x128x32xbf16> to vector<128x32xbf16>
    %cst_64 = arith.constant dense<0.000000e+00> : vector<256x32xf32>
    %75 = tpu.matmul %72, %74, %cst_64 {dimension_numbers = #tpu.dot_dimension_numbers<[1], [0], [0], [1], [0, 0, 1, 1], [], []>} : vector<256x128xbf16>, vector<128x32xbf16>, vector<256x32xf32> -> vector<256x32xf32>
    %c1_65 = arith.constant 1 : index
    %c0_66 = arith.constant 0 : index
    %c0_67 = arith.constant 0 : index
    %76 = vector.load %arg16[%c1_65, %c0_66, %c0_67] : memref<18x16x128xf32, #tpu.memory_space<vmem>>, vector<16x16x128xf32>
    %77 = vector.shape_cast %76 : vector<16x16x128xf32> to vector<256x128xf32>
    %78 = arith.truncf %77 : vector<256x128xf32> to vector<256x128xbf16>
    %c1_68 = arith.constant 1 : index
    %c0_69 = arith.constant 0 : index
    %c0_70 = arith.constant 0 : index
    %79 = vector.load %arg8[%c1_68, %c0_69, %c0_70] : memref<3x128x32xbf16, #tpu.memory_space<vmem>>, vector<1x128x32xbf16>
    %80 = vector.shape_cast %79 : vector<1x128x32xbf16> to vector<128x32xbf16>
    %cst_71 = arith.constant dense<0.000000e+00> : vector<256x32xf32>
    %81 = tpu.matmul %78, %80, %cst_71 {dimension_numbers = #tpu.dot_dimension_numbers<[1], [0], [0], [1], [0, 0, 1, 1], [], []>} : vector<256x128xbf16>, vector<128x32xbf16>, vector<256x32xf32> -> vector<256x32xf32>
    %82 = arith.addf %75, %81 : vector<256x32xf32>
    %c2_72 = arith.constant 2 : index
    %c0_73 = arith.constant 0 : index
    %c0_74 = arith.constant 0 : index
    %83 = vector.load %arg16[%c2_72, %c0_73, %c0_74] : memref<18x16x128xf32, #tpu.memory_space<vmem>>, vector<16x16x128xf32>
    %84 = vector.shape_cast %83 : vector<16x16x128xf32> to vector<256x128xf32>
    %85 = arith.truncf %84 : vector<256x128xf32> to vector<256x128xbf16>
    %c2_75 = arith.constant 2 : index
    %c0_76 = arith.constant 0 : index
    %c0_77 = arith.constant 0 : index
    %86 = vector.load %arg8[%c2_75, %c0_76, %c0_77] : memref<3x128x32xbf16, #tpu.memory_space<vmem>>, vector<1x128x32xbf16>
    %87 = vector.shape_cast %86 : vector<1x128x32xbf16> to vector<128x32xbf16>
    %cst_78 = arith.constant dense<0.000000e+00> : vector<256x32xf32>
    %88 = tpu.matmul %85, %87, %cst_78 {dimension_numbers = #tpu.dot_dimension_numbers<[1], [0], [0], [1], [0, 0, 1, 1], [], []>} : vector<256x128xbf16>, vector<128x32xbf16>, vector<256x32xf32> -> vector<256x32xf32>
    %89 = arith.addf %82, %88 : vector<256x32xf32>
    %c0_79 = arith.constant 0 : index
    %c0_80 = arith.constant 0 : index
    %90 = vector.load %arg9[%c0_79, %c0_80] : memref<1x32xf32, #tpu.memory_space<vmem>>, vector<1x32xf32>
    %91 = vector.shape_cast %90 : vector<1x32xf32> to vector<32xf32>
    %92 = vector.shape_cast %91 : vector<32xf32> to vector<1x32xf32>
    %93 = vector.broadcast %92 : vector<1x32xf32> to vector<256x32xf32>
    %94 = arith.mulf %89, %93 : vector<256x32xf32>
    %c0_81 = arith.constant 0 : index
    %c0_82 = arith.constant 0 : index
    %95 = vector.load %arg10[%c0_81, %c0_82] : memref<1x32xf32, #tpu.memory_space<vmem>>, vector<1x32xf32>
    %96 = vector.shape_cast %95 : vector<1x32xf32> to vector<32xf32>
    %97 = vector.shape_cast %96 : vector<32xf32> to vector<1x32xf32>
    %98 = vector.broadcast %97 : vector<1x32xf32> to vector<256x32xf32>
    %99 = arith.addf %94, %98 : vector<256x32xf32>
    %cst_83 = arith.constant 0.000000e+00 : f32
    %100 = vector.broadcast %cst_83 : f32 to vector<256x32xf32>
    %101 = arith.maximumf %99, %100 : vector<256x32xf32>
    %c0_84 = arith.constant 0 : index
    %c0_85 = arith.constant 0 : index
    %102 = vector.load %arg13[%c0_84, %c0_85] : memref<2x32xbf16, #tpu.memory_space<vmem>>, vector<2x32xbf16>
    %103 = arith.truncf %101 : vector<256x32xf32> to vector<256x32xbf16>
    %cst_86 = arith.constant dense<0.000000e+00> : vector<2x256xf32>
    %104 = tpu.matmul %102, %103, %cst_86 {dimension_numbers = #tpu.dot_dimension_numbers<[1], [1], [0], [0], [0, 0, 1, 0], [], []>} : vector<2x32xbf16>, vector<256x32xbf16>, vector<2x256xf32> -> vector<2x256xf32>
    %c0_87 = arith.constant 0 : index
    %c0_88 = arith.constant 0 : index
    %105 = vector.load %arg14[%c0_87, %c0_88] : memref<2x1xf32, #tpu.memory_space<vmem>>, vector<2x1xf32>
    %106 = vector.broadcast %105 : vector<2x1xf32> to vector<2x256xf32>
    %107 = arith.addf %104, %106 : vector<2x256xf32>
    %cst_89 = arith.constant 0.000000e+00 : f32
    %108 = vector.broadcast %cst_89 : f32 to vector<2x256xf32>
    %109 = arith.subf %108, %107 : vector<2x256xf32>
    %110 = math.exp %109 : vector<2x256xf32>
    %cst_90 = arith.constant 1.000000e+00 : f32
    %111 = vector.broadcast %cst_90 : f32 to vector<2x256xf32>
    %112 = arith.addf %111, %110 : vector<2x256xf32>
    %113 = tpu.reciprocal %112 {approx = true} : vector<2x256xf32> -> vector<2x256xf32>
    %114 = vector.extract_strided_slice %23 {offsets = [0, 0], sizes = [1, 256], strides = [1, 1]} : vector<6x256xf32> to vector<1x256xf32>
    %115 = math.exp %114 : vector<1x256xf32>
    %116 = vector.extract_strided_slice %23 {offsets = [1, 0], sizes = [1, 256], strides = [1, 1]} : vector<6x256xf32> to vector<1x256xf32>
    %117 = vector.extract_strided_slice %23 {offsets = [2, 0], sizes = [4, 256], strides = [1, 1]} : vector<6x256xf32> to vector<4x256xf32>
    %cst_91 = arith.constant 0.000000e+00 : f32
    %118 = vector.broadcast %cst_91 : f32 to vector<4x256xf32>
    %119 = arith.subf %118, %117 : vector<4x256xf32>
    %120 = math.exp %119 : vector<4x256xf32>
    %cst_92 = arith.constant 1.000000e+00 : f32
    %121 = vector.broadcast %cst_92 : f32 to vector<4x256xf32>
    %122 = arith.addf %121, %120 : vector<4x256xf32>
    %123 = tpu.reciprocal %122 {approx = true} : vector<4x256xf32> -> vector<4x256xf32>
    %124 = tpu.concatenate %113, %115, %116, %123 in 0 : vector<2x256xf32>, vector<1x256xf32>, vector<1x256xf32>, vector<4x256xf32> -> vector<8x256xf32>
    %c0_93 = arith.constant 0 : index
    %c0_94 = arith.constant 0 : index
    %c0_95 = arith.constant 0 : index
    %125 = vector.load %arg15[%c0_93, %c0_94, %c0_95] : memref<1x8x256xf32, #tpu.memory_space<vmem>>, vector<1x8x256xf32>
    %126 = vector.shape_cast %125 : vector<1x8x256xf32> to vector<8x256xf32>
    %127 = vector.shape_cast %124 : vector<8x256xf32> to vector<1x8x256xf32>
    tpu.vector_store %arg15[%c0_93, %c0_94, %c0_95], %127 {strides = array<i32>} : memref<1x8x256xf32, #tpu.memory_space<vmem>>, vector<1x8x256xf32>,
    return
  }
  func.func @transform_0(%arg0: i32) -> (i32, i32, i32) {
    %c0_i32 = arith.constant 0 : i32
    %c0_i32_0 = arith.constant 0 : i32
    %c0_i32_1 = arith.constant 0 : i32
    return %arg0, %c0_i32, %c0_i32_0 : i32, i32, i32
  }
  func.func @transform_1(%arg0: i32) -> (i32, i32) {
    %c0_i32 = arith.constant 0 : i32
    %c0_i32_0 = arith.constant 0 : i32
    %c0_i32_1 = arith.constant 0 : i32
    return %c0_i32, %c0_i32_0 : i32, i32
  }
  func.func @transform_2(%arg0: i32) -> (i32, i32) {
    %c0_i32 = arith.constant 0 : i32
    %c0_i32_0 = arith.constant 0 : i32
    %c0_i32_1 = arith.constant 0 : i32
    return %c0_i32, %c0_i32_0 : i32, i32
  }
  func.func @transform_3(%arg0: i32) -> (i32, i32) {
    %c0_i32 = arith.constant 0 : i32
    %c0_i32_0 = arith.constant 0 : i32
    %c0_i32_1 = arith.constant 0 : i32
    return %c0_i32, %c0_i32_0 : i32, i32
  }
  func.func @transform_4(%arg0: i32) -> (i32, i32, i32) {
    %c0_i32 = arith.constant 0 : i32
    %c0_i32_0 = arith.constant 0 : i32
    %c0_i32_1 = arith.constant 0 : i32
    %c0_i32_2 = arith.constant 0 : i32
    return %c0_i32, %c0_i32_0, %c0_i32_1 : i32, i32, i32
  }
  func.func @transform_5(%arg0: i32) -> (i32, i32) {
    %c0_i32 = arith.constant 0 : i32
    %c0_i32_0 = arith.constant 0 : i32
    %c0_i32_1 = arith.constant 0 : i32
    return %c0_i32, %c0_i32_0 : i32, i32
  }
  func.func @transform_6(%arg0: i32) -> (i32, i32) {
    %c0_i32 = arith.constant 0 : i32
    %c0_i32_0 = arith.constant 0 : i32
    %c0_i32_1 = arith.constant 0 : i32
    return %c0_i32, %c0_i32_0 : i32, i32
  }
  func.func @transform_7(%arg0: i32) -> (i32, i32, i32) {
    %c0_i32 = arith.constant 0 : i32
    %c0_i32_0 = arith.constant 0 : i32
    %c0_i32_1 = arith.constant 0 : i32
    %c0_i32_2 = arith.constant 0 : i32
    return %c0_i32, %c0_i32_0, %c0_i32_1 : i32, i32, i32
  }
  func.func @transform_8(%arg0: i32) -> (i32, i32) {
    %c0_i32 = arith.constant 0 : i32
    %c0_i32_0 = arith.constant 0 : i32
    %c0_i32_1 = arith.constant 0 : i32
    return %c0_i32, %c0_i32_0 : i32, i32
  }
  func.func @transform_9(%arg0: i32) -> (i32, i32) {
    %c0_i32 = arith.constant 0 : i32
    %c0_i32_0 = arith.constant 0 : i32
    %c0_i32_1 = arith.constant 0 : i32
    return %c0_i32, %c0_i32_0 : i32, i32
  }
  func.func @transform_10(%arg0: i32) -> (i32, i32) {
    %c0_i32 = arith.constant 0 : i32
    %c0_i32_0 = arith.constant 0 : i32
    %c0_i32_1 = arith.constant 0 : i32
    return %c0_i32, %c0_i32_0 : i32, i32
  }
  func.func @transform_11(%arg0: i32) -> (i32, i32) {
    %c0_i32 = arith.constant 0 : i32
    %c0_i32_0 = arith.constant 0 : i32
    %c0_i32_1 = arith.constant 0 : i32
    return %c0_i32, %c0_i32_0 : i32, i32
  }
  func.func @transform_12(%arg0: i32) -> (i32, i32) {
    %c0_i32 = arith.constant 0 : i32
    %c0_i32_0 = arith.constant 0 : i32
    %c0_i32_1 = arith.constant 0 : i32
    return %c0_i32, %c0_i32_0 : i32, i32
  }
  func.func @transform_13(%arg0: i32) -> (i32, i32) {
    %c0_i32 = arith.constant 0 : i32
    %c0_i32_0 = arith.constant 0 : i32
    %c0_i32_1 = arith.constant 0 : i32
    return %c0_i32, %c0_i32_0 : i32, i32
  }
  func.func @transform_14(%arg0: i32) -> (i32, i32, i32) {
    %c0_i32 = arith.constant 0 : i32
    %c0_i32_0 = arith.constant 0 : i32
    %c0_i32_1 = arith.constant 0 : i32
    return %arg0, %c0_i32, %c0_i32_0 : i32, i32, i32
  }
}

</mosaic_0001>

<llo_original>
// kernel: _lambda_.1
$region0: #{_lambda_.1}
  #allocation0 [shape = 'u32[]', space=smem, size = 0x4, offset = 0x4, fixed_abs, tag = 'smem constant byte address 0x4 - core index']
  #allocation1 [shape = 'u32[72,128]{1,0:T(1,128)}', space=vmem, size = 0x9000, scoped, tag = 'internal scratch']
  #allocation2 [shape = 'f32[18,16,128]{2,1,0:T(8,128)}', space=vmem, size = 0x24000, scoped, tag = 'scratch operand']
  %s0 = inlined_call_operand.vmem [shape: bf16[2,256,384], index: 0, kind: input, shape index: {}]
  %s1 = inlined_call_operand.vmem [shape: bf16[384,160], index: 1, kind: input, shape index: {}]
  %s2 = inlined_call_operand.vmem [shape: f32[1,160], index: 2, kind: input, shape index: {}]
  %s3 = inlined_call_operand.vmem [shape: f32[1,160], index: 3, kind: input, shape index: {}]
  %s4 = inlined_call_operand.vmem [shape: bf16[3,128,32], index: 4, kind: input, shape index: {}]
  %s5 = inlined_call_operand.vmem [shape: f32[1,32], index: 5, kind: input, shape index: {}]
  %s6 = inlined_call_operand.vmem [shape: f32[1,32], index: 6, kind: input, shape index: {}]
  %s7 = inlined_call_operand.vmem [shape: bf16[3,128,32], index: 7, kind: input, shape index: {}]
  %s8 = inlined_call_operand.vmem [shape: f32[1,32], index: 8, kind: input, shape index: {}]
  %s9 = inlined_call_operand.vmem [shape: f32[1,32], index: 9, kind: input, shape index: {}]
  %s10 = inlined_call_operand.vmem [shape: bf16[6,128], index: 10, kind: input, shape index: {}]
  %s11 = inlined_call_operand.vmem [shape: f32[6,1], index: 11, kind: input, shape index: {}]
  %s12 = inlined_call_operand.vmem [shape: bf16[2,32], index: 12, kind: input, shape index: {}]
  %s13 = inlined_call_operand.vmem [shape: f32[2,1], index: 13, kind: input, shape index: {}]
  %s14 = inlined_call_operand.vmem [shape: f32[2,8,256], index: 14, kind: output, shape index: {}]
  %s15 = sld [smem:[#allocation0]]
  $region89: #{_lambda_.1} parent=0
    _
  %s17 = ssub.s32 1, %s15
  %s18 = scalar_select 0, %s17, %s15
  loop: start=0, step=1, limit=4
  $region2: #{_lambda_.1} parent=0 // loop_pre_header
    _
  $region3: #{_lambda_.1} parent=0 // loop_header
    %s20 = sphi 0, %s24
    %p21 = scmp.ge.s32.totalorder %s20, 4
    %s30 = sphi 0, %s32
    %s33 = sphi 0, %s30
    %s34 = sphi 0, %s33
    %s50 = sphi 0, %s34
    %s54 = sphi 0, %s54
    %s56 = sphi 0, %s54
    %s57 = sphi 0, %s56
    %s71 = sphi 0, %s57
    %s75 = sphi 0, %s75
    %s77 = sphi 0, %s75
    %s78 = sphi 0, %s77
    %s92 = sphi 0, %s78
    %s96 = sphi 0, %s96
    %s98 = sphi 0, %s96
    %s99 = sphi 0, %s98
    %s113 = sphi 0, %s99
    %s117 = sphi 0, %s117
    %s119 = sphi 0, %s117
    %s120 = sphi 0, %s119
    %s134 = sphi 0, %s120
    %s138 = sphi 0, %s138
    %s140 = sphi 0, %s138
    %s141 = sphi 0, %s140
    %s155 = sphi 0, %s141
    %s159 = sphi 0, %s159
    %s161 = sphi 0, %s159
    %s162 = sphi 0, %s161
    %s176 = sphi 0, %s162
    %s180 = sphi 0, %s180
    %s182 = sphi 0, %s180
    %s183 = sphi 0, %s182
    %s197 = sphi 0, %s183
    %s201 = sphi 0, %s201
    %s203 = sphi 0, %s201
    %s204 = sphi 0, %s203
    %s218 = sphi 0, %s204
    %s222 = sphi 0, %s222
    %s224 = sphi 0, %s222
    %s225 = sphi 0, %s224
    %s239 = sphi 0, %s225
    %s243 = sphi 0, %s243
    %s245 = sphi 0, %s243
    %s246 = sphi 0, %s245
    %s260 = sphi 0, %s246
    %s264 = sphi 0, %s264
    %s266 = sphi 0, %s264
    %s267 = sphi 0, %s266
    %s281 = sphi 0, %s267
    %s285 = sphi 0, %s285
    %s287 = sphi 0, %s285
    %s288 = sphi 0, %s287
    %s302 = sphi 0, %s288
    %s306 = sphi 0, %s306
    %s308 = sphi 0, %s306
    %s309 = sphi 0, %s308
    %s323 = sphi 0, %s309
    %s329 = sphi 0, %s331
    %s332 = sphi 0, %s329
    %s333 = sphi 0, %s332
    %s349 = sphi 0, %s333
  $region4: #{_lambda_.1} parent=0 // loop_header_branch
    %23 = sbr.rel (%p21) target = $region8
  $region5: #{_lambda_.1} parent=0 // loop_body
    %s25 = ssub.s32 %s20, 1
    %s26 = ssub.s32 %s20, 2
    %s27 = sadd.s32 %s20, 1
    %s28 = ssub.s32 %s20, %s27
    %p29 = scmp.eq.s32.totalorder %s28, 0
    %s31 = sadd.s32 %s30, 1
    %s32 = scalar_select %p29, %s30, %s31
    %p35 = pneg %p29
    %p36 = scmp.eq.s32.totalorder %s20, 1
    %p37 = por %p35, %p36
    %p38 = scmp.ne.s32.totalorder %s30, %s33
    %p39 = scmp.eq.s32.totalorder %s20, 0
    %p40 = por %p38, %p39
    %p41 = scmp.ne.s32.totalorder %s30, %s33
    %p42 = scmp.eq.s32.totalorder %s25, 1
    %p43 = por %p41, %p42
    %p44 = scmp.ne.s32.totalorder %s33, %s34
    %p45 = scmp.eq.s32.totalorder %s25, 0
    %p46 = por %p44, %p45
    %p47 = scmp.ne.s32.totalorder %s33, %s34
    %p48 = scmp.eq.s32.totalorder %s26, 1
    %p49 = por %p47, %p48
    %p51 = scmp.ne.s32.totalorder %s34, %s50
    %p52 = scmp.eq.s32.totalorder %s26, 0
    %p53 = por %p51, %p52
    %s55 = sadd.s32 %s54, 1
    %p58 = scmp.eq.s32.totalorder %s20, 1
    %p59 = scmp.ne.s32.totalorder %s54, %s56
    %p60 = scmp.eq.s32.totalorder %s20, 0
    %p61 = por %p59, %p60
    %p62 = scmp.ne.s32.totalorder %s54, %s56
    %p63 = scmp.eq.s32.totalorder %s25, 1
    %p64 = por %p62, %p63
    %p65 = scmp.ne.s32.totalorder %s56, %s57
    %p66 = scmp.eq.s32.totalorder %s25, 0
    %p67 = por %p65, %p66
    %p68 = scmp.ne.s32.totalorder %s56, %s57
    %p69 = scmp.eq.s32.totalorder %s26, 1
    %p70 = por %p68, %p69
    %p72 = scmp.ne.s32.totalorder %s57, %s71
    %p73 = scmp.eq.s32.totalorder %s26, 0
    %p74 = por %p72, %p73
    %s76 = sadd.s32 %s75, 1
    %p79 = scmp.eq.s32.totalorder %s20, 1
    %p80 = scmp.ne.s32.totalorder %s75, %s77
    %p81 = scmp.eq.s32.totalorder %s20, 0
    %p82 = por %p80, %p81
    %p83 = scmp.ne.s32.totalorder %s75, %s77
    %p84 = scmp.eq.s32.totalorder %s25, 1
    %p85 = por %p83, %p84
    %p86 = scmp.ne.s32.totalorder %s77, %s78
    %p87 = scmp.eq.s32.totalorder %s25, 0
    %p88 = por %p86, %p87
    %p89 = scmp.ne.s32.totalorder %s77, %s78
    %p90 = scmp.eq.s32.totalorder %s26, 1
    %p91 = por %p89, %p90
    %p93 = scmp.ne.s32.totalorder %s78, %s92
    %p94 = scmp.eq.s32.totalorder %s26, 0
    %p95 = por %p93, %p94
    %s97 = sadd.s32 %s96, 1
    %p100 = scmp.eq.s32.totalorder %s20, 1
    %p101 = scmp.ne.s32.totalorder %s96, %s98
    %p102 = scmp.eq.s32.totalorder %s20, 0
    %p103 = por %p101, %p102
    %p104 = scmp.ne.s32.totalorder %s96, %s98
    %p105 = scmp.eq.s32.totalorder %s25, 1
    %p106 = por %p104, %p105
    %p107 = scmp.ne.s32.totalorder %s98, %s99
    %p108 = scmp.eq.s32.totalorder %s25, 0
    %p109 = por %p107, %p108
    %p110 = scmp.ne.s32.totalorder %s98, %s99
    %p111 = scmp.eq.s32.totalorder %s26, 1
    %p112 = por %p110, %p111
    %p114 = scmp.ne.s32.totalorder %s99, %s113
    %p115 = scmp.eq.s32.totalorder %s26, 0
    %p116 = por %p114, %p115
    %s118 = sadd.s32 %s117, 1
    %p121 = scmp.eq.s32.totalorder %s20, 1
    %p122 = scmp.ne.s32.totalorder %s117, %s119
    %p123 = scmp.eq.s32.totalorder %s20, 0
    %p124 = por %p122, %p123
    %p125 = scmp.ne.s32.totalorder %s117, %s119
    %p126 = scmp.eq.s32.totalorder %s25, 1
    %p127 = por %p125, %p126
    %p128 = scmp.ne.s32.totalorder %s119, %s120
    %p129 = scmp.eq.s32.totalorder %s25, 0
    %p130 = por %p128, %p129
    %p131 = scmp.ne.s32.totalorder %s119, %s120
    %p132 = scmp.eq.s32.totalorder %s26, 1
    %p133 = por %p131, %p132
    %p135 = scmp.ne.s32.totalorder %s120, %s134
    %p136 = scmp.eq.s32.totalorder %s26, 0
    %p137 = por %p135, %p136
    %s139 = sadd.s32 %s138, 1
    %p142 = scmp.eq.s32.totalorder %s20, 1
    %p143 = scmp.ne.s32.totalorder %s138, %s140
    %p144 = scmp.eq.s32.totalorder %s20, 0
    %p145 = por %p143, %p144
    %p146 = scmp.ne.s32.totalorder %s138, %s140
    %p147 = scmp.eq.s32.totalorder %s25, 1
    %p148 = por %p146, %p147
    %p149 = scmp.ne.s32.totalorder %s140, %s141
    %p150 = scmp.eq.s32.totalorder %s25, 0
    %p151 = por %p149, %p150
    %p152 = scmp.ne.s32.totalorder %s140, %s141
    %p153 = scmp.eq.s32.totalorder %s26, 1
    %p154 = por %p152, %p153
    %p156 = scmp.ne.s32.totalorder %s141, %s155
    %p157 = scmp.eq.s32.totalorder %s26, 0
    %p158 = por %p156, %p157
    %s160 = sadd.s32 %s159, 1
    %p163 = scmp.eq.s32.totalorder %s20, 1
    %p164 = scmp.ne.s32.totalorder %s159, %s161
    %p165 = scmp.eq.s32.totalorder %s20, 0
    %p166 = por %p164, %p165
    %p167 = scmp.ne.s32.totalorder %s159, %s161
    %p168 = scmp.eq.s32.totalorder %s25, 1
    %p169 = por %p167, %p168
    %p170 = scmp.ne.s32.totalorder %s161, %s162
    %p171 = scmp.eq.s32.totalorder %s25, 0
    %p172 = por %p170, %p171
    %p173 = scmp.ne.s32.totalorder %s161, %s162
    %p174 = scmp.eq.s32.totalorder %s26, 1
    %p175 = por %p173, %p174
    %p177 = scmp.ne.s32.totalorder %s162, %s176
    %p178 = scmp.eq.s32.totalorder %s26, 0
    %p179 = por %p177, %p178
    %s181 = sadd.s32 %s180, 1
    %p184 = scmp.eq.s32.totalorder %s20, 1
    %p185 = scmp.ne.s32.totalorder %s180, %s182
    %p186 = scmp.eq.s32.totalorder %s20, 0
    %p187 = por %p185, %p186
    %p188 = scmp.ne.s32.totalorder %s180, %s182
    %p189 = scmp.eq.s32.totalorder %s25, 1
    %p190 = por %p188, %p189
    %p191 = scmp.ne.s32.totalorder %s182, %s183
    %p192 = scmp.eq.s32.totalorder %s25, 0
    %p193 = por %p191, %p192
    %p194 = scmp.ne.s32.totalorder %s182, %s183
    %p195 = scmp.eq.s32.totalorder %s26, 1
    %p196 = por %p194, %p195
    %p198 = scmp.ne.s32.totalorder %s183, %s197
    %p199 = scmp.eq.s32.totalorder %s26, 0
    %p200 = por %p198, %p199
    %s202 = sadd.s32 %s201, 1
    %p205 = scmp.eq.s32.totalorder %s20, 1
    %p206 = scmp.ne.s32.totalorder %s201, %s203
    %p207 = scmp.eq.s32.totalorder %s20, 0
    %p208 = por %p206, %p207
    %p209 = scmp.ne.s32.totalorder %s201, %s203
    %p210 = scmp.eq.s32.totalorder %s25, 1
    %p211 = por %p209, %p210
    %p212 = scmp.ne.s32.totalorder %s203, %s204
    %p213 = scmp.eq.s32.totalorder %s25, 0
    %p214 = por %p212, %p213
    %p215 = scmp.ne.s32.totalorder %s203, %s204
    %p216 = scmp.eq.s32.totalorder %s26, 1
    %p217 = por %p215, %p216
    %p219 = scmp.ne.s32.totalorder %s204, %s218
    %p220 = scmp.eq.s32.totalorder %s26, 0
    %p221 = por %p219, %p220
    %s223 = sadd.s32 %s222, 1
    %p226 = scmp.eq.s32.totalorder %s20, 1
    %p227 = scmp.ne.s32.totalorder %s222, %s224
    %p228 = scmp.eq.s32.totalorder %s20, 0
    %p229 = por %p227, %p228
    %p230 = scmp.ne.s32.totalorder %s222, %s224
    %p231 = scmp.eq.s32.totalorder %s25, 1
    %p232 = por %p230, %p231
    %p233 = scmp.ne.s32.totalorder %s224, %s225
    %p234 = scmp.eq.s32.totalorder %s25, 0
    %p235 = por %p233, %p234
    %p236 = scmp.ne.s32.totalorder %s224, %s225
    %p237 = scmp.eq.s32.totalorder %s26, 1
    %p238 = por %p236, %p237
    %p240 = scmp.ne.s32.totalorder %s225, %s239
    %p241 = scmp.eq.s32.totalorder %s26, 0
    %p242 = por %p240, %p241
    %s244 = sadd.s32 %s243, 1
    %p247 = scmp.eq.s32.totalorder %s20, 1
    %p248 = scmp.ne.s32.totalorder %s243, %s245
    %p249 = scmp.eq.s32.totalorder %s20, 0
    %p250 = por %p248, %p249
    %p251 = scmp.ne.s32.totalorder %s243, %s245
    %p252 = scmp.eq.s32.totalorder %s25, 1
    %p253 = por %p251, %p252
    %p254 = scmp.ne.s32.totalorder %s245, %s246
    %p255 = scmp.eq.s32.totalorder %s25, 0
    %p256 = por %p254, %p255
    %p257 = scmp.ne.s32.totalorder %s245, %s246
    %p258 = scmp.eq.s32.totalorder %s26, 1
    %p259 = por %p257, %p258
    %p261 = scmp.ne.s32.totalorder %s246, %s260
    %p262 = scmp.eq.s32.totalorder %s26, 0
    %p263 = por %p261, %p262
    %s265 = sadd.s32 %s264, 1
    %p268 = scmp.eq.s32.totalorder %s20, 1
    %p269 = scmp.ne.s32.totalorder %s264, %s266
    %p270 = scmp.eq.s32.totalorder %s20, 0
    %p271 = por %p269, %p270
    %p272 = scmp.ne.s32.totalorder %s264, %s266
    %p273 = scmp.eq.s32.totalorder %s25, 1
    %p274 = por %p272, %p273
    %p275 = scmp.ne.s32.totalorder %s266, %s267
    %p276 = scmp.eq.s32.totalorder %s25, 0
    %p277 = por %p275, %p276
    %p278 = scmp.ne.s32.totalorder %s266, %s267
    %p279 = scmp.eq.s32.totalorder %s26, 1
    %p280 = por %p278, %p279
    %p282 = scmp.ne.s32.totalorder %s267, %s281
    %p283 = scmp.eq.s32.totalorder %s26, 0
    %p284 = por %p282, %p283
    %s286 = sadd.s32 %s285, 1
    %p289 = scmp.eq.s32.totalorder %s20, 1
    %p290 = scmp.ne.s32.totalorder %s285, %s287
    %p291 = scmp.eq.s32.totalorder %s20, 0
    %p292 = por %p290, %p291
    %p293 = scmp.ne.s32.totalorder %s285, %s287
    %p294 = scmp.eq.s32.totalorder %s25, 1
    %p295 = por %p293, %p294
    %p296 = scmp.ne.s32.totalorder %s287, %s288
    %p297 = scmp.eq.s32.totalorder %s25, 0
    %p298 = por %p296, %p297
    %p299 = scmp.ne.s32.totalorder %s287, %s288
    %p300 = scmp.eq.s32.totalorder %s26, 1
    %p301 = por %p299, %p300
    %p303 = scmp.ne.s32.totalorder %s288, %s302
    %p304 = scmp.eq.s32.totalorder %s26, 0
    %p305 = por %p303, %p304
    %s307 = sadd.s32 %s306, 1
    %p310 = scmp.eq.s32.totalorder %s20, 1
    %p311 = scmp.ne.s32.totalorder %s306, %s308
    %p312 = scmp.eq.s32.totalorder %s20, 0
    %p313 = por %p311, %p312
    %p314 = scmp.ne.s32.totalorder %s306, %s308
    %p315 = scmp.eq.s32.totalorder %s25, 1
    %p316 = por %p314, %p315
    %p317 = scmp.ne.s32.totalorder %s308, %s309
    %p318 = scmp.eq.s32.totalorder %s25, 0
    %p319 = por %p317, %p318
    %p320 = scmp.ne.s32.totalorder %s308, %s309
    %p321 = scmp.eq.s32.totalorder %s26, 1
    %p322 = por %p320, %p321
    %p324 = scmp.ne.s32.totalorder %s309, %s323
    %p325 = scmp.eq.s32.totalorder %s26, 0
    %p326 = por %p324, %p325
    %s327 = ssub.s32 %s20, %s27
    %p328 = scmp.eq.s32.totalorder %s327, 0
    %s330 = sadd.s32 %s329, 1
    %s331 = scalar_select %p328, %s329, %s330
    %p334 = pneg %p328
    %p335 = scmp.eq.s32.totalorder %s20, 1
    %p336 = por %p334, %p335
    %p337 = scmp.ne.s32.totalorder %s329, %s332
    %p338 = scmp.eq.s32.totalorder %s20, 0
    %p339 = por %p337, %p338
    %p340 = scmp.ne.s32.totalorder %s329, %s332
    %p341 = scmp.eq.s32.totalorder %s25, 1
    %p342 = por %p340, %p341
    %p343 = scmp.ne.s32.totalorder %s332, %s333
    %p344 = scmp.eq.s32.totalorder %s25, 0
    %p345 = por %p343, %p344
    %p346 = scmp.ne.s32.totalorder %s332, %s333
    %p347 = scmp.eq.s32.totalorder %s26, 1
    %p348 = por %p346, %p347
    %p350 = scmp.ne.s32.totalorder %s333, %s349
    %p351 = scmp.eq.s32.totalorder %s26, 0
    %p352 = por %p350, %p351
    %p353 = scmp.le.s32.totalorder 1, %s20
    %p354 = scmp.lt.s32.totalorder %s20, 3
    %p355 = pnand %p353, %p354
    %p356 = pneg %p355
    // Predicated region
    $region9: #{_lambda_.1} parent=5 // pred_check
      _
    $region10: #{_lambda_.1} parent=5 // pred_check_branch
      %358 = sbr.rel (%p355) target = $region12
    $region11: #{_lambda_.1} parent=5 // pred_region
      %s359 = ssub.s32 %s20, 1
      // Predicated region
      $region13: #{_lambda_.1} parent=11 // pred_check
        %p360 = pneg %p67
      $region14: #{_lambda_.1} parent=11 // pred_check_branch
        %362 = sbr.rel (%p360) target = $region16
      $region15: #{_lambda_.1} parent=11 // pred_region
        _
      $region16: #{_lambda_.1} parent=11 // pred_fallthru
        _
      // Predicated region
      $region17: #{_lambda_.1} parent=11 // pred_check
        %p363 = pneg %p88
      $region18: #{_lambda_.1} parent=11 // pred_check_branch
        %365 = sbr.rel (%p363) target = $region20
      $region19: #{_lambda_.1} parent=11 // pred_region
        _
      $region20: #{_lambda_.1} parent=11 // pred_fallthru
        _
      // Predicated region
      $region21: #{_lambda_.1} parent=11 // pred_check
        %p366 = pneg %p109
      $region22: #{_lambda_.1} parent=11 // pred_check_branch
        %368 = sbr.rel (%p366) target = $region24
      $region23: #{_lambda_.1} parent=11 // pred_region
        _
      $region24: #{_lambda_.1} parent=11 // pred_fallthru
        _
      // Predicated region
      $region25: #{_lambda_.1} parent=11 // pred_check
        %p369 = pneg %p130
      $region26: #{_lambda_.1} parent=11 // pred_check_branch
        %371 = sbr.rel (%p369) target = $region28
      $region27: #{_lambda_.1} parent=11 // pred_region
        _
      $region28: #{_lambda_.1} parent=11 // pred_fallthru
        _
      // Predicated region
      $region29: #{_lambda_.1} parent=11 // pred_check
        %p372 = pneg %p151
      $region30: #{_lambda_.1} parent=11 // pred_check_branch
        %374 = sbr.rel (%p372) target = $region32
      $region31: #{_lambda_.1} parent=11 // pred_region
        _
      $region32: #{_lambda_.1} parent=11 // pred_fallthru
        _
      // Predicated region
      $region33: #{_lambda_.1} parent=11 // pred_check
        %p375 = pneg %p172
      $region34: #{_lambda_.1} parent=11 // pred_check_branch
        %377 = sbr.rel (%p375) target = $region36
      $region35: #{_lambda_.1} parent=11 // pred_region
        _
      $region36: #{_lambda_.1} parent=11 // pred_fallthru
        _
      // Predicated region
      $region37: #{_lambda_.1} parent=11 // pred_check
        %p378 = pneg %p193
      $region38: #{_lambda_.1} parent=11 // pred_check_branch
        %380 = sbr.rel (%p378) target = $region40
      $region39: #{_lambda_.1} parent=11 // pred_region
        _
      $region40: #{_lambda_.1} parent=11 // pred_fallthru
        _
      // Predicated region
      $region41: #{_lambda_.1} parent=11 // pred_check
        %p381 = pneg %p214
      $region42: #{_lambda_.1} parent=11 // pred_check_branch
        %383 = sbr.rel (%p381) target = $region44
      $region43: #{_lambda_.1} parent=11 // pred_region
        _
      $region44: #{_lambda_.1} parent=11 // pred_fallthru
        _
      // Predicated region
      $region45: #{_lambda_.1} parent=11 // pred_check
        %p384 = pneg %p235
      $region46: #{_lambda_.1} parent=11 // pred_check_branch
        %386 = sbr.rel (%p384) target = $region48
      $region47: #{_lambda_.1} parent=11 // pred_region
        _
      $region48: #{_lambda_.1} parent=11 // pred_fallthru
        _
      // Predicated region
      $region49: #{_lambda_.1} parent=11 // pred_check
        %p387 = pneg %p256
      $region50: #{_lambda_.1} parent=11 // pred_check_branch
        %389 = sbr.rel (%p387) target = $region52
      $region51: #{_lambda_.1} parent=11 // pred_region
        _
      $region52: #{_lambda_.1} parent=11 // pred_fallthru
        _
      // Predicated region
      $region53: #{_lambda_.1} parent=11 // pred_check
        %p390 = pneg %p277
      $region54: #{_lambda_.1} parent=11 // pred_check_branch
        %392 = sbr.rel (%p390) target = $region56
      $region55: #{_lambda_.1} parent=11 // pred_region
        _
      $region56: #{_lambda_.1} parent=11 // pred_fallthru
        _
      // Predicated region
      $region57: #{_lambda_.1} parent=11 // pred_check
        %p393 = pneg %p298
      $region58: #{_lambda_.1} parent=11 // pred_check_branch
        %395 = sbr.rel (%p393) target = $region60
      $region59: #{_lambda_.1} parent=11 // pred_region
        _
      $region60: #{_lambda_.1} parent=11 // pred_fallthru
        _
      // Predicated region
      $region61: #{_lambda_.1} parent=11 // pred_check
        %p396 = pneg %p319
      $region62: #{_lambda_.1} parent=11 // pred_check_branch
        %398 = sbr.rel (%p396) target = $region64
      $region63: #{_lambda_.1} parent=11 // pred_region
        _
      $region64: #{_lambda_.1} parent=11 // pred_fallthru
        _
    $region12: #{_lambda_.1} parent=5 // pred_fallthru
      _
    %p399 = scmp.lt.s32.totalorder %s20, 2
    // Predicated region
    $region65: #{_lambda_.1} parent=5 // pred_check
      %p400 = pneg %p399
    $region66: #{_lambda_.1} parent=5 // pred_check_branch
      %402 = sbr.rel (%p400) target = $region68
    $region67: #{_lambda_.1} parent=5 // pred_region
      // Predicated region
      $region69: #{_lambda_.1} parent=67 // pred_check
        %p403 = pneg %p40
      $region70: #{_lambda_.1} parent=67 // pred_check_branch
        %405 = sbr.rel (%p403) target = $region72
      $region71: #{_lambda_.1} parent=67 // pred_region
        %p406 = scmp.lt.s32.totalorder %s20, 1
        %s407 = scalar_select %p406, %s20, 1
        %s408 = smul.addr %s407, 96
        %s409 = smul.addr %s408, 4
        %s410 = scalar_lea.vmem %s0, %s409
      $region72: #{_lambda_.1} parent=67 // pred_fallthru
        _
    $region68: #{_lambda_.1} parent=5 // pred_fallthru
      _
    %p411 = scmp.le.s32.totalorder 1, %s20
    %p412 = scmp.lt.s32.totalorder %s20, 3
    %p413 = pnand %p411, %p412
    %p414 = pneg %p413
    // Predicated region
    $region73: #{_lambda_.1} parent=5 // pred_check
      _
    $region74: #{_lambda_.1} parent=5 // pred_check_branch
      %416 = sbr.rel (%p413) target = $region76
    $region75: #{_lambda_.1} parent=5 // pred_region
      %s417 = ssub.s32 %s20, 1
      %p418 = scmp.lt.s32.totalorder %s25, 1
      %s419 = scalar_select %p418, %s25, 1
      %s420 = smul.addr %s419, 96
      %s421 = smul.addr %s420, 4
      %s422 = scalar_lea.vmem %s0, %s421
      %p423 = pneg %p46
      %p424 = pneg %p43
      %p425 = pneg %p67
      %p426 = pneg %p64
      %p427 = pneg %p88
      %p428 = pneg %p85
      %p429 = pneg %p109
      %p430 = pneg %p106
      %p431 = pneg %p130
      %p432 = pneg %p127
      %p433 = pneg %p151
      %p434 = pneg %p148
      %p435 = pneg %p172
      %p436 = pneg %p169
      %p437 = pneg %p193
      %p438 = pneg %p190
      %p439 = pneg %p214
      %p440 = pneg %p211
      %p441 = pneg %p235
      %p442 = pneg %p232
      %p443 = pneg %p256
      %p444 = pneg %p253
      %p445 = pneg %p277
      %p446 = pneg %p274
      %p447 = pneg %p298
      %p448 = pneg %p295
      %p449 = pneg %p319
      %p450 = pneg %p316
      %p451 = pneg %p345
      %p452 = pneg %p342
      %p453 = scmp.lt.s32.totalorder %s25, 1
      %s454 = scalar_select %p453, %s25, 1
      %s455 = smul.addr %s454, 2
      %s456 = smul.addr %s455, 8
      %s457 = scalar_lea.vmem %s14, %s456
      %p458 = scmp.lt.s32.totalorder %s25, 1
      %s459 = scalar_select %p458, %s25, 1
      %s460 = smul.addr %s459, 96
      %s461 = smul.addr %s460, 4
      %s462 = scalar_lea.vmem %s0, %s461
      %p463 = scmp.lt.s32.totalorder %s25, 1
      %s464 = scalar_select %p463, %s25, 1
      %s465 = smul.addr %s464, 2
      %s466 = smul.addr %s465, 8
      %s467 = scalar_lea.vmem %s14, %s466
      %v468 = vld [vmem:[%s462] sm:$0xff]
      %v469 = vld [vmem:[%s462 + $0x8] sm:$0xf]
      %v470 = vld [vmem:[%s462 + $0xc] sm:$0xff]
      %v471 = vld [vmem:[%s462 + $0x14] sm:$0xf]
      %v472 = vld [vmem:[%s462 + $0x18] sm:$0xff]
      %v473 = vld [vmem:[%s462 + $0x20] sm:$0xf]
      %v474 = vld [vmem:[%s462 + $0x24] sm:$0xff]
      %v475 = vld [vmem:[%s462 + $0x2c] sm:$0xf]
      %v476 = vld [vmem:[%s462 + $0x30] sm:$0xff]
      %v477 = vld [vmem:[%s462 + $0x38] sm:$0xf]
      %v478 = vld [vmem:[%s462 + $0x3c] sm:$0xff]
      %v479 = vld [vmem:[%s462 + $0x44] sm:$0xf]
      %v480 = vld [vmem:[%s462 + $0x48] sm:$0xff]
      %v481 = vld [vmem:[%s462 + $0x50] sm:$0xf]
      %v482 = vld [vmem:[%s462 + $0x54] sm:$0xff]
      %v483 = vld [vmem:[%s462 + $0x5c] sm:$0xf]
      %v484 = vld [vmem:[%s462 + $0x60] sm:$0xff]
      %v485 = vld [vmem:[%s462 + $0x68] sm:$0xf]
      %v486 = vld [vmem:[%s462 + $0x6c] sm:$0xff]
      %v487 = vld [vmem:[%s462 + $0x74] sm:$0xf]
      %v488 = vld [vmem:[%s462 + $0x78] sm:$0xff]
      %v489 = vld [vmem:[%s462 + $0x80] sm:$0xf]
      %v490 = vld [vmem:[%s462 + $0x84] sm:$0xff]
      %v491 = vld [vmem:[%s462 + $0x8c] sm:$0xf]
      %v492 = vld [vmem:[%s462 + $0x90] sm:$0xff]
      %v493 = vld [vmem:[%s462 + $0x98] sm:$0xf]
      %v494 = vld [vmem:[%s462 + $0x9c] sm:$0xff]
      %v495 = vld [vmem:[%s462 + $0xa4] sm:$0xf]
      %v496 = vld [vmem:[%s462 + $0xa8] sm:$0xff]
      %v497 = vld [vmem:[%s462 + $0xb0] sm:$0xf]
      %v498 = vld [vmem:[%s462 + $0xb4] sm:$0xff]
      %v499 = vld [vmem:[%s462 + $0xbc] sm:$0xf]
      %v500 = vld [vmem:[%s462 + $0xc0] sm:$0xff]
      %v501 = vld [vmem:[%s462 + $0xc8] sm:$0xf]
      %v502 = vld [vmem:[%s462 + $0xcc] sm:$0xff]
      %v503 = vld [vmem:[%s462 + $0xd4] sm:$0xf]
      %v504 = vld [vmem:[%s462 + $0xd8] sm:$0xff]
      %v505 = vld [vmem:[%s462 + $0xe0] sm:$0xf]
      %v506 = vld [vmem:[%s462 + $0xe4] sm:$0xff]
      %v507 = vld [vmem:[%s462 + $0xec] sm:$0xf]
      %v508 = vld [vmem:[%s462 + $0xf0] sm:$0xff]
      %v509 = vld [vmem:[%s462 + $0xf8] sm:$0xf]
      %v510 = vld [vmem:[%s462 + $0xfc] sm:$0xff]
      %v511 = vld [vmem:[%s462 + $0x104] sm:$0xf]
      %v512 = vld [vmem:[%s462 + $0x108] sm:$0xff]
      %v513 = vld [vmem:[%s462 + $0x110] sm:$0xf]
      %v514 = vld [vmem:[%s462 + $0x114] sm:$0xff]
      %v515 = vld [vmem:[%s462 + $0x11c] sm:$0xf]
      %v516 = vld [vmem:[%s462 + $0x120] sm:$0xff]
      %v517 = vld [vmem:[%s462 + $0x128] sm:$0xf]
      %v518 = vld [vmem:[%s462 + $0x12c] sm:$0xff]
      %v519 = vld [vmem:[%s462 + $0x134] sm:$0xf]
      %v520 = vld [vmem:[%s462 + $0x138] sm:$0xff]
      %v521 = vld [vmem:[%s462 + $0x140] sm:$0xf]
      %v522 = vld [vmem:[%s462 + $0x144] sm:$0xff]
      %v523 = vld [vmem:[%s462 + $0x14c] sm:$0xf]
      %v524 = vld [vmem:[%s462 + $0x150] sm:$0xff]
      %v525 = vld [vmem:[%s462 + $0x158] sm:$0xf]
      %v526 = vld [vmem:[%s462 + $0x15c] sm:$0xff]
      %v527 = vld [vmem:[%s462 + $0x164] sm:$0xf]
      %v528 = vld [vmem:[%s462 + $0x168] sm:$0xff]
      %v529 = vld [vmem:[%s462 + $0x170] sm:$0xf]
      %v530 = vld [vmem:[%s462 + $0x174] sm:$0xff]
      %v531 = vld [vmem:[%s462 + $0x17c] sm:$0xf]
      %v532 = vld [vmem:[%s1] sm:$0xff]
      %v533 = vld [vmem:[%s1 + $0x8] sm:$0xff]
      %v534 = vld [vmem:[%s1 + $0x10] sm:$0xff]
      %v535 = vld [vmem:[%s1 + $0x18] sm:$0xff]
      %v536 = vld [vmem:[%s1 + $0x20] sm:$0xff]
      %v537 = vld [vmem:[%s1 + $0x28] sm:$0xff]
      %v538 = vld [vmem:[%s1 + $0x30] sm:$0xff]
      %v539 = vld [vmem:[%s1 + $0x38] sm:$0xff]
      %v540 = vld [vmem:[%s1 + $0x40] sm:$0xff]
      %v541 = vld [vmem:[%s1 + $0x48] sm:$0xff]
      %v542 = vld [vmem:[%s1 + $0x50] sm:$0xff]
      %v543 = vld [vmem:[%s1 + $0x58] sm:$0xff]
      %v544 = vld [vmem:[%s1 + $0x60] sm:$0xff]
      %v545 = vld [vmem:[%s1 + $0x68] sm:$0xff]
      %v546 = vld [vmem:[%s1 + $0x70] sm:$0xff]
      %v547 = vld [vmem:[%s1 + $0x78] sm:$0xff]
      %v548 = vld [vmem:[%s1 + $0x80] sm:$0xff]
      %v549 = vld [vmem:[%s1 + $0x88] sm:$0xff]
      %v550 = vld [vmem:[%s1 + $0x90] sm:$0xff]
      %v551 = vld [vmem:[%s1 + $0x98] sm:$0xff]
      %v552 = vld [vmem:[%s1 + $0xa0] sm:$0xff]
      %v553 = vld [vmem:[%s1 + $0xa8] sm:$0xff]
      %v554 = vld [vmem:[%s1 + $0xb0] sm:$0xff]
      %v555 = vld [vmem:[%s1 + $0xb8] sm:$0xff]
      %v556 = vld [vmem:[%s1 + $0xc0] sm:$0xff]
      %v557 = vld [vmem:[%s1 + $0xc8] sm:$0xff]
      %v558 = vld [vmem:[%s1 + $0xd0] sm:$0xff]
      %v559 = vld [vmem:[%s1 + $0xd8] sm:$0xff]
      %v560 = vld [vmem:[%s1 + $0xe0] sm:$0xff]
      %v561 = vld [vmem:[%s1 + $0xe8] sm:$0xff]
      %v562 = vld [vmem:[%s1 + $0xf0] sm:$0xff]
      %v563 = vld [vmem:[%s1 + $0xf8] sm:$0xff]
      %v564 = vld [vmem:[%s1 + $0x100] sm:$0xff]
      %v565 = vld [vmem:[%s1 + $0x108] sm:$0xff]
      %v566 = vld [vmem:[%s1 + $0x110] sm:$0xff]
      %v567 = vld [vmem:[%s1 + $0x118] sm:$0xff]
      %v568 = vld [vmem:[%s1 + $0x120] sm:$0xff]
      %v569 = vld [vmem:[%s1 + $0x128] sm:$0xff]
      %v570 = vld [vmem:[%s1 + $0x130] sm:$0xff]
      %v571 = vld [vmem:[%s1 + $0x138] sm:$0xff]
      %v572 = vld [vmem:[%s1 + $0x140] sm:$0xff]
      %v573 = vld [vmem:[%s1 + $0x148] sm:$0xff]
      %v574 = vld [vmem:[%s1 + $0x150] sm:$0xff]
      %v575 = vld [vmem:[%s1 + $0x158] sm:$0xff]
      %v576 = vld [vmem:[%s1 + $0x160] sm:$0xff]
      %v577 = vld [vmem:[%s1 + $0x168] sm:$0xff]
      %v578 = vld [vmem:[%s1 + $0x170] sm:$0xff]
      %v579 = vld [vmem:[%s1 + $0x178] sm:$0xff]
      %v644 = vunpack.c.l.b16 %v468
      %v645 = vunpack.c.h.b16 %v468
      %v646 = vunpack.c.l.b16 %v469
      %v647 = vunpack.c.l.b16 %v470
      %v648 = vunpack.c.h.b16 %v470
      %v649 = vunpack.c.l.b16 %v471
      %v650 = vunpack.c.l.b16 %v472
      %v651 = vunpack.c.h.b16 %v472
      %v652 = vunpack.c.l.b16 %v473
      %v653 = vunpack.c.l.b16 %v474
      %v654 = vunpack.c.h.b16 %v474
      %v655 = vunpack.c.l.b16 %v475
      %v656 = vunpack.c.l.b16 %v476
      %v657 = vunpack.c.h.b16 %v476
      %v658 = vunpack.c.l.b16 %v477
      %v659 = vunpack.c.l.b16 %v478
      %v660 = vunpack.c.h.b16 %v478
      %v661 = vunpack.c.l.b16 %v479
      %v662 = vunpack.c.l.b16 %v480
      %v663 = vunpack.c.h.b16 %v480
      %v664 = vunpack.c.l.b16 %v481
      %v665 = vunpack.c.l.b16 %v482
      %v666 = vunpack.c.h.b16 %v482
      %v667 = vunpack.c.l.b16 %v483
      %v668 = vunpack.c.l.b16 %v484
      %v669 = vunpack.c.h.b16 %v484
      %v670 = vunpack.c.l.b16 %v485
      %v671 = vunpack.c.l.b16 %v486
      %v672 = vunpack.c.h.b16 %v486
      %v673 = vunpack.c.l.b16 %v487
      %v674 = vunpack.c.l.b16 %v488
      %v675 = vunpack.c.h.b16 %v488
      %v676 = vunpack.c.l.b16 %v489
      %v677 = vunpack.c.l.b16 %v490
      %v678 = vunpack.c.h.b16 %v490
      %v679 = vunpack.c.l.b16 %v491
      %v680 = vunpack.c.l.b16 %v492
      %v681 = vunpack.c.h.b16 %v492
      %v682 = vunpack.c.l.b16 %v493
      %v683 = vunpack.c.l.b16 %v494
      %v684 = vunpack.c.h.b16 %v494
      %v685 = vunpack.c.l.b16 %v495
      %v686 = vunpack.c.l.b16 %v496
      %v687 = vunpack.c.h.b16 %v496
      %v688 = vunpack.c.l.b16 %v497
      %v689 = vunpack.c.l.b16 %v498
      %v690 = vunpack.c.h.b16 %v498
      %v691 = vunpack.c.l.b16 %v499
      %v692 = vunpack.c.l.b16 %v500
      %v693 = vunpack.c.h.b16 %v500
      %v694 = vunpack.c.l.b16 %v501
      %v695 = vunpack.c.l.b16 %v502
      %v696 = vunpack.c.h.b16 %v502
      %v697 = vunpack.c.l.b16 %v503
      %v698 = vunpack.c.l.b16 %v504
      %v699 = vunpack.c.h.b16 %v504
      %v700 = vunpack.c.l.b16 %v505
      %v701 = vunpack.c.l.b16 %v506
      %v702 = vunpack.c.h.b16 %v506
      %v703 = vunpack.c.l.b16 %v507
      %v704 = vunpack.c.l.b16 %v508
      %v705 = vunpack.c.h.b16 %v508
      %v706 = vunpack.c.l.b16 %v509
      %v707 = vunpack.c.l.b16 %v510
      %v708 = vunpack.c.h.b16 %v510
      %v709 = vunpack.c.l.b16 %v511
      %v710 = vunpack.c.l.b16 %v512
      %v711 = vunpack.c.h.b16 %v512
      %v712 = vunpack.c.l.b16 %v513
      %v713 = vunpack.c.l.b16 %v514
      %v714 = vunpack.c.h.b16 %v514
      %v715 = vunpack.c.l.b16 %v515
      %v716 = vunpack.c.l.b16 %v516
      %v717 = vunpack.c.h.b16 %v516
      %v718 = vunpack.c.l.b16 %v517
      %v719 = vunpack.c.l.b16 %v518
      %v720 = vunpack.c.h.b16 %v518
      %v721 = vunpack.c.l.b16 %v519
      %v722 = vunpack.c.l.b16 %v520
      %v723 = vunpack.c.h.b16 %v520
      %v724 = vunpack.c.l.b16 %v521
      %v725 = vunpack.c.l.b16 %v522
      %v726 = vunpack.c.h.b16 %v522
      %v727 = vunpack.c.l.b16 %v523
      %v728 = vunpack.c.l.b16 %v524
      %v729 = vunpack.c.h.b16 %v524
      %v730 = vunpack.c.l.b16 %v525
      %v731 = vunpack.c.l.b16 %v526
      %v732 = vunpack.c.h.b16 %v526
      %v733 = vunpack.c.l.b16 %v527
      %v734 = vunpack.c.l.b16 %v528
      %v735 = vunpack.c.h.b16 %v528
      %v736 = vunpack.c.l.b16 %v529
      %v737 = vunpack.c.l.b16 %v530
      %v738 = vunpack.c.h.b16 %v530
      %v739 = vunpack.c.l.b16 %v531
      %v740 = vpack.c.b16 %v647, %v644
      %v741 = vpack.c.b16 %v648, %v645
      %v742 = vpack.c.b16 %v649, %v646
      %v743 = vpack.c.b16 %v653, %v650
      %v744 = vpack.c.b16 %v654, %v651
      %v745 = vpack.c.b16 %v655, %v652
      %v746 = vpack.c.b16 %v659, %v656
      %v747 = vpack.c.b16 %v660, %v657
      %v748 = vpack.c.b16 %v661, %v658
      %v749 = vpack.c.b16 %v665, %v662
      %v750 = vpack.c.b16 %v666, %v663
      %v751 = vpack.c.b16 %v667, %v664
      %v752 = vpack.c.b16 %v671, %v668
      %v753 = vpack.c.b16 %v672, %v669
      %v754 = vpack.c.b16 %v673, %v670
      %v755 = vpack.c.b16 %v677, %v674
      %v756 = vpack.c.b16 %v678, %v675
      %v757 = vpack.c.b16 %v679, %v676
      %v758 = vpack.c.b16 %v683, %v680
      %v759 = vpack.c.b16 %v684, %v681
      %v760 = vpack.c.b16 %v685, %v682
      %v761 = vpack.c.b16 %v689, %v686
      %v762 = vpack.c.b16 %v690, %v687
      %v763 = vpack.c.b16 %v691, %v688
      %v764 = vpack.c.b16 %v695, %v692
      %v765 = vpack.c.b16 %v696, %v693
      %v766 = vpack.c.b16 %v697, %v694
      %v767 = vpack.c.b16 %v701, %v698
      %v768 = vpack.c.b16 %v702, %v699
      %v769 = vpack.c.b16 %v703, %v700
      %v770 = vpack.c.b16 %v707, %v704
      %v771 = vpack.c.b16 %v708, %v705
      %v772 = vpack.c.b16 %v709, %v706
      %v773 = vpack.c.b16 %v713, %v710
      %v774 = vpack.c.b16 %v714, %v711
      %v775 = vpack.c.b16 %v715, %v712
      %v776 = vpack.c.b16 %v719, %v716
      %v777 = vpack.c.b16 %v720, %v717
      %v778 = vpack.c.b16 %v721, %v718
      %v779 = vpack.c.b16 %v725, %v722
      %v780 = vpack.c.b16 %v726, %v723
      %v781 = vpack.c.b16 %v727, %v724
      %v782 = vpack.c.b16 %v731, %v728
      %v783 = vpack.c.b16 %v732, %v729
      %v784 = vpack.c.b16 %v733, %v730
      %v785 = vpack.c.b16 %v737, %v734
      %v786 = vpack.c.b16 %v738, %v735
      %v787 = vpack.c.b16 %v739, %v736
      %v884 = vunpack.c.l.b16 %v532
      %v885 = vunpack.c.h.b16 %v532
      %v886 = vunpack.c.l.b16 %v533
      %v887 = vunpack.c.h.b16 %v533
      %v888 = vunpack.c.l.b16 %v534
      %v889 = vunpack.c.h.b16 %v534
      %v890 = vunpack.c.l.b16 %v535
      %v891 = vunpack.c.h.b16 %v535
      %v892 = vunpack.c.l.b16 %v536
      %v893 = vunpack.c.h.b16 %v536
      %v894 = vunpack.c.l.b16 %v537
      %v895 = vunpack.c.h.b16 %v537
      %v896 = vunpack.c.l.b16 %v538
      %v897 = vunpack.c.h.b16 %v538
      %v898 = vunpack.c.l.b16 %v539
      %v899 = vunpack.c.h.b16 %v539
      %v900 = vunpack.c.l.b16 %v540
      %v901 = vunpack.c.h.b16 %v540
      %v902 = vunpack.c.l.b16 %v541
      %v903 = vunpack.c.h.b16 %v541
      %v904 = vunpack.c.l.b16 %v542
      %v905 = vunpack.c.h.b16 %v542
      %v906 = vunpack.c.l.b16 %v543
      %v907 = vunpack.c.h.b16 %v543
      %v908 = vunpack.c.l.b16 %v544
      %v909 = vunpack.c.h.b16 %v544
      %v910 = vunpack.c.l.b16 %v545
      %v911 = vunpack.c.h.b16 %v545
      %v912 = vunpack.c.l.b16 %v546
      %v913 = vunpack.c.h.b16 %v546
      %v914 = vunpack.c.l.b16 %v547
      %v915 = vunpack.c.h.b16 %v547
      %v916 = vunpack.c.l.b16 %v548
      %v917 = vunpack.c.h.b16 %v548
      %v918 = vunpack.c.l.b16 %v549
      %v919 = vunpack.c.h.b16 %v549
      %v920 = vunpack.c.l.b16 %v550
      %v921 = vunpack.c.h.b16 %v550
      %v922 = vunpack.c.l.b16 %v551
      %v923 = vunpack.c.h.b16 %v551
      %v924 = vunpack.c.l.b16 %v552
      %v925 = vunpack.c.h.b16 %v552
      %v926 = vunpack.c.l.b16 %v553
      %v927 = vunpack.c.h.b16 %v553
      %v928 = vunpack.c.l.b16 %v554
      %v929 = vunpack.c.h.b16 %v554
      %v930 = vunpack.c.l.b16 %v555
      %v931 = vunpack.c.h.b16 %v555
      %v932 = vunpack.c.l.b16 %v556
      %v933 = vunpack.c.h.b16 %v556
      %v934 = vunpack.c.l.b16 %v557
      %v935 = vunpack.c.h.b16 %v557
      %v936 = vunpack.c.l.b16 %v558
      %v937 = vunpack.c.h.b16 %v558
      %v938 = vunpack.c.l.b16 %v559
      %v939 = vunpack.c.h.b16 %v559
      %v940 = vunpack.c.l.b16 %v560
      %v941 = vunpack.c.h.b16 %v560
      %v942 = vunpack.c.l.b16 %v561
      %v943 = vunpack.c.h.b16 %v561
      %v944 = vunpack.c.l.b16 %v562
      %v945 = vunpack.c.h.b16 %v562
      %v946 = vunpack.c.l.b16 %v563
      %v947 = vunpack.c.h.b16 %v563
      %v948 = vunpack.c.l.b16 %v564
      %v949 = vunpack.c.h.b16 %v564
      %v950 = vunpack.c.l.b16 %v565
      %v951 = vunpack.c.h.b16 %v565
      %v952 = vunpack.c.l.b16 %v566
      %v953 = vunpack.c.h.b16 %v566
      %v954 = vunpack.c.l.b16 %v567
      %v955 = vunpack.c.h.b16 %v567
      %v956 = vunpack.c.l.b16 %v568
      %v957 = vunpack.c.h.b16 %v568
      %v958 = vunpack.c.l.b16 %v569
      %v959 = vunpack.c.h.b16 %v569
      %v960 = vunpack.c.l.b16 %v570
      %v961 = vunpack.c.h.b16 %v570
      %v962 = vunpack.c.l.b16 %v571
      %v963 = vunpack.c.h.b16 %v571
      %v964 = vunpack.c.l.b16 %v572
      %v965 = vunpack.c.h.b16 %v572
      %v966 = vunpack.c.l.b16 %v573
      %v967 = vunpack.c.h.b16 %v573
      %v968 = vunpack.c.l.b16 %v574
      %v969 = vunpack.c.h.b16 %v574
      %v970 = vunpack.c.l.b16 %v575
      %v971 = vunpack.c.h.b16 %v575
      %v972 = vunpack.c.l.b16 %v576
      %v973 = vunpack.c.h.b16 %v576
      %v974 = vunpack.c.l.b16 %v577
      %v975 = vunpack.c.h.b16 %v577
      %v976 = vunpack.c.l.b16 %v578
      %v977 = vunpack.c.h.b16 %v578
      %v978 = vunpack.c.l.b16 %v579
      %v979 = vunpack.c.h.b16 %v579
      %v980 = vpack.c.b16 %v886, %v884
      %v981 = vpack.c.b16 %v887, %v885
      %v982 = vpack.c.b16 %v890, %v888
      %v983 = vpack.c.b16 %v891, %v889
      %v984 = vpack.c.b16 %v894, %v892
      %v985 = vpack.c.b16 %v895, %v893
      %v986 = vpack.c.b16 %v898, %v896
      %v987 = vpack.c.b16 %v899, %v897
      %v988 = vpack.c.b16 %v902, %v900
      %v989 = vpack.c.b16 %v903, %v901
      %v990 = vpack.c.b16 %v906, %v904
      %v991 = vpack.c.b16 %v907, %v905
      %v992 = vpack.c.b16 %v910, %v908
      %v993 = vpack.c.b16 %v911, %v909
      %v994 = vpack.c.b16 %v914, %v912
      %v995 = vpack.c.b16 %v915, %v913
      %v996 = vpack.c.b16 %v918, %v916
      %v997 = vpack.c.b16 %v919, %v917
      %v998 = vpack.c.b16 %v922, %v920
      %v999 = vpack.c.b16 %v923, %v921
      %v1000 = vpack.c.b16 %v926, %v924
      %v1001 = vpack.c.b16 %v927, %v925
      %v1002 = vpack.c.b16 %v930, %v928
      %v1003 = vpack.c.b16 %v931, %v929
      %v1004 = vpack.c.b16 %v934, %v932
      %v1005 = vpack.c.b16 %v935, %v933
      %v1006 = vpack.c.b16 %v938, %v936
      %v1007 = vpack.c.b16 %v939, %v937
      %v1008 = vpack.c.b16 %v942, %v940
      %v1009 = vpack.c.b16 %v943, %v941
      %v1010 = vpack.c.b16 %v946, %v944
      %v1011 = vpack.c.b16 %v947, %v945
      %v1012 = vpack.c.b16 %v950, %v948
      %v1013 = vpack.c.b16 %v951, %v949
      %v1014 = vpack.c.b16 %v954, %v952
      %v1015 = vpack.c.b16 %v955, %v953
      %v1016 = vpack.c.b16 %v958, %v956
      %v1017 = vpack.c.b16 %v959, %v957
      %v1018 = vpack.c.b16 %v962, %v960
      %v1019 = vpack.c.b16 %v963, %v961
      %v1020 = vpack.c.b16 %v966, %v964
      %v1021 = vpack.c.b16 %v967, %v965
      %v1022 = vpack.c.b16 %v970, %v968
      %v1023 = vpack.c.b16 %v971, %v969
      %v1024 = vpack.c.b16 %v974, %v972
      %v1025 = vpack.c.b16 %v975, %v973
      %v1026 = vpack.c.b16 %v978, %v976
      %v1027 = vpack.c.b16 %v979, %v977
      %1076 = vmatpush.bf16.msra.mxu0 %v994
      %1077 = vmatpush.bf16.msra.mxu0 %v992
      %1078 = vmatpush.bf16.msra.mxu0 %v990
      %1079 = vmatpush.bf16.msra.mxu0 %v988
      %1080 = vmatpush.bf16.msra.mxu0 %v986
      %1081 = vmatpush.bf16.msra.mxu0 %v984
      %1082 = vmatpush.bf16.msra.mxu0 %v982
      %1083 = vmatpush.bf16.msra.mxu0 %v980
      %1084 = vmatmul.bf16.gmra.mxu0 %v740
      %v1085 = vpop.f32.mrf.mxu0
      %v1086 = vadd.f32 0.0, %v1085
      %v1087 = vpop.f32.mrf.mxu0
      %v1088 = vadd.f32 0.0, %v1087
      %1089 = vmatmul.bf16.gmra.mxu0 %v743
      %v1090 = vpop.f32.mrf.mxu0
      %v1091 = vadd.f32 0.0, %v1090
      %v1092 = vpop.f32.mrf.mxu0
      %v1093 = vadd.f32 0.0, %v1092
      %1094 = vmatmul.bf16.gmra.mxu0 %v746
      %v1095 = vpop.f32.mrf.mxu0
      %v1096 = vadd.f32 0.0, %v1095
      %v1097 = vpop.f32.mrf.mxu0
      %v1098 = vadd.f32 0.0, %v1097
      %1099 = vmatmul.bf16.gmra.mxu0 %v749
      %v1100 = vpop.f32.mrf.mxu0
      %v1101 = vadd.f32 0.0, %v1100
      %v1102 = vpop.f32.mrf.mxu0
      %v1103 = vadd.f32 0.0, %v1102
      %1104 = vmatmul.bf16.gmra.mxu0 %v752
      %v1105 = vpop.f32.mrf.mxu0
      %v1106 = vadd.f32 0.0, %v1105
      %v1107 = vpop.f32.mrf.mxu0
      %v1108 = vadd.f32 0.0, %v1107
      %1109 = vmatmul.bf16.gmra.mxu0 %v755
      %v1110 = vpop.f32.mrf.mxu0
      %v1111 = vadd.f32 0.0, %v1110
      %v1112 = vpop.f32.mrf.mxu0
      %v1113 = vadd.f32 0.0, %v1112
      %1114 = vmatmul.bf16.gmra.mxu0 %v758
      %v1115 = vpop.f32.mrf.mxu0
      %v1116 = vadd.f32 0.0, %v1115
      %v1117 = vpop.f32.mrf.mxu0
      %v1118 = vadd.f32 0.0, %v1117
      %1119 = vmatmul.bf16.gmra.mxu0 %v761
      %v1120 = vpop.f32.mrf.mxu0
      %v1121 = vadd.f32 0.0, %v1120
      %v1122 = vpop.f32.mrf.mxu0
      %v1123 = vadd.f32 0.0, %v1122
      %1124 = vmatmul.bf16.gmra.mxu0 %v764
      %v1125 = vpop.f32.mrf.mxu0
      %v1126 = vadd.f32 0.0, %v1125
      %v1127 = vpop.f32.mrf.mxu0
      %v1128 = vadd.f32 0.0, %v1127
      %1129 = vmatmul.bf16.gmra.mxu0 %v767
      %v1130 = vpop.f32.mrf.mxu0
      %v1131 = vadd.f32 0.0, %v1130
      %v1132 = vpop.f32.mrf.mxu0
      %v1133 = vadd.f32 0.0, %v1132
      %1134 = vmatmul.bf16.gmra.mxu0 %v770
      %v1135 = vpop.f32.mrf.mxu0
      %v1136 = vadd.f32 0.0, %v1135
      %v1137 = vpop.f32.mrf.mxu0
      %v1138 = vadd.f32 0.0, %v1137
      %1139 = vmatmul.bf16.gmra.mxu0 %v773
      %v1140 = vpop.f32.mrf.mxu0
      %v1141 = vadd.f32 0.0, %v1140
      %v1142 = vpop.f32.mrf.mxu0
      %v1143 = vadd.f32 0.0, %v1142
      %1144 = vmatmul.bf16.gmra.mxu0 %v776
      %v1145 = vpop.f32.mrf.mxu0
      %v1146 = vadd.f32 0.0, %v1145
      %v1147 = vpop.f32.mrf.mxu0
      %v1148 = vadd.f32 0.0, %v1147
      %1149 = vmatmul.bf16.gmra.mxu0 %v779
      %v1150 = vpop.f32.mrf.mxu0
      %v1151 = vadd.f32 0.0, %v1150
      %v1152 = vpop.f32.mrf.mxu0
      %v1153 = vadd.f32 0.0, %v1152
      %1154 = vmatmul.bf16.gmra.mxu0 %v782
      %v1155 = vpop.f32.mrf.mxu0
      %v1156 = vadd.f32 0.0, %v1155
      %v1157 = vpop.f32.mrf.mxu0
      %v1158 = vadd.f32 0.0, %v1157
      %1159 = vmatmul.bf16.gmra.mxu0 %v785
      %v1160 = vpop.f32.mrf.mxu0
      %v1161 = vadd.f32 0.0, %v1160
      %v1162 = vpop.f32.mrf.mxu0
      %v1163 = vadd.f32 0.0, %v1162
      %1164 = vdwg.mxu0
      %1165 = vmatpush.bf16.msra.mxu0 %v1010
      %1166 = vmatpush.bf16.msra.mxu0 %v1008
      %1167 = vmatpush.bf16.msra.mxu0 %v1006
      %1168 = vmatpush.bf16.msra.mxu0 %v1004
      %1169 = vmatpush.bf16.msra.mxu0 %v1002
      %1170 = vmatpush.bf16.msra.mxu0 %v1000
      %1171 = vmatpush.bf16.msra.mxu0 %v998
      %1172 = vmatpush.bf16.msra.mxu0 %v996
      %1173 = vmatmul.bf16.gmra.mxu0 %v741
      %v1174 = vpop.f32.mrf.mxu0
      %v1175 = vadd.f32 %v1086, %v1174
      %v1176 = vpop.f32.mrf.mxu0
      %v1177 = vadd.f32 %v1088, %v1176
      %1178 = vmatmul.bf16.gmra.mxu0 %v744
      %v1179 = vpop.f32.mrf.mxu0
      %v1180 = vadd.f32 %v1091, %v1179
      %v1181 = vpop.f32.mrf.mxu0
      %v1182 = vadd.f32 %v1093, %v1181
      %1183 = vmatmul.bf16.gmra.mxu0 %v747
      %v1184 = vpop.f32.mrf.mxu0
      %v1185 = vadd.f32 %v1096, %v1184
      %v1186 = vpop.f32.mrf.mxu0
      %v1187 = vadd.f32 %v1098, %v1186
      %1188 = vmatmul.bf16.gmra.mxu0 %v750
      %v1189 = vpop.f32.mrf.mxu0
      %v1190 = vadd.f32 %v1101, %v1189
      %v1191 = vpop.f32.mrf.mxu0
      %v1192 = vadd.f32 %v1103, %v1191
      %1193 = vmatmul.bf16.gmra.mxu0 %v753
      %v1194 = vpop.f32.mrf.mxu0
      %v1195 = vadd.f32 %v1106, %v1194
      %v1196 = vpop.f32.mrf.mxu0
      %v1197 = vadd.f32 %v1108, %v1196
      %1198 = vmatmul.bf16.gmra.mxu0 %v756
      %v1199 = vpop.f32.mrf.mxu0
      %v1200 = vadd.f32 %v1111, %v1199
      %v1201 = vpop.f32.mrf.mxu0
      %v1202 = vadd.f32 %v1113, %v1201
      %1203 = vmatmul.bf16.gmra.mxu0 %v759
      %v1204 = vpop.f32.mrf.mxu0
      %v1205 = vadd.f32 %v1116, %v1204
      %v1206 = vpop.f32.mrf.mxu0
      %v1207 = vadd.f32 %v1118, %v1206
      %1208 = vmatmul.bf16.gmra.mxu0 %v762
      %v1209 = vpop.f32.mrf.mxu0
      %v1210 = vadd.f32 %v1121, %v1209
      %v1211 = vpop.f32.mrf.mxu0
      %v1212 = vadd.f32 %v1123, %v1211
      %1213 = vmatmul.bf16.gmra.mxu0 %v765
      %v1214 = vpop.f32.mrf.mxu0
      %v1215 = vadd.f32 %v1126, %v1214
      %v1216 = vpop.f32.mrf.mxu0
      %v1217 = vadd.f32 %v1128, %v1216
      %1218 = vmatmul.bf16.gmra.mxu0 %v768
      %v1219 = vpop.f32.mrf.mxu0
      %v1220 = vadd.f32 %v1131, %v1219
      %v1221 = vpop.f32.mrf.mxu0
      %v1222 = vadd.f32 %v1133, %v1221
      %1223 = vmatmul.bf16.gmra.mxu0 %v771
      %v1224 = vpop.f32.mrf.mxu0
      %v1225 = vadd.f32 %v1136, %v1224
      %v1226 = vpop.f32.mrf.mxu0
      %v1227 = vadd.f32 %v1138, %v1226
      %1228 = vmatmul.bf16.gmra.mxu0 %v774
      %v1229 = vpop.f32.mrf.mxu0
      %v1230 = vadd.f32 %v1141, %v1229
      %v1231 = vpop.f32.mrf.mxu0
      %v1232 = vadd.f32 %v1143, %v1231
      %1233 = vmatmul.bf16.gmra.mxu0 %v777
      %v1234 = vpop.f32.mrf.mxu0
      %v1235 = vadd.f32 %v1146, %v1234
      %v1236 = vpop.f32.mrf.mxu0
      %v1237 = vadd.f32 %v1148, %v1236
      %1238 = vmatmul.bf16.gmra.mxu0 %v780
      %v1239 = vpop.f32.mrf.mxu0
      %v1240 = vadd.f32 %v1151, %v1239
      %v1241 = vpop.f32.mrf.mxu0
      %v1242 = vadd.f32 %v1153, %v1241
      %1243 = vmatmul.bf16.gmra.mxu0 %v783
      %v1244 = vpop.f32.mrf.mxu0
      %v1245 = vadd.f32 %v1156, %v1244
      %v1246 = vpop.f32.mrf.mxu0
      %v1247 = vadd.f32 %v1158, %v1246
      %1248 = vmatmul.bf16.gmra.mxu0 %v786
      %v1249 = vpop.f32.mrf.mxu0
      %v1250 = vadd.f32 %v1161, %v1249
      %v1251 = vpop.f32.mrf.mxu0
      %v1252 = vadd.f32 %v1163, %v1251
      %1253 = vdwg.mxu0
      %1254 = vmatpush.bf16.msra.mxu0 %v1026
      %1255 = vmatpush.bf16.msra.mxu0 %v1024
      %1256 = vmatpush.bf16.msra.mxu0 %v1022
      %1257 = vmatpush.bf16.msra.mxu0 %v1020
      %1258 = vmatpush.bf16.msra.mxu0 %v1018
      %1259 = vmatpush.bf16.msra.mxu0 %v1016
      %1260 = vmatpush.bf16.msra.mxu0 %v1014
      %1261 = vmatpush.bf16.msra.mxu0 %v1012
      %1262 = vmatmul.bf16.gmra.mxu0 %v742
      %v1263 = vpop.f32.mrf.mxu0
      %v1264 = vadd.f32 %v1175, %v1263
      %v1265 = vpop.f32.mrf.mxu0
      %v1266 = vadd.f32 %v1177, %v1265
      %1267 = vmatmul.bf16.gmra.mxu0 %v745
      %v1268 = vpop.f32.mrf.mxu0
      %v1269 = vadd.f32 %v1180, %v1268
      %v1270 = vpop.f32.mrf.mxu0
      %v1271 = vadd.f32 %v1182, %v1270
      %1272 = vmatmul.bf16.gmra.mxu0 %v748
      %v1273 = vpop.f32.mrf.mxu0
      %v1274 = vadd.f32 %v1185, %v1273
      %v1275 = vpop.f32.mrf.mxu0
      %v1276 = vadd.f32 %v1187, %v1275
      %1277 = vmatmul.bf16.gmra.mxu0 %v751
      %v1278 = vpop.f32.mrf.mxu0
      %v1279 = vadd.f32 %v1190, %v1278
      %v1280 = vpop.f32.mrf.mxu0
      %v1281 = vadd.f32 %v1192, %v1280
      %1282 = vmatmul.bf16.gmra.mxu0 %v754
      %v1283 = vpop.f32.mrf.mxu0
      %v1284 = vadd.f32 %v1195, %v1283
      %v1285 = vpop.f32.mrf.mxu0
      %v1286 = vadd.f32 %v1197, %v1285
      %1287 = vmatmul.bf16.gmra.mxu0 %v757
      %v1288 = vpop.f32.mrf.mxu0
      %v1289 = vadd.f32 %v1200, %v1288
      %v1290 = vpop.f32.mrf.mxu0
      %v1291 = vadd.f32 %v1202, %v1290
      %1292 = vmatmul.bf16.gmra.mxu0 %v760
      %v1293 = vpop.f32.mrf.mxu0
      %v1294 = vadd.f32 %v1205, %v1293
      %v1295 = vpop.f32.mrf.mxu0
      %v1296 = vadd.f32 %v1207, %v1295
      %1297 = vmatmul.bf16.gmra.mxu0 %v763
      %v1298 = vpop.f32.mrf.mxu0
      %v1299 = vadd.f32 %v1210, %v1298
      %v1300 = vpop.f32.mrf.mxu0
      %v1301 = vadd.f32 %v1212, %v1300
      %1302 = vmatmul.bf16.gmra.mxu0 %v766
      %v1303 = vpop.f32.mrf.mxu0
      %v1304 = vadd.f32 %v1215, %v1303
      %v1305 = vpop.f32.mrf.mxu0
      %v1306 = vadd.f32 %v1217, %v1305
      %1307 = vmatmul.bf16.gmra.mxu0 %v769
      %v1308 = vpop.f32.mrf.mxu0
      %v1309 = vadd.f32 %v1220, %v1308
      %v1310 = vpop.f32.mrf.mxu0
      %v1311 = vadd.f32 %v1222, %v1310
      %1312 = vmatmul.bf16.gmra.mxu0 %v772
      %v1313 = vpop.f32.mrf.mxu0
      %v1314 = vadd.f32 %v1225, %v1313
      %v1315 = vpop.f32.mrf.mxu0
      %v1316 = vadd.f32 %v1227, %v1315
      %1317 = vmatmul.bf16.gmra.mxu0 %v775
      %v1318 = vpop.f32.mrf.mxu0
      %v1319 = vadd.f32 %v1230, %v1318
      %v1320 = vpop.f32.mrf.mxu0
      %v1321 = vadd.f32 %v1232, %v1320
      %1322 = vmatmul.bf16.gmra.mxu0 %v778
      %v1323 = vpop.f32.mrf.mxu0
      %v1324 = vadd.f32 %v1235, %v1323
      %v1325 = vpop.f32.mrf.mxu0
      %v1326 = vadd.f32 %v1237, %v1325
      %1327 = vmatmul.bf16.gmra.mxu0 %v781
      %v1328 = vpop.f32.mrf.mxu0
      %v1329 = vadd.f32 %v1240, %v1328
      %v1330 = vpop.f32.mrf.mxu0
      %v1331 = vadd.f32 %v1242, %v1330
      %1332 = vmatmul.bf16.gmra.mxu0 %v784
      %v1333 = vpop.f32.mrf.mxu0
      %v1334 = vadd.f32 %v1245, %v1333
      %v1335 = vpop.f32.mrf.mxu0
      %v1336 = vadd.f32 %v1247, %v1335
      %1337 = vmatmul.bf16.gmra.mxu0 %v787
      %v1338 = vpop.f32.mrf.mxu0
      %v1339 = vadd.f32 %v1250, %v1338
      %v1340 = vpop.f32.mrf.mxu0
      %v1341 = vadd.f32 %v1252, %v1340
      %1342 = vdwg.mxu0
      %1343 = vmatpush.bf16.msra.mxu0 %v995
      %1344 = vmatpush.bf16.msra.mxu0 %v993
      %1345 = vmatpush.bf16.msra.mxu0 %v991
      %1346 = vmatpush.bf16.msra.mxu0 %v989
      %1347 = vmatpush.bf16.msra.mxu0 %v987
      %1348 = vmatpush.bf16.msra.mxu0 %v985
      %1349 = vmatpush.bf16.msra.mxu0 %v983
      %1350 = vmatpush.bf16.msra.mxu0 %v981
      %1351 = vmatmul.bf16.gmra.mxu0 %v740
      %v1352 = vpop.f32.mrf.mxu0
      %v1353 = vadd.f32 0.0, %v1352
      %v1354 = vpop.f32.mrf.mxu0
      %v1355 = vadd.f32 0.0, %v1354
      %1356 = vmatmul.bf16.gmra.mxu0 %v743
      %v1357 = vpop.f32.mrf.mxu0
      %v1358 = vadd.f32 0.0, %v1357
      %v1359 = vpop.f32.mrf.mxu0
      %v1360 = vadd.f32 0.0, %v1359
      %1361 = vmatmul.bf16.gmra.mxu0 %v746
      %v1362 = vpop.f32.mrf.mxu0
      %v1363 = vadd.f32 0.0, %v1362
      %v1364 = vpop.f32.mrf.mxu0
      %v1365 = vadd.f32 0.0, %v1364
      %1366 = vmatmul.bf16.gmra.mxu0 %v749
      %v1367 = vpop.f32.mrf.mxu0
      %v1368 = vadd.f32 0.0, %v1367
      %v1369 = vpop.f32.mrf.mxu0
      %v1370 = vadd.f32 0.0, %v1369
      %1371 = vmatmul.bf16.gmra.mxu0 %v752
      %v1372 = vpop.f32.mrf.mxu0
      %v1373 = vadd.f32 0.0, %v1372
      %v1374 = vpop.f32.mrf.mxu0
      %v1375 = vadd.f32 0.0, %v1374
      %1376 = vmatmul.bf16.gmra.mxu0 %v755
      %v1377 = vpop.f32.mrf.mxu0
      %v1378 = vadd.f32 0.0, %v1377
      %v1379 = vpop.f32.mrf.mxu0
      %v1380 = vadd.f32 0.0, %v1379
      %1381 = vmatmul.bf16.gmra.mxu0 %v758
      %v1382 = vpop.f32.mrf.mxu0
      %v1383 = vadd.f32 0.0, %v1382
      %v1384 = vpop.f32.mrf.mxu0
      %v1385 = vadd.f32 0.0, %v1384
      %1386 = vmatmul.bf16.gmra.mxu0 %v761
      %v1387 = vpop.f32.mrf.mxu0
      %v1388 = vadd.f32 0.0, %v1387
      %v1389 = vpop.f32.mrf.mxu0
      %v1390 = vadd.f32 0.0, %v1389
      %1391 = vmatmul.bf16.gmra.mxu0 %v764
      %v1392 = vpop.f32.mrf.mxu0
      %v1393 = vadd.f32 0.0, %v1392
      %v1394 = vpop.f32.mrf.mxu0
      %v1395 = vadd.f32 0.0, %v1394
      %1396 = vmatmul.bf16.gmra.mxu0 %v767
      %v1397 = vpop.f32.mrf.mxu0
      %v1398 = vadd.f32 0.0, %v1397
      %v1399 = vpop.f32.mrf.mxu0
      %v1400 = vadd.f32 0.0, %v1399
      %1401 = vmatmul.bf16.gmra.mxu0 %v770
      %v1402 = vpop.f32.mrf.mxu0
      %v1403 = vadd.f32 0.0, %v1402
      %v1404 = vpop.f32.mrf.mxu0
      %v1405 = vadd.f32 0.0, %v1404
      %1406 = vmatmul.bf16.gmra.mxu0 %v773
      %v1407 = vpop.f32.mrf.mxu0
      %v1408 = vadd.f32 0.0, %v1407
      %v1409 = vpop.f32.mrf.mxu0
      %v1410 = vadd.f32 0.0, %v1409
      %1411 = vmatmul.bf16.gmra.mxu0 %v776
      %v1412 = vpop.f32.mrf.mxu0
      %v1413 = vadd.f32 0.0, %v1412
      %v1414 = vpop.f32.mrf.mxu0
      %v1415 = vadd.f32 0.0, %v1414
      %1416 = vmatmul.bf16.gmra.mxu0 %v779
      %v1417 = vpop.f32.mrf.mxu0
      %v1418 = vadd.f32 0.0, %v1417
      %v1419 = vpop.f32.mrf.mxu0
      %v1420 = vadd.f32 0.0, %v1419
      %1421 = vmatmul.bf16.gmra.mxu0 %v782
      %v1422 = vpop.f32.mrf.mxu0
      %v1423 = vadd.f32 0.0, %v1422
      %v1424 = vpop.f32.mrf.mxu0
      %v1425 = vadd.f32 0.0, %v1424
      %1426 = vmatmul.bf16.gmra.mxu0 %v785
      %v1427 = vpop.f32.mrf.mxu0
      %v1428 = vadd.f32 0.0, %v1427
      %v1429 = vpop.f32.mrf.mxu0
      %v1430 = vadd.f32 0.0, %v1429
      %1431 = vdwg.mxu0
      %1432 = vmatpush.bf16.msra.mxu0 %v1011
      %1433 = vmatpush.bf16.msra.mxu0 %v1009
      %1434 = vmatpush.bf16.msra.mxu0 %v1007
      %1435 = vmatpush.bf16.msra.mxu0 %v1005
      %1436 = vmatpush.bf16.msra.mxu0 %v1003
      %1437 = vmatpush.bf16.msra.mxu0 %v1001
      %1438 = vmatpush.bf16.msra.mxu0 %v999
      %1439 = vmatpush.bf16.msra.mxu0 %v997
      %1440 = vmatmul.bf16.gmra.mxu0 %v741
      %v1441 = vpop.f32.mrf.mxu0
      %v1442 = vadd.f32 %v1353, %v1441
      %v1443 = vpop.f32.mrf.mxu0
      %v1444 = vadd.f32 %v1355, %v1443
      %1445 = vmatmul.bf16.gmra.mxu0 %v744
      %v1446 = vpop.f32.mrf.mxu0
      %v1447 = vadd.f32 %v1358, %v1446
      %v1448 = vpop.f32.mrf.mxu0
      %v1449 = vadd.f32 %v1360, %v1448
      %1450 = vmatmul.bf16.gmra.mxu0 %v747
      %v1451 = vpop.f32.mrf.mxu0
      %v1452 = vadd.f32 %v1363, %v1451
      %v1453 = vpop.f32.mrf.mxu0
      %v1454 = vadd.f32 %v1365, %v1453
      %1455 = vmatmul.bf16.gmra.mxu0 %v750
      %v1456 = vpop.f32.mrf.mxu0
      %v1457 = vadd.f32 %v1368, %v1456
      %v1458 = vpop.f32.mrf.mxu0
      %v1459 = vadd.f32 %v1370, %v1458
      %1460 = vmatmul.bf16.gmra.mxu0 %v753
      %v1461 = vpop.f32.mrf.mxu0
      %v1462 = vadd.f32 %v1373, %v1461
      %v1463 = vpop.f32.mrf.mxu0
      %v1464 = vadd.f32 %v1375, %v1463
      %1465 = vmatmul.bf16.gmra.mxu0 %v756
      %v1466 = vpop.f32.mrf.mxu0
      %v1467 = vadd.f32 %v1378, %v1466
      %v1468 = vpop.f32.mrf.mxu0
      %v1469 = vadd.f32 %v1380, %v1468
      %1470 = vmatmul.bf16.gmra.mxu0 %v759
      %v1471 = vpop.f32.mrf.mxu0
      %v1472 = vadd.f32 %v1383, %v1471
      %v1473 = vpop.f32.mrf.mxu0
      %v1474 = vadd.f32 %v1385, %v1473
      %1475 = vmatmul.bf16.gmra.mxu0 %v762
      %v1476 = vpop.f32.mrf.mxu0
      %v1477 = vadd.f32 %v1388, %v1476
      %v1478 = vpop.f32.mrf.mxu0
      %v1479 = vadd.f32 %v1390, %v1478
      %1480 = vmatmul.bf16.gmra.mxu0 %v765
      %v1481 = vpop.f32.mrf.mxu0
      %v1482 = vadd.f32 %v1393, %v1481
      %v1483 = vpop.f32.mrf.mxu0
      %v1484 = vadd.f32 %v1395, %v1483
      %1485 = vmatmul.bf16.gmra.mxu0 %v768
      %v1486 = vpop.f32.mrf.mxu0
      %v1487 = vadd.f32 %v1398, %v1486
      %v1488 = vpop.f32.mrf.mxu0
      %v1489 = vadd.f32 %v1400, %v1488
      %1490 = vmatmul.bf16.gmra.mxu0 %v771
      %v1491 = vpop.f32.mrf.mxu0
      %v1492 = vadd.f32 %v1403, %v1491
      %v1493 = vpop.f32.mrf.mxu0
      %v1494 = vadd.f32 %v1405, %v1493
      %1495 = vmatmul.bf16.gmra.mxu0 %v774
      %v1496 = vpop.f32.mrf.mxu0
      %v1497 = vadd.f32 %v1408, %v1496
      %v1498 = vpop.f32.mrf.mxu0
      %v1499 = vadd.f32 %v1410, %v1498
      %1500 = vmatmul.bf16.gmra.mxu0 %v777
      %v1501 = vpop.f32.mrf.mxu0
      %v1502 = vadd.f32 %v1413, %v1501
      %v1503 = vpop.f32.mrf.mxu0
      %v1504 = vadd.f32 %v1415, %v1503
      %1505 = vmatmul.bf16.gmra.mxu0 %v780
      %v1506 = vpop.f32.mrf.mxu0
      %v1507 = vadd.f32 %v1418, %v1506
      %v1508 = vpop.f32.mrf.mxu0
      %v1509 = vadd.f32 %v1420, %v1508
      %1510 = vmatmul.bf16.gmra.mxu0 %v783
      %v1511 = vpop.f32.mrf.mxu0
      %v1512 = vadd.f32 %v1423, %v1511
      %v1513 = vpop.f32.mrf.mxu0
      %v1514 = vadd.f32 %v1425, %v1513
      %1515 = vmatmul.bf16.gmra.mxu0 %v786
      %v1516 = vpop.f32.mrf.mxu0
      %v1517 = vadd.f32 %v1428, %v1516
      %v1518 = vpop.f32.mrf.mxu0
      %v1519 = vadd.f32 %v1430, %v1518
      %1520 = vdwg.mxu0
      %1521 = vmatpush.bf16.msra.mxu0 %v1027
      %1522 = vmatpush.bf16.msra.mxu0 %v1025
      %1523 = vmatpush.bf16.msra.mxu0 %v1023
      %1524 = vmatpush.bf16.msra.mxu0 %v1021
      %1525 = vmatpush.bf16.msra.mxu0 %v1019
      %1526 = vmatpush.bf16.msra.mxu0 %v1017
      %1527 = vmatpush.bf16.msra.mxu0 %v1015
      %1528 = vmatpush.bf16.msra.mxu0 %v1013
      %1529 = vmatmul.bf16.gmra.mxu0 %v742
      %v1530 = vpop.f32.mrf.mxu0
      %v1531 = vadd.f32 %v1442, %v1530
      %v1532 = vpop.f32.mrf.mxu0
      %v1533 = vadd.f32 %v1444, %v1532
      %1534 = vmatmul.bf16.gmra.mxu0 %v745
      %v1535 = vpop.f32.mrf.mxu0
      %v1536 = vadd.f32 %v1447, %v1535
      %v1537 = vpop.f32.mrf.mxu0
      %v1538 = vadd.f32 %v1449, %v1537
      %1539 = vmatmul.bf16.gmra.mxu0 %v748
      %v1540 = vpop.f32.mrf.mxu0
      %v1541 = vadd.f32 %v1452, %v1540
      %v1542 = vpop.f32.mrf.mxu0
      %v1543 = vadd.f32 %v1454, %v1542
      %1544 = vmatmul.bf16.gmra.mxu0 %v751
      %v1545 = vpop.f32.mrf.mxu0
      %v1546 = vadd.f32 %v1457, %v1545
      %v1547 = vpop.f32.mrf.mxu0
      %v1548 = vadd.f32 %v1459, %v1547
      %1549 = vmatmul.bf16.gmra.mxu0 %v754
      %v1550 = vpop.f32.mrf.mxu0
      %v1551 = vadd.f32 %v1462, %v1550
      %v1552 = vpop.f32.mrf.mxu0
      %v1553 = vadd.f32 %v1464, %v1552
      %1554 = vmatmul.bf16.gmra.mxu0 %v757
      %v1555 = vpop.f32.mrf.mxu0
      %v1556 = vadd.f32 %v1467, %v1555
      %v1557 = vpop.f32.mrf.mxu0
      %v1558 = vadd.f32 %v1469, %v1557
      %1559 = vmatmul.bf16.gmra.mxu0 %v760
      %v1560 = vpop.f32.mrf.mxu0
      %v1561 = vadd.f32 %v1472, %v1560
      %v1562 = vpop.f32.mrf.mxu0
      %v1563 = vadd.f32 %v1474, %v1562
      %1564 = vmatmul.bf16.gmra.mxu0 %v763
      %v1565 = vpop.f32.mrf.mxu0
      %v1566 = vadd.f32 %v1477, %v1565
      %v1567 = vpop.f32.mrf.mxu0
      %v1568 = vadd.f32 %v1479, %v1567
      %1569 = vmatmul.bf16.gmra.mxu0 %v766
      %v1570 = vpop.f32.mrf.mxu0
      %v1571 = vadd.f32 %v1482, %v1570
      %v1572 = vpop.f32.mrf.mxu0
      %v1573 = vadd.f32 %v1484, %v1572
      %1574 = vmatmul.bf16.gmra.mxu0 %v769
      %v1575 = vpop.f32.mrf.mxu0
      %v1576 = vadd.f32 %v1487, %v1575
      %v1577 = vpop.f32.mrf.mxu0
      %v1578 = vadd.f32 %v1489, %v1577
      %1579 = vmatmul.bf16.gmra.mxu0 %v772
      %v1580 = vpop.f32.mrf.mxu0
      %v1581 = vadd.f32 %v1492, %v1580
      %v1582 = vpop.f32.mrf.mxu0
      %v1583 = vadd.f32 %v1494, %v1582
      %1584 = vmatmul.bf16.gmra.mxu0 %v775
      %v1585 = vpop.f32.mrf.mxu0
      %v1586 = vadd.f32 %v1497, %v1585
      %v1587 = vpop.f32.mrf.mxu0
      %v1588 = vadd.f32 %v1499, %v1587
      %1589 = vmatmul.bf16.gmra.mxu0 %v778
      %v1590 = vpop.f32.mrf.mxu0
      %v1591 = vadd.f32 %v1502, %v1590
      %v1592 = vpop.f32.mrf.mxu0
      %v1593 = vadd.f32 %v1504, %v1592
      %1594 = vmatmul.bf16.gmra.mxu0 %v781
      %v1595 = vpop.f32.mrf.mxu0
      %v1596 = vadd.f32 %v1507, %v1595
      %v1597 = vpop.f32.mrf.mxu0
      %v1598 = vadd.f32 %v1509, %v1597
      %1599 = vmatmul.bf16.gmra.mxu0 %v784
      %v1600 = vpop.f32.mrf.mxu0
      %v1601 = vadd.f32 %v1512, %v1600
      %v1602 = vpop.f32.mrf.mxu0
      %v1603 = vadd.f32 %v1514, %v1602
      %1604 = vmatmul.bf16.gmra.mxu0 %v787
      %v1605 = vpop.f32.mrf.mxu0
      %v1606 = vadd.f32 %v1517, %v1605
      %v1607 = vpop.f32.mrf.mxu0
      %v1608 = vadd.f32 %v1519, %v1607
      %1609 = vdwg.mxu0
      %v1610 = vld [vmem:[%s2] sm:$0x3]
      %v1612 = vperm.slane %v1610, 0
      %v1613 = vperm.slane %v1610, 1
      %v1616 = vmul.f32 %v1264, %v1612
      %v1617 = vmul.f32 %v1531, %v1613
      %v1618 = vmul.f32 %v1266, %v1612
      %v1619 = vmul.f32 %v1533, %v1613
      %v1620 = vmul.f32 %v1269, %v1612
      %v1621 = vmul.f32 %v1536, %v1613
      %v1622 = vmul.f32 %v1271, %v1612
      %v1623 = vmul.f32 %v1538, %v1613
      %v1624 = vmul.f32 %v1274, %v1612
      %v1625 = vmul.f32 %v1541, %v1613
      %v1626 = vmul.f32 %v1276, %v1612
      %v1627 = vmul.f32 %v1543, %v1613
      %v1628 = vmul.f32 %v1279, %v1612
      %v1629 = vmul.f32 %v1546, %v1613
      %v1630 = vmul.f32 %v1281, %v1612
      %v1631 = vmul.f32 %v1548, %v1613
      %v1632 = vmul.f32 %v1284, %v1612
      %v1633 = vmul.f32 %v1551, %v1613
      %v1634 = vmul.f32 %v1286, %v1612
      %v1635 = vmul.f32 %v1553, %v1613
      %v1636 = vmul.f32 %v1289, %v1612
      %v1637 = vmul.f32 %v1556, %v1613
      %v1638 = vmul.f32 %v1291, %v1612
      %v1639 = vmul.f32 %v1558, %v1613
      %v1640 = vmul.f32 %v1294, %v1612
      %v1641 = vmul.f32 %v1561, %v1613
      %v1642 = vmul.f32 %v1296, %v1612
      %v1643 = vmul.f32 %v1563, %v1613
      %v1644 = vmul.f32 %v1299, %v1612
      %v1645 = vmul.f32 %v1566, %v1613
      %v1646 = vmul.f32 %v1301, %v1612
      %v1647 = vmul.f32 %v1568, %v1613
      %v1648 = vmul.f32 %v1304, %v1612
      %v1649 = vmul.f32 %v1571, %v1613
      %v1650 = vmul.f32 %v1306, %v1612
      %v1651 = vmul.f32 %v1573, %v1613
      %v1652 = vmul.f32 %v1309, %v1612
      %v1653 = vmul.f32 %v1576, %v1613
      %v1654 = vmul.f32 %v1311, %v1612
      %v1655 = vmul.f32 %v1578, %v1613
      %v1656 = vmul.f32 %v1314, %v1612
      %v1657 = vmul.f32 %v1581, %v1613
      %v1658 = vmul.f32 %v1316, %v1612
      %v1659 = vmul.f32 %v1583, %v1613
      %v1660 = vmul.f32 %v1319, %v1612
      %v1661 = vmul.f32 %v1586, %v1613
      %v1662 = vmul.f32 %v1321, %v1612
      %v1663 = vmul.f32 %v1588, %v1613
      %v1664 = vmul.f32 %v1324, %v1612
      %v1665 = vmul.f32 %v1591, %v1613
      %v1666 = vmul.f32 %v1326, %v1612
      %v1667 = vmul.f32 %v1593, %v1613
      %v1668 = vmul.f32 %v1329, %v1612
      %v1669 = vmul.f32 %v1596, %v1613
      %v1670 = vmul.f32 %v1331, %v1612
      %v1671 = vmul.f32 %v1598, %v1613
      %v1672 = vmul.f32 %v1334, %v1612
      %v1673 = vmul.f32 %v1601, %v1613
      %v1674 = vmul.f32 %v1336, %v1612
      %v1675 = vmul.f32 %v1603, %v1613
      %v1676 = vmul.f32 %v1339, %v1612
      %v1677 = vmul.f32 %v1606, %v1613
      %v1678 = vmul.f32 %v1341, %v1612
      %v1679 = vmul.f32 %v1608, %v1613
      %v1680 = vld [vmem:[%s3] sm:$0x3]
      %v1682 = vperm.slane %v1680, 0
      %v1683 = vperm.slane %v1680, 1
      %v1686 = vadd.f32 %v1616, %v1682
      %v1687 = vadd.f32 %v1617, %v1683
      %v1688 = vadd.f32 %v1618, %v1682
      %v1689 = vadd.f32 %v1619, %v1683
      %v1690 = vadd.f32 %v1620, %v1682
      %v1691 = vadd.f32 %v1621, %v1683
      %v1692 = vadd.f32 %v1622, %v1682
      %v1693 = vadd.f32 %v1623, %v1683
      %v1694 = vadd.f32 %v1624, %v1682
      %v1695 = vadd.f32 %v1625, %v1683
      %v1696 = vadd.f32 %v1626, %v1682
      %v1697 = vadd.f32 %v1627, %v1683
      %v1698 = vadd.f32 %v1628, %v1682
      %v1699 = vadd.f32 %v1629, %v1683
      %v1700 = vadd.f32 %v1630, %v1682
      %v1701 = vadd.f32 %v1631, %v1683
      %v1702 = vadd.f32 %v1632, %v1682
      %v1703 = vadd.f32 %v1633, %v1683
      %v1704 = vadd.f32 %v1634, %v1682
      %v1705 = vadd.f32 %v1635, %v1683
      %v1706 = vadd.f32 %v1636, %v1682
      %v1707 = vadd.f32 %v1637, %v1683
      %v1708 = vadd.f32 %v1638, %v1682
      %v1709 = vadd.f32 %v1639, %v1683
      %v1710 = vadd.f32 %v1640, %v1682
      %v1711 = vadd.f32 %v1641, %v1683
      %v1712 = vadd.f32 %v1642, %v1682
      %v1713 = vadd.f32 %v1643, %v1683
      %v1714 = vadd.f32 %v1644, %v1682
      %v1715 = vadd.f32 %v1645, %v1683
      %v1716 = vadd.f32 %v1646, %v1682
      %v1717 = vadd.f32 %v1647, %v1683
      %v1718 = vadd.f32 %v1648, %v1682
      %v1719 = vadd.f32 %v1649, %v1683
      %v1720 = vadd.f32 %v1650, %v1682
      %v1721 = vadd.f32 %v1651, %v1683
      %v1722 = vadd.f32 %v1652, %v1682
      %v1723 = vadd.f32 %v1653, %v1683
      %v1724 = vadd.f32 %v1654, %v1682
      %v1725 = vadd.f32 %v1655, %v1683
      %v1726 = vadd.f32 %v1656, %v1682
      %v1727 = vadd.f32 %v1657, %v1683
      %v1728 = vadd.f32 %v1658, %v1682
      %v1729 = vadd.f32 %v1659, %v1683
      %v1730 = vadd.f32 %v1660, %v1682
      %v1731 = vadd.f32 %v1661, %v1683
      %v1732 = vadd.f32 %v1662, %v1682
      %v1733 = vadd.f32 %v1663, %v1683
      %v1734 = vadd.f32 %v1664, %v1682
      %v1735 = vadd.f32 %v1665, %v1683
      %v1736 = vadd.f32 %v1666, %v1682
      %v1737 = vadd.f32 %v1667, %v1683
      %v1738 = vadd.f32 %v1668, %v1682
      %v1739 = vadd.f32 %v1669, %v1683
      %v1740 = vadd.f32 %v1670, %v1682
      %v1741 = vadd.f32 %v1671, %v1683
      %v1742 = vadd.f32 %v1672, %v1682
      %v1743 = vadd.f32 %v1673, %v1683
      %v1744 = vadd.f32 %v1674, %v1682
      %v1745 = vadd.f32 %v1675, %v1683
      %v1746 = vadd.f32 %v1676, %v1682
      %v1747 = vadd.f32 %v1677, %v1683
      %v1748 = vadd.f32 %v1678, %v1682
      %v1749 = vadd.f32 %v1679, %v1683
      %v1750 = vmax.f32 %v1686, 0.0
      %v1751 = vmax.f32 %v1687, 0.0
      %v1752 = vmax.f32 %v1688, 0.0
      %v1753 = vmax.f32 %v1689, 0.0
      %v1754 = vmax.f32 %v1690, 0.0
      %v1755 = vmax.f32 %v1691, 0.0
      %v1756 = vmax.f32 %v1692, 0.0
      %v1757 = vmax.f32 %v1693, 0.0
      %v1758 = vmax.f32 %v1694, 0.0
      %v1759 = vmax.f32 %v1695, 0.0
      %v1760 = vmax.f32 %v1696, 0.0
      %v1761 = vmax.f32 %v1697, 0.0
      %v1762 = vmax.f32 %v1698, 0.0
      %v1763 = vmax.f32 %v1699, 0.0
      %v1764 = vmax.f32 %v1700, 0.0
      %v1765 = vmax.f32 %v1701, 0.0
      %v1766 = vmax.f32 %v1702, 0.0
      %v1767 = vmax.f32 %v1703, 0.0
      %v1768 = vmax.f32 %v1704, 0.0
      %v1769 = vmax.f32 %v1705, 0.0
      %v1770 = vmax.f32 %v1706, 0.0
      %v1771 = vmax.f32 %v1707, 0.0
      %v1772 = vmax.f32 %v1708, 0.0
      %v1773 = vmax.f32 %v1709, 0.0
      %v1774 = vmax.f32 %v1710, 0.0
      %v1775 = vmax.f32 %v1711, 0.0
      %v1776 = vmax.f32 %v1712, 0.0
      %v1777 = vmax.f32 %v1713, 0.0
      %v1778 = vmax.f32 %v1714, 0.0
      %v1779 = vmax.f32 %v1715, 0.0
      %v1780 = vmax.f32 %v1716, 0.0
      %v1781 = vmax.f32 %v1717, 0.0
      %v1782 = vmax.f32 %v1718, 0.0
      %v1783 = vmax.f32 %v1719, 0.0
      %v1784 = vmax.f32 %v1720, 0.0
      %v1785 = vmax.f32 %v1721, 0.0
      %v1786 = vmax.f32 %v1722, 0.0
      %v1787 = vmax.f32 %v1723, 0.0
      %v1788 = vmax.f32 %v1724, 0.0
      %v1789 = vmax.f32 %v1725, 0.0
      %v1790 = vmax.f32 %v1726, 0.0
      %v1791 = vmax.f32 %v1727, 0.0
      %v1792 = vmax.f32 %v1728, 0.0
      %v1793 = vmax.f32 %v1729, 0.0
      %v1794 = vmax.f32 %v1730, 0.0
      %v1795 = vmax.f32 %v1731, 0.0
      %v1796 = vmax.f32 %v1732, 0.0
      %v1797 = vmax.f32 %v1733, 0.0
      %v1798 = vmax.f32 %v1734, 0.0
      %v1799 = vmax.f32 %v1735, 0.0
      %v1800 = vmax.f32 %v1736, 0.0
      %v1801 = vmax.f32 %v1737, 0.0
      %v1802 = vmax.f32 %v1738, 0.0
      %v1803 = vmax.f32 %v1739, 0.0
      %v1804 = vmax.f32 %v1740, 0.0
      %v1805 = vmax.f32 %v1741, 0.0
      %v1806 = vmax.f32 %v1742, 0.0
      %v1807 = vmax.f32 %v1743, 0.0
      %v1808 = vmax.f32 %v1744, 0.0
      %v1809 = vmax.f32 %v1745, 0.0
      %v1810 = vmax.f32 %v1746, 0.0
      %v1811 = vmax.f32 %v1747, 0.0
      %v1812 = vmax.f32 %v1748, 0.0
      %v1813 = vmax.f32 %v1749, 0.0
      %v1814 = vld [vmem:[%s10] sm:$0x7]
      %v1815 = vpack.c.bf16 %v1752, %v1750
      %v1816 = vpack.c.bf16 %v1756, %v1754
      %v1817 = vpack.c.bf16 %v1760, %v1758
      %v1818 = vpack.c.bf16 %v1764, %v1762
      %v1819 = vpack.c.bf16 %v1768, %v1766
      %v1820 = vpack.c.bf16 %v1772, %v1770
      %v1821 = vpack.c.bf16 %v1776, %v1774
      %v1822 = vpack.c.bf16 %v1780, %v1778
      %v1823 = vpack.c.bf16 %v1784, %v1782
      %v1824 = vpack.c.bf16 %v1788, %v1786
      %v1825 = vpack.c.bf16 %v1792, %v1790
      %v1826 = vpack.c.bf16 %v1796, %v1794
      %v1827 = vpack.c.bf16 %v1800, %v1798
      %v1828 = vpack.c.bf16 %v1804, %v1802
      %v1829 = vpack.c.bf16 %v1808, %v1806
      %v1830 = vpack.c.bf16 %v1812, %v1810
      %v1831 = vld [vmem:[%s11] sm:$0x3f]
      %1833 = vset.pattern.permute.xlu0 0
      %1834 = vperm.xlu0 %1833, %v1831
      %v1835 = vpop.permute.xlu0 %1834
      %1837 = vmatpush.bf16.xpose.msra.mxu0 %v1822
      %1838 = vmatpush.bf16.xpose.msra.mxu0 %v1821
      %1839 = vmatpush.bf16.xpose.msra.mxu0 %v1820
      %1840 = vmatpush.bf16.xpose.msra.mxu0 %v1819
      %1841 = vmatpush.bf16.xpose.msra.mxu0 %v1818
      %1842 = vmatpush.bf16.xpose.msra.mxu0 %v1817
      %1843 = vmatpush.bf16.xpose.msra.mxu0 %v1816
      %1844 = vmatpush.bf16.xpose.msra.mxu0 %v1815
      %1845 = vmatmul.bf16.gmra.mxu0 %v1814
      %v1846 = vpop.f32.mrf.mxu0
      %v1847 = vadd.f32 %v1835, %v1846
      %v1848 = vpop.f32.mrf.mxu0
      %1849 = vdwg.mxu0
      %1850 = vmatpush.bf16.xpose.msra.mxu0 %v1830
      %1851 = vmatpush.bf16.xpose.msra.mxu0 %v1829
      %1852 = vmatpush.bf16.xpose.msra.mxu0 %v1828
      %1853 = vmatpush.bf16.xpose.msra.mxu0 %v1827
      %1854 = vmatpush.bf16.xpose.msra.mxu0 %v1826
      %1855 = vmatpush.bf16.xpose.msra.mxu0 %v1825
      %1856 = vmatpush.bf16.xpose.msra.mxu0 %v1824
      %1857 = vmatpush.bf16.xpose.msra.mxu0 %v1823
      %1858 = vmatmul.bf16.gmra.mxu0 %v1814
      %v1859 = vpop.f32.mrf.mxu0
      %v1860 = vadd.f32 %v1835, %v1859
      %v1861 = vpop.f32.mrf.mxu0
      %1862 = vdwg.mxu0
      %1863 = vst [vmem:[#allocation2] sm:$0xff] 0.0
      %1864 = vst [vmem:[#allocation2 + $0x8] sm:$0xff] 0.0
      %1865 = vst [vmem:[#allocation2 + $0x10] sm:$0xff] 0.0
      %1866 = vst [vmem:[#allocation2 + $0x18] sm:$0xff] 0.0
      %1867 = vst [vmem:[#allocation2 + $0x20] sm:$0xff] 0.0
      %1868 = vst [vmem:[#allocation2 + $0x28] sm:$0xff] 0.0
      %1869 = vst [vmem:[#allocation2 + $0x30] sm:$0xff] 0.0
      %1870 = vst [vmem:[#allocation2 + $0x38] sm:$0xff] 0.0
      %1871 = vst [vmem:[#allocation2 + $0x40] sm:$0xff] 0.0
      %1872 = vst [vmem:[#allocation2 + $0x48] sm:$0xff] 0.0
      %1873 = vst [vmem:[#allocation2 + $0x50] sm:$0xff] 0.0
      %1874 = vst [vmem:[#allocation2 + $0x58] sm:$0xff] 0.0
      %1875 = vst [vmem:[#allocation2 + $0x60] sm:$0xff] 0.0
      %1876 = vst [vmem:[#allocation2 + $0x68] sm:$0xff] 0.0
      %1877 = vst [vmem:[#allocation2 + $0x70] sm:$0xff] 0.0
      %1878 = vst [vmem:[#allocation2 + $0x78] sm:$0xff] 0.0
      %1879 = vst [vmem:[#allocation2 + $0x80] sm:$0xff] 0.0
      %1880 = vst [vmem:[#allocation2 + $0x88] sm:$0xff] 0.0
      %1881 = vst [vmem:[#allocation2 + $0x90] sm:$0xff] 0.0
      %1882 = vst [vmem:[#allocation2 + $0x98] sm:$0xff] 0.0
      %1883 = vst [vmem:[#allocation2 + $0xa0] sm:$0xff] 0.0
      %1884 = vst [vmem:[#allocation2 + $0xa8] sm:$0xff] 0.0
      %1885 = vst [vmem:[#allocation2 + $0xb0] sm:$0xff] 0.0
      %1886 = vst [vmem:[#allocation2 + $0xb8] sm:$0xff] 0.0
      %1887 = vst [vmem:[#allocation2 + $0xc0] sm:$0xff] 0.0
      %1888 = vst [vmem:[#allocation2 + $0xc8] sm:$0xff] 0.0
      %1889 = vst [vmem:[#allocation2 + $0xd0] sm:$0xff] 0.0
      %1890 = vst [vmem:[#allocation2 + $0xd8] sm:$0xff] 0.0
      %1891 = vst [vmem:[#allocation2 + $0xe0] sm:$0xff] 0.0
      %1892 = vst [vmem:[#allocation2 + $0xe8] sm:$0xff] 0.0
      %1893 = vst [vmem:[#allocation2 + $0xf0] sm:$0xff] 0.0
      %1894 = vst [vmem:[#allocation2 + $0xf8] sm:$0xff] 0.0
      %1895 = vst [vmem:[#allocation2 + $0x100] sm:$0xff] 0.0
      %1896 = vst [vmem:[#allocation2 + $0x108] sm:$0xff] 0.0
      %1897 = vst [vmem:[#allocation2 + $0x110] sm:$0xff] 0.0
      %1898 = vst [vmem:[#allocation2 + $0x118] sm:$0xff] 0.0
      %s1899 = scalar_lea.vmem [#allocation2], 16
      %vm1900 = vcmask 261120
      %1901 = vst.msk [vmem:[%s1899 + $0x1] sm:$0xff] %vm1900, %v1751
      %vm1902 = vcmask 260096
      %1903 = vst.msk [vmem:[%s1899 + $0x9] sm:$0x7f] %vm1902, %v1753
      %1904 = vst.msk [vmem:[%s1899 + $0x11] sm:$0xff] %vm1900, %v1755
      %1905 = vst.msk [vmem:[%s1899 + $0x19] sm:$0x7f] %vm1902, %v1757
      %1906 = vst.msk [vmem:[%s1899 + $0x21] sm:$0xff] %vm1900, %v1759
      %1907 = vst.msk [vmem:[%s1899 + $0x29] sm:$0x7f] %vm1902, %v1761
      %1908 = vst.msk [vmem:[%s1899 + $0x31] sm:$0xff] %vm1900, %v1763
      %1909 = vst.msk [vmem:[%s1899 + $0x39] sm:$0x7f] %vm1902, %v1765
      %1910 = vst.msk [vmem:[%s1899 + $0x41] sm:$0xff] %vm1900, %v1767
      %1911 = vst.msk [vmem:[%s1899 + $0x49] sm:$0x7f] %vm1902, %v1769
      %1912 = vst.msk [vmem:[%s1899 + $0x51] sm:$0xff] %vm1900, %v1771
      %1913 = vst.msk [vmem:[%s1899 + $0x59] sm:$0x7f] %vm1902, %v1773
      %1914 = vst.msk [vmem:[%s1899 + $0x61] sm:$0xff] %vm1900, %v1775
      %1915 = vst.msk [vmem:[%s1899 + $0x69] sm:$0x7f] %vm1902, %v1777
      %1916 = vst.msk [vmem:[%s1899 + $0x71] sm:$0xff] %vm1900, %v1779
      %1917 = vst.msk [vmem:[%s1899 + $0x79] sm:$0x7f] %vm1902, %v1781
      %1918 = vst.msk [vmem:[%s1899 + $0x81] sm:$0xff] %vm1900, %v1783
      %1919 = vst.msk [vmem:[%s1899 + $0x89] sm:$0x7f] %vm1902, %v1785
      %1920 = vst.msk [vmem:[%s1899 + $0x91] sm:$0xff] %vm1900, %v1787
      %1921 = vst.msk [vmem:[%s1899 + $0x99] sm:$0x7f] %vm1902, %v1789
      %1922 = vst.msk [vmem:[%s1899 + $0xa1] sm:$0xff] %vm1900, %v1791
      %1923 = vst.msk [vmem:[%s1899 + $0xa9] sm:$0x7f] %vm1902, %v1793
      %1924 = vst.msk [vmem:[%s1899 + $0xb1] sm:$0xff] %vm1900, %v1795
      %1925 = vst.msk [vmem:[%s1899 + $0xb9] sm:$0x7f] %vm1902, %v1797
      %1926 = vst.msk [vmem:[%s1899 + $0xc1] sm:$0xff] %vm1900, %v1799
      %1927 = vst.msk [vmem:[%s1899 + $0xc9] sm:$0x7f] %vm1902, %v1801
      %1928 = vst.msk [vmem:[%s1899 + $0xd1] sm:$0xff] %vm1900, %v1803
      %1929 = vst.msk [vmem:[%s1899 + $0xd9] sm:$0x7f] %vm1902, %v1805
      %1930 = vst.msk [vmem:[%s1899 + $0xe1] sm:$0xff] %vm1900, %v1807
      %1931 = vst.msk [vmem:[%s1899 + $0xe9] sm:$0x7f] %vm1902, %v1809
      %1932 = vst.msk [vmem:[%s1899 + $0xf1] sm:$0xff] %vm1900, %v1811
      %1933 = vst.msk [vmem:[%s1899 + $0xf9] sm:$0x7f] %vm1902, %v1813
      %1966 = vrot.lane.b32.xlu0 %v1751, 32
      %v1967 = vpop.permute.xlu0 %1966
      %1968 = vrot.lane.b32.xlu0 %v1753, 32
      %v1969 = vpop.permute.xlu0 %1968
      %1970 = vrot.lane.b32.xlu0 %v1755, 32
      %v1971 = vpop.permute.xlu0 %1970
      %1972 = vrot.lane.b32.xlu0 %v1757, 32
      %v1973 = vpop.permute.xlu0 %1972
      %1974 = vrot.lane.b32.xlu0 %v1759, 32
      %v1975 = vpop.permute.xlu0 %1974
      %1976 = vrot.lane.b32.xlu0 %v1761, 32
      %v1977 = vpop.permute.xlu0 %1976
      %1978 = vrot.lane.b32.xlu0 %v1763, 32
      %v1979 = vpop.permute.xlu0 %1978
      %1980 = vrot.lane.b32.xlu0 %v1765, 32
      %v1981 = vpop.permute.xlu0 %1980
      %1982 = vrot.lane.b32.xlu0 %v1767, 32
      %v1983 = vpop.permute.xlu0 %1982
      %1984 = vrot.lane.b32.xlu0 %v1769, 32
      %v1985 = vpop.permute.xlu0 %1984
      %1986 = vrot.lane.b32.xlu0 %v1771, 32
      %v1987 = vpop.permute.xlu0 %1986
      %1988 = vrot.lane.b32.xlu0 %v1773, 32
      %v1989 = vpop.permute.xlu0 %1988
      %1990 = vrot.lane.b32.xlu0 %v1775, 32
      %v1991 = vpop.permute.xlu0 %1990
      %1992 = vrot.lane.b32.xlu0 %v1777, 32
      %v1993 = vpop.permute.xlu0 %1992
      %1994 = vrot.lane.b32.xlu0 %v1779, 32
      %v1995 = vpop.permute.xlu0 %1994
      %1996 = vrot.lane.b32.xlu0 %v1781, 32
      %v1997 = vpop.permute.xlu0 %1996
      %1998 = vrot.lane.b32.xlu0 %v1783, 32
      %v1999 = vpop.permute.xlu0 %1998
      %2000 = vrot.lane.b32.xlu0 %v1785, 32
      %v2001 = vpop.permute.xlu0 %2000
      %2002 = vrot.lane.b32.xlu0 %v1787, 32
      %v2003 = vpop.permute.xlu0 %2002
      %2004 = vrot.lane.b32.xlu0 %v1789, 32
      %v2005 = vpop.permute.xlu0 %2004
      %2006 = vrot.lane.b32.xlu0 %v1791, 32
      %v2007 = vpop.permute.xlu0 %2006
      %2008 = vrot.lane.b32.xlu0 %v1793, 32
      %v2009 = vpop.permute.xlu0 %2008
      %2010 = vrot.lane.b32.xlu0 %v1795, 32
      %v2011 = vpop.permute.xlu0 %2010
      %2012 = vrot.lane.b32.xlu0 %v1797, 32
      %v2013 = vpop.permute.xlu0 %2012
      %2014 = vrot.lane.b32.xlu0 %v1799, 32
      %v2015 = vpop.permute.xlu0 %2014
      %2016 = vrot.lane.b32.xlu0 %v1801, 32
      %v2017 = vpop.permute.xlu0 %2016
      %2018 = vrot.lane.b32.xlu0 %v1803, 32
      %v2019 = vpop.permute.xlu0 %2018
      %2020 = vrot.lane.b32.xlu0 %v1805, 32
      %v2021 = vpop.permute.xlu0 %2020
      %2022 = vrot.lane.b32.xlu0 %v1807, 32
      %v2023 = vpop.permute.xlu0 %2022
      %2024 = vrot.lane.b32.xlu0 %v1809, 32
      %v2025 = vpop.permute.xlu0 %2024
      %2026 = vrot.lane.b32.xlu0 %v1811, 32
      %v2027 = vpop.permute.xlu0 %2026
      %2028 = vrot.lane.b32.xlu0 %v1813, 32
      %v2029 = vpop.permute.xlu0 %2028
      %vm2062 = vcmask 523520
      %2063 = vst.msk [vmem:[%s1899] sm:$0xff] %vm2062, %v1967
      %2064 = vst.msk [vmem:[%s1899 + $0x8] sm:$0xff] %vm2062, %v1969
      %2065 = vst.msk [vmem:[%s1899 + $0x10] sm:$0xff] %vm2062, %v1971
      %2066 = vst.msk [vmem:[%s1899 + $0x18] sm:$0xff] %vm2062, %v1973
      %2067 = vst.msk [vmem:[%s1899 + $0x20] sm:$0xff] %vm2062, %v1975
      %2068 = vst.msk [vmem:[%s1899 + $0x28] sm:$0xff] %vm2062, %v1977
      %2069 = vst.msk [vmem:[%s1899 + $0x30] sm:$0xff] %vm2062, %v1979
      %2070 = vst.msk [vmem:[%s1899 + $0x38] sm:$0xff] %vm2062, %v1981
      %2071 = vst.msk [vmem:[%s1899 + $0x40] sm:$0xff] %vm2062, %v1983
      %2072 = vst.msk [vmem:[%s1899 + $0x48] sm:$0xff] %vm2062, %v1985
      %2073 = vst.msk [vmem:[%s1899 + $0x50] sm:$0xff] %vm2062, %v1987
      %2074 = vst.msk [vmem:[%s1899 + $0x58] sm:$0xff] %vm2062, %v1989
      %2075 = vst.msk [vmem:[%s1899 + $0x60] sm:$0xff] %vm2062, %v1991
      %2076 = vst.msk [vmem:[%s1899 + $0x68] sm:$0xff] %vm2062, %v1993
      %2077 = vst.msk [vmem:[%s1899 + $0x70] sm:$0xff] %vm2062, %v1995
      %2078 = vst.msk [vmem:[%s1899 + $0x78] sm:$0xff] %vm2062, %v1997
      %2079 = vst.msk [vmem:[%s1899 + $0x80] sm:$0xff] %vm2062, %v1999
      %2080 = vst.msk [vmem:[%s1899 + $0x88] sm:$0xff] %vm2062, %v2001
      %2081 = vst.msk [vmem:[%s1899 + $0x90] sm:$0xff] %vm2062, %v2003
      %2082 = vst.msk [vmem:[%s1899 + $0x98] sm:$0xff] %vm2062, %v2005
      %2083 = vst.msk [vmem:[%s1899 + $0xa0] sm:$0xff] %vm2062, %v2007
      %2084 = vst.msk [vmem:[%s1899 + $0xa8] sm:$0xff] %vm2062, %v2009
      %2085 = vst.msk [vmem:[%s1899 + $0xb0] sm:$0xff] %vm2062, %v2011
      %2086 = vst.msk [vmem:[%s1899 + $0xb8] sm:$0xff] %vm2062, %v2013
      %2087 = vst.msk [vmem:[%s1899 + $0xc0] sm:$0xff] %vm2062, %v2015
      %2088 = vst.msk [vmem:[%s1899 + $0xc8] sm:$0xff] %vm2062, %v2017
      %2089 = vst.msk [vmem:[%s1899 + $0xd0] sm:$0xff] %vm2062, %v2019
      %2090 = vst.msk [vmem:[%s1899 + $0xd8] sm:$0xff] %vm2062, %v2021
      %2091 = vst.msk [vmem:[%s1899 + $0xe0] sm:$0xff] %vm2062, %v2023
      %2092 = vst.msk [vmem:[%s1899 + $0xe8] sm:$0xff] %vm2062, %v2025
      %2093 = vst.msk [vmem:[%s1899 + $0xf0] sm:$0xff] %vm2062, %v2027
      %2094 = vst.msk [vmem:[%s1899 + $0xf8] sm:$0xff] %vm2062, %v2029
      %2095 = vrot.lane.b32.xlu0 %v1751, 64
      %v2096 = vpop.permute.xlu0 %2095
      %2097 = vrot.lane.b32.xlu0 %v1753, 64
      %v2098 = vpop.permute.xlu0 %2097
      %2099 = vrot.lane.b32.xlu0 %v1755, 64
      %v2100 = vpop.permute.xlu0 %2099
      %2101 = vrot.lane.b32.xlu0 %v1757, 64
      %v2102 = vpop.permute.xlu0 %2101
      %2103 = vrot.lane.b32.xlu0 %v1759, 64
      %v2104 = vpop.permute.xlu0 %2103
      %2105 = vrot.lane.b32.xlu0 %v1761, 64
      %v2106 = vpop.permute.xlu0 %2105
      %2107 = vrot.lane.b32.xlu0 %v1763, 64
      %v2108 = vpop.permute.xlu0 %2107
      %2109 = vrot.lane.b32.xlu0 %v1765, 64
      %v2110 = vpop.permute.xlu0 %2109
      %2111 = vrot.lane.b32.xlu0 %v1767, 64
      %v2112 = vpop.permute.xlu0 %2111
      %2113 = vrot.lane.b32.xlu0 %v1769, 64
      %v2114 = vpop.permute.xlu0 %2113
      %2115 = vrot.lane.b32.xlu0 %v1771, 64
      %v2116 = vpop.permute.xlu0 %2115
      %2117 = vrot.lane.b32.xlu0 %v1773, 64
      %v2118 = vpop.permute.xlu0 %2117
      %2119 = vrot.lane.b32.xlu0 %v1775, 64
      %v2120 = vpop.permute.xlu0 %2119
      %2121 = vrot.lane.b32.xlu0 %v1777, 64
      %v2122 = vpop.permute.xlu0 %2121
      %2123 = vrot.lane.b32.xlu0 %v1779, 64
      %v2124 = vpop.permute.xlu0 %2123
      %2125 = vrot.lane.b32.xlu0 %v1781, 64
      %v2126 = vpop.permute.xlu0 %2125
      %2127 = vrot.lane.b32.xlu0 %v1783, 64
      %v2128 = vpop.permute.xlu0 %2127
      %2129 = vrot.lane.b32.xlu0 %v1785, 64
      %v2130 = vpop.permute.xlu0 %2129
      %2131 = vrot.lane.b32.xlu0 %v1787, 64
      %v2132 = vpop.permute.xlu0 %2131
      %2133 = vrot.lane.b32.xlu0 %v1789, 64
      %v2134 = vpop.permute.xlu0 %2133
      %2135 = vrot.lane.b32.xlu0 %v1791, 64
      %v2136 = vpop.permute.xlu0 %2135
      %2137 = vrot.lane.b32.xlu0 %v1793, 64
      %v2138 = vpop.permute.xlu0 %2137
      %2139 = vrot.lane.b32.xlu0 %v1795, 64
      %v2140 = vpop.permute.xlu0 %2139
      %2141 = vrot.lane.b32.xlu0 %v1797, 64
      %v2142 = vpop.permute.xlu0 %2141
      %2143 = vrot.lane.b32.xlu0 %v1799, 64
      %v2144 = vpop.permute.xlu0 %2143
      %2145 = vrot.lane.b32.xlu0 %v1801, 64
      %v2146 = vpop.permute.xlu0 %2145
      %2147 = vrot.lane.b32.xlu0 %v1803, 64
      %v2148 = vpop.permute.xlu0 %2147
      %2149 = vrot.lane.b32.xlu0 %v1805, 64
      %v2150 = vpop.permute.xlu0 %2149
      %2151 = vrot.lane.b32.xlu0 %v1807, 64
      %v2152 = vpop.permute.xlu0 %2151
      %2153 = vrot.lane.b32.xlu0 %v1809, 64
      %v2154 = vpop.permute.xlu0 %2153
      %2155 = vrot.lane.b32.xlu0 %v1811, 64
      %v2156 = vpop.permute.xlu0 %2155
      %2157 = vrot.lane.b32.xlu0 %v1813, 64
      %v2158 = vpop.permute.xlu0 %2157
      %vm2191 = vcmask 785921
      %2192 = vst.msk [vmem:[%s1899 - $0x1] sm:$0xfe] %vm2191, %v2096
      %vm2193 = vcmask 785920
      %2194 = vst.msk [vmem:[%s1899 + $0x7] sm:$0xff] %vm2193, %v2098
      %2195 = vst.msk [vmem:[%s1899 + $0xf] sm:$0xfe] %vm2191, %v2100
      %2196 = vst.msk [vmem:[%s1899 + $0x17] sm:$0xff] %vm2193, %v2102
      %2197 = vst.msk [vmem:[%s1899 + $0x1f] sm:$0xfe] %vm2191, %v2104
      %2198 = vst.msk [vmem:[%s1899 + $0x27] sm:$0xff] %vm2193, %v2106
      %2199 = vst.msk [vmem:[%s1899 + $0x2f] sm:$0xfe] %vm2191, %v2108
      %2200 = vst.msk [vmem:[%s1899 + $0x37] sm:$0xff] %vm2193, %v2110
      %2201 = vst.msk [vmem:[%s1899 + $0x3f] sm:$0xfe] %vm2191, %v2112
      %2202 = vst.msk [vmem:[%s1899 + $0x47] sm:$0xff] %vm2193, %v2114
      %2203 = vst.msk [vmem:[%s1899 + $0x4f] sm:$0xfe] %vm2191, %v2116
      %2204 = vst.msk [vmem:[%s1899 + $0x57] sm:$0xff] %vm2193, %v2118
      %2205 = vst.msk [vmem:[%s1899 + $0x5f] sm:$0xfe] %vm2191, %v2120
      %2206 = vst.msk [vmem:[%s1899 + $0x67] sm:$0xff] %vm2193, %v2122
      %2207 = vst.msk [vmem:[%s1899 + $0x6f] sm:$0xfe] %vm2191, %v2124
      %2208 = vst.msk [vmem:[%s1899 + $0x77] sm:$0xff] %vm2193, %v2126
      %2209 = vst.msk [vmem:[%s1899 + $0x7f] sm:$0xfe] %vm2191, %v2128
      %2210 = vst.msk [vmem:[%s1899 + $0x87] sm:$0xff] %vm2193, %v2130
      %2211 = vst.msk [vmem:[%s1899 + $0x8f] sm:$0xfe] %vm2191, %v2132
      %2212 = vst.msk [vmem:[%s1899 + $0x97] sm:$0xff] %vm2193, %v2134
      %2213 = vst.msk [vmem:[%s1899 + $0x9f] sm:$0xfe] %vm2191, %v2136
      %2214 = vst.msk [vmem:[%s1899 + $0xa7] sm:$0xff] %vm2193, %v2138
      %2215 = vst.msk [vmem:[%s1899 + $0xaf] sm:$0xfe] %vm2191, %v2140
      %2216 = vst.msk [vmem:[%s1899 + $0xb7] sm:$0xff] %vm2193, %v2142
      %2217 = vst.msk [vmem:[%s1899 + $0xbf] sm:$0xfe] %vm2191, %v2144
      %2218 = vst.msk [vmem:[%s1899 + $0xc7] sm:$0xff] %vm2193, %v2146
      %2219 = vst.msk [vmem:[%s1899 + $0xcf] sm:$0xfe] %vm2191, %v2148
      %2220 = vst.msk [vmem:[%s1899 + $0xd7] sm:$0xff] %vm2193, %v2150
      %2221 = vst.msk [vmem:[%s1899 + $0xdf] sm:$0xfe] %vm2191, %v2152
      %2222 = vst.msk [vmem:[%s1899 + $0xe7] sm:$0xff] %vm2193, %v2154
      %2223 = vst.msk [vmem:[%s1899 + $0xef] sm:$0xfe] %vm2191, %v2156
      %2224 = vst.msk [vmem:[%s1899 + $0xf7] sm:$0xff] %vm2193, %v2158
      %v2225 = vld [vmem:[#allocation2] sm:$0xff]
      %v2226 = vld [vmem:[#allocation2 + $0x8] sm:$0xff]
      %v2227 = vld [vmem:[#allocation2 + $0x10] sm:$0xff]
      %v2228 = vld [vmem:[#allocation2 + $0x18] sm:$0xff]
      %v2229 = vld [vmem:[#allocation2 + $0x20] sm:$0xff]
      %v2230 = vld [vmem:[#allocation2 + $0x28] sm:$0xff]
      %v2231 = vld [vmem:[#allocation2 + $0x30] sm:$0xff]
      %v2232 = vld [vmem:[#allocation2 + $0x38] sm:$0xff]
      %v2233 = vld [vmem:[#allocation2 + $0x40] sm:$0xff]
      %v2234 = vld [vmem:[#allocation2 + $0x48] sm:$0xff]
      %v2235 = vld [vmem:[#allocation2 + $0x50] sm:$0xff]
      %v2236 = vld [vmem:[#allocation2 + $0x58] sm:$0xff]
      %v2237 = vld [vmem:[#allocation2 + $0x60] sm:$0xff]
      %v2238 = vld [vmem:[#allocation2 + $0x68] sm:$0xff]
      %v2239 = vld [vmem:[#allocation2 + $0x70] sm:$0xff]
      %v2240 = vld [vmem:[#allocation2 + $0x78] sm:$0xff]
      %v2241 = vld [vmem:[#allocation2 + $0x80] sm:$0xff]
      %v2242 = vld [vmem:[#allocation2 + $0x88] sm:$0xff]
      %v2243 = vld [vmem:[#allocation2 + $0x90] sm:$0xff]
      %v2244 = vld [vmem:[#allocation2 + $0x98] sm:$0xff]
      %v2245 = vld [vmem:[#allocation2 + $0xa0] sm:$0xff]
      %v2246 = vld [vmem:[#allocation2 + $0xa8] sm:$0xff]
      %v2247 = vld [vmem:[#allocation2 + $0xb0] sm:$0xff]
      %v2248 = vld [vmem:[#allocation2 + $0xb8] sm:$0xff]
      %v2249 = vld [vmem:[#allocation2 + $0xc0] sm:$0xff]
      %v2250 = vld [vmem:[#allocation2 + $0xc8] sm:$0xff]
      %v2251 = vld [vmem:[#allocation2 + $0xd0] sm:$0xff]
      %v2252 = vld [vmem:[#allocation2 + $0xd8] sm:$0xff]
      %v2253 = vld [vmem:[#allocation2 + $0xe0] sm:$0xff]
      %v2254 = vld [vmem:[#allocation2 + $0xe8] sm:$0xff]
      %v2255 = vld [vmem:[#allocation2 + $0xf0] sm:$0xff]
      %v2256 = vld [vmem:[#allocation2 + $0xf8] sm:$0xff]
      %v2257 = vpack.c.bf16 %v2226, %v2225
      %v2258 = vpack.c.bf16 %v2228, %v2227
      %v2259 = vpack.c.bf16 %v2230, %v2229
      %v2260 = vpack.c.bf16 %v2232, %v2231
      %v2261 = vpack.c.bf16 %v2234, %v2233
      %v2262 = vpack.c.bf16 %v2236, %v2235
      %v2263 = vpack.c.bf16 %v2238, %v2237
      %v2264 = vpack.c.bf16 %v2240, %v2239
      %v2265 = vpack.c.bf16 %v2242, %v2241
      %v2266 = vpack.c.bf16 %v2244, %v2243
      %v2267 = vpack.c.bf16 %v2246, %v2245
      %v2268 = vpack.c.bf16 %v2248, %v2247
      %v2269 = vpack.c.bf16 %v2250, %v2249
      %v2270 = vpack.c.bf16 %v2252, %v2251
      %v2271 = vpack.c.bf16 %v2254, %v2253
      %v2272 = vpack.c.bf16 %v2256, %v2255
      %v2273 = vld [vmem:[%s4] sm:$0xf]
      %v2274 = vld [vmem:[%s4 + $0x4] sm:$0xf]
      %v2275 = vld [vmem:[%s4 + $0x8] sm:$0xf]
      %v2276 = vld [vmem:[%s4 + $0xc] sm:$0xf]
      %v2277 = vld [vmem:[%s4 + $0x10] sm:$0xf]
      %v2278 = vld [vmem:[%s4 + $0x14] sm:$0xf]
      %v2279 = vld [vmem:[%s4 + $0x18] sm:$0xf]
      %v2280 = vld [vmem:[%s4 + $0x1c] sm:$0xf]
      %v2281 = vld [vmem:[%s4 + $0x20] sm:$0xf]
      %v2282 = vld [vmem:[%s4 + $0x24] sm:$0xf]
      %v2283 = vld [vmem:[%s4 + $0x28] sm:$0xf]
      %v2284 = vld [vmem:[%s4 + $0x2c] sm:$0xf]
      %v2285 = vld [vmem:[%s4 + $0x30] sm:$0xf]
      %v2286 = vld [vmem:[%s4 + $0x34] sm:$0xf]
      %v2287 = vld [vmem:[%s4 + $0x38] sm:$0xf]
      %v2288 = vld [vmem:[%s4 + $0x3c] sm:$0xf]
      %v2289 = vld [vmem:[%s1899] sm:$0xff]
      %v2290 = vld [vmem:[%s1899 + $0x8] sm:$0xff]
      %v2291 = vld [vmem:[%s1899 + $0x10] sm:$0xff]
      %v2292 = vld [vmem:[%s1899 + $0x18] sm:$0xff]
      %v2293 = vld [vmem:[%s1899 + $0x20] sm:$0xff]
      %v2294 = vld [vmem:[%s1899 + $0x28] sm:$0xff]
      %v2295 = vld [vmem:[%s1899 + $0x30] sm:$0xff]
      %v2296 = vld [vmem:[%s1899 + $0x38] sm:$0xff]
      %v2297 = vld [vmem:[%s1899 + $0x40] sm:$0xff]
      %v2298 = vld [vmem:[%s1899 + $0x48] sm:$0xff]
      %v2299 = vld [vmem:[%s1899 + $0x50] sm:$0xff]
      %v2300 = vld [vmem:[%s1899 + $0x58] sm:$0xff]
      %v2301 = vld [vmem:[%s1899 + $0x60] sm:$0xff]
      %v2302 = vld [vmem:[%s1899 + $0x68] sm:$0xff]
      %v2303 = vld [vmem:[%s1899 + $0x70] sm:$0xff]
      %v2304 = vld [vmem:[%s1899 + $0x78] sm:$0xff]
      %v2305 = vld [vmem:[%s1899 + $0x80] sm:$0xff]
      %v2306 = vld [vmem:[%s1899 + $0x88] sm:$0xff]
      %v2307 = vld [vmem:[%s1899 + $0x90] sm:$0xff]
      %v2308 = vld [vmem:[%s1899 + $0x98] sm:$0xff]
      %v2309 = vld [vmem:[%s1899 + $0xa0] sm:$0xff]
      %v2310 = vld [vmem:[%s1899 + $0xa8] sm:$0xff]
      %v2311 = vld [vmem:[%s1899 + $0xb0] sm:$0xff]
      %v2312 = vld [vmem:[%s1899 + $0xb8] sm:$0xff]
      %v2313 = vld [vmem:[%s1899 + $0xc0] sm:$0xff]
      %v2314 = vld [vmem:[%s1899 + $0xc8] sm:$0xff]
      %v2315 = vld [vmem:[%s1899 + $0xd0] sm:$0xff]
      %v2316 = vld [vmem:[%s1899 + $0xd8] sm:$0xff]
      %v2317 = vld [vmem:[%s1899 + $0xe0] sm:$0xff]
      %v2318 = vld [vmem:[%s1899 + $0xe8] sm:$0xff]
      %v2319 = vld [vmem:[%s1899 + $0xf0] sm:$0xff]
      %v2320 = vld [vmem:[%s1899 + $0xf8] sm:$0xff]
      %v2321 = vpack.c.bf16 %v2290, %v2289
      %v2322 = vpack.c.bf16 %v2292, %v2291
      %v2323 = vpack.c.bf16 %v2294, %v2293
      %v2324 = vpack.c.bf16 %v2296, %v2295
      %v2325 = vpack.c.bf16 %v2298, %v2297
      %v2326 = vpack.c.bf16 %v2300, %v2299
      %v2327 = vpack.c.bf16 %v2302, %v2301
      %v2328 = vpack.c.bf16 %v2304, %v2303
      %v2329 = vpack.c.bf16 %v2306, %v2305
      %v2330 = vpack.c.bf16 %v2308, %v2307
      %v2331 = vpack.c.bf16 %v2310, %v2309
      %v2332 = vpack.c.bf16 %v2312, %v2311
      %v2333 = vpack.c.bf16 %v2314, %v2313
      %v2334 = vpack.c.bf16 %v2316, %v2315
      %v2335 = vpack.c.bf16 %v2318, %v2317
      %v2336 = vpack.c.bf16 %v2320, %v2319
      %s2337 = scalar_lea.vmem %s4, 64
      %v2338 = vld [vmem:[%s2337] sm:$0xf]
      %v2339 = vld [vmem:[%s2337 + $0x4] sm:$0xf]
      %v2340 = vld [vmem:[%s2337 + $0x8] sm:$0xf]
      %v2341 = vld [vmem:[%s2337 + $0xc] sm:$0xf]
      %v2342 = vld [vmem:[%s2337 + $0x10] sm:$0xf]
      %v2343 = vld [vmem:[%s2337 + $0x14] sm:$0xf]
      %v2344 = vld [vmem:[%s2337 + $0x18] sm:$0xf]
      %v2345 = vld [vmem:[%s2337 + $0x1c] sm:$0xf]
      %v2346 = vld [vmem:[%s2337 + $0x20] sm:$0xf]
      %v2347 = vld [vmem:[%s2337 + $0x24] sm:$0xf]
      %v2348 = vld [vmem:[%s2337 + $0x28] sm:$0xf]
      %v2349 = vld [vmem:[%s2337 + $0x2c] sm:$0xf]
      %v2350 = vld [vmem:[%s2337 + $0x30] sm:$0xf]
      %v2351 = vld [vmem:[%s2337 + $0x34] sm:$0xf]
      %v2352 = vld [vmem:[%s2337 + $0x38] sm:$0xf]
      %v2353 = vld [vmem:[%s2337 + $0x3c] sm:$0xf]
      %v2370 = vunpack.c.l.b16 %v2338
      %v2371 = vunpack.c.l.b16 %v2339
      %v2372 = vunpack.c.l.b16 %v2340
      %v2373 = vunpack.c.l.b16 %v2341
      %v2374 = vunpack.c.l.b16 %v2342
      %v2375 = vunpack.c.l.b16 %v2343
      %v2376 = vunpack.c.l.b16 %v2344
      %v2377 = vunpack.c.l.b16 %v2345
      %v2378 = vunpack.c.l.b16 %v2346
      %v2379 = vunpack.c.l.b16 %v2347
      %v2380 = vunpack.c.l.b16 %v2348
      %v2381 = vunpack.c.l.b16 %v2349
      %v2382 = vunpack.c.l.b16 %v2350
      %v2383 = vunpack.c.l.b16 %v2351
      %v2384 = vunpack.c.l.b16 %v2352
      %v2385 = vunpack.c.l.b16 %v2353
      %v2386 = vpack.c.b16 %v2371, %v2370
      %v2387 = vpack.c.b16 %v2373, %v2372
      %v2388 = vpack.c.b16 %v2375, %v2374
      %v2389 = vpack.c.b16 %v2377, %v2376
      %v2390 = vpack.c.b16 %v2379, %v2378
      %v2391 = vpack.c.b16 %v2381, %v2380
      %v2392 = vpack.c.b16 %v2383, %v2382
      %v2393 = vpack.c.b16 %v2385, %v2384
      %2402 = vmatpush.bf16.msra.mxu0 %v2393
      %2403 = vmatpush.bf16.msra.mxu0 %v2392
      %2404 = vmatpush.bf16.msra.mxu0 %v2391
      %2405 = vmatpush.bf16.msra.mxu0 %v2390
      %2406 = vmatpush.bf16.msra.mxu0 %v2389
      %2407 = vmatpush.bf16.msra.mxu0 %v2388
      %2408 = vmatpush.bf16.msra.mxu0 %v2387
      %2409 = vmatpush.bf16.msra.mxu0 %v2386
      %2410 = vmatmul.bf16.gmra.mxu0 %v2321
      %v2411 = vpop.f32.mrf.mxu0
      %v2412 = vadd.f32 0.0, %v2411
      %v2413 = vpop.f32.mrf.mxu0
      %v2414 = vadd.f32 0.0, %v2413
      %2415 = vmatmul.bf16.gmra.mxu0 %v2322
      %v2416 = vpop.f32.mrf.mxu0
      %v2417 = vadd.f32 0.0, %v2416
      %v2418 = vpop.f32.mrf.mxu0
      %v2419 = vadd.f32 0.0, %v2418
      %2420 = vmatmul.bf16.gmra.mxu0 %v2323
      %v2421 = vpop.f32.mrf.mxu0
      %v2422 = vadd.f32 0.0, %v2421
      %v2423 = vpop.f32.mrf.mxu0
      %v2424 = vadd.f32 0.0, %v2423
      %2425 = vmatmul.bf16.gmra.mxu0 %v2324
      %v2426 = vpop.f32.mrf.mxu0
      %v2427 = vadd.f32 0.0, %v2426
      %v2428 = vpop.f32.mrf.mxu0
      %v2429 = vadd.f32 0.0, %v2428
      %2430 = vmatmul.bf16.gmra.mxu0 %v2325
      %v2431 = vpop.f32.mrf.mxu0
      %v2432 = vadd.f32 0.0, %v2431
      %v2433 = vpop.f32.mrf.mxu0
      %v2434 = vadd.f32 0.0, %v2433
      %2435 = vmatmul.bf16.gmra.mxu0 %v2326
      %v2436 = vpop.f32.mrf.mxu0
      %v2437 = vadd.f32 0.0, %v2436
      %v2438 = vpop.f32.mrf.mxu0
      %v2439 = vadd.f32 0.0, %v2438
      %2440 = vmatmul.bf16.gmra.mxu0 %v2327
      %v2441 = vpop.f32.mrf.mxu0
      %v2442 = vadd.f32 0.0, %v2441
      %v2443 = vpop.f32.mrf.mxu0
      %v2444 = vadd.f32 0.0, %v2443
      %2445 = vmatmul.bf16.gmra.mxu0 %v2328
      %v2446 = vpop.f32.mrf.mxu0
      %v2447 = vadd.f32 0.0, %v2446
      %v2448 = vpop.f32.mrf.mxu0
      %v2449 = vadd.f32 0.0, %v2448
      %2450 = vmatmul.bf16.gmra.mxu0 %v2329
      %v2451 = vpop.f32.mrf.mxu0
      %v2452 = vadd.f32 0.0, %v2451
      %v2453 = vpop.f32.mrf.mxu0
      %v2454 = vadd.f32 0.0, %v2453
      %2455 = vmatmul.bf16.gmra.mxu0 %v2330
      %v2456 = vpop.f32.mrf.mxu0
      %v2457 = vadd.f32 0.0, %v2456
      %v2458 = vpop.f32.mrf.mxu0
      %v2459 = vadd.f32 0.0, %v2458
      %2460 = vmatmul.bf16.gmra.mxu0 %v2331
      %v2461 = vpop.f32.mrf.mxu0
      %v2462 = vadd.f32 0.0, %v2461
      %v2463 = vpop.f32.mrf.mxu0
      %v2464 = vadd.f32 0.0, %v2463
      %2465 = vmatmul.bf16.gmra.mxu0 %v2332
      %v2466 = vpop.f32.mrf.mxu0
      %v2467 = vadd.f32 0.0, %v2466
      %v2468 = vpop.f32.mrf.mxu0
      %v2469 = vadd.f32 0.0, %v2468
      %2470 = vmatmul.bf16.gmra.mxu0 %v2333
      %v2471 = vpop.f32.mrf.mxu0
      %v2472 = vadd.f32 0.0, %v2471
      %v2473 = vpop.f32.mrf.mxu0
      %v2474 = vadd.f32 0.0, %v2473
      %2475 = vmatmul.bf16.gmra.mxu0 %v2334
      %v2476 = vpop.f32.mrf.mxu0
      %v2477 = vadd.f32 0.0, %v2476
      %v2478 = vpop.f32.mrf.mxu0
      %v2479 = vadd.f32 0.0, %v2478
      %2480 = vmatmul.bf16.gmra.mxu0 %v2335
      %v2481 = vpop.f32.mrf.mxu0
      %v2482 = vadd.f32 0.0, %v2481
      %v2483 = vpop.f32.mrf.mxu0
      %v2484 = vadd.f32 0.0, %v2483
      %2485 = vmatmul.bf16.gmra.mxu0 %v2336
      %v2486 = vpop.f32.mrf.mxu0
      %v2487 = vadd.f32 0.0, %v2486
      %v2488 = vpop.f32.mrf.mxu0
      %v2489 = vadd.f32 0.0, %v2488
      %2490 = vdwg.mxu0
      %v2507 = vunpack.c.l.b16 %v2273
      %v2508 = vunpack.c.l.b16 %v2274
      %v2509 = vunpack.c.l.b16 %v2275
      %v2510 = vunpack.c.l.b16 %v2276
      %v2511 = vunpack.c.l.b16 %v2277
      %v2512 = vunpack.c.l.b16 %v2278
      %v2513 = vunpack.c.l.b16 %v2279
      %v2514 = vunpack.c.l.b16 %v2280
      %v2515 = vunpack.c.l.b16 %v2281
      %v2516 = vunpack.c.l.b16 %v2282
      %v2517 = vunpack.c.l.b16 %v2283
      %v2518 = vunpack.c.l.b16 %v2284
      %v2519 = vunpack.c.l.b16 %v2285
      %v2520 = vunpack.c.l.b16 %v2286
      %v2521 = vunpack.c.l.b16 %v2287
      %v2522 = vunpack.c.l.b16 %v2288
      %v2523 = vpack.c.b16 %v2508, %v2507
      %v2524 = vpack.c.b16 %v2510, %v2509
      %v2525 = vpack.c.b16 %v2512, %v2511
      %v2526 = vpack.c.b16 %v2514, %v2513
      %v2527 = vpack.c.b16 %v2516, %v2515
      %v2528 = vpack.c.b16 %v2518, %v2517
      %v2529 = vpack.c.b16 %v2520, %v2519
      %v2530 = vpack.c.b16 %v2522, %v2521
      %2539 = vmatpush.bf16.msra.mxu0 %v2530
      %2540 = vmatpush.bf16.msra.mxu0 %v2529
      %2541 = vmatpush.bf16.msra.mxu0 %v2528
      %2542 = vmatpush.bf16.msra.mxu0 %v2527
      %2543 = vmatpush.bf16.msra.mxu0 %v2526
      %2544 = vmatpush.bf16.msra.mxu0 %v2525
      %2545 = vmatpush.bf16.msra.mxu0 %v2524
      %2546 = vmatpush.bf16.msra.mxu0 %v2523
      %2547 = vmatmul.bf16.gmra.mxu0 %v2257
      %v2548 = vpop.f32.mrf.mxu0
      %v2549 = vadd.f32 %v2412, %v2548
      %v2550 = vpop.f32.mrf.mxu0
      %v2551 = vadd.f32 %v2414, %v2550
      %2552 = vmatmul.bf16.gmra.mxu0 %v2258
      %v2553 = vpop.f32.mrf.mxu0
      %v2554 = vadd.f32 %v2417, %v2553
      %v2555 = vpop.f32.mrf.mxu0
      %v2556 = vadd.f32 %v2419, %v2555
      %2557 = vmatmul.bf16.gmra.mxu0 %v2259
      %v2558 = vpop.f32.mrf.mxu0
      %v2559 = vadd.f32 %v2422, %v2558
      %v2560 = vpop.f32.mrf.mxu0
      %v2561 = vadd.f32 %v2424, %v2560
      %2562 = vmatmul.bf16.gmra.mxu0 %v2260
      %v2563 = vpop.f32.mrf.mxu0
      %v2564 = vadd.f32 %v2427, %v2563
      %v2565 = vpop.f32.mrf.mxu0
      %v2566 = vadd.f32 %v2429, %v2565
      %2567 = vmatmul.bf16.gmra.mxu0 %v2261
      %v2568 = vpop.f32.mrf.mxu0
      %v2569 = vadd.f32 %v2432, %v2568
      %v2570 = vpop.f32.mrf.mxu0
      %v2571 = vadd.f32 %v2434, %v2570
      %2572 = vmatmul.bf16.gmra.mxu0 %v2262
      %v2573 = vpop.f32.mrf.mxu0
      %v2574 = vadd.f32 %v2437, %v2573
      %v2575 = vpop.f32.mrf.mxu0
      %v2576 = vadd.f32 %v2439, %v2575
      %2577 = vmatmul.bf16.gmra.mxu0 %v2263
      %v2578 = vpop.f32.mrf.mxu0
      %v2579 = vadd.f32 %v2442, %v2578
      %v2580 = vpop.f32.mrf.mxu0
      %v2581 = vadd.f32 %v2444, %v2580
      %2582 = vmatmul.bf16.gmra.mxu0 %v2264
      %v2583 = vpop.f32.mrf.mxu0
      %v2584 = vadd.f32 %v2447, %v2583
      %v2585 = vpop.f32.mrf.mxu0
      %v2586 = vadd.f32 %v2449, %v2585
      %2587 = vmatmul.bf16.gmra.mxu0 %v2265
      %v2588 = vpop.f32.mrf.mxu0
      %v2589 = vadd.f32 %v2452, %v2588
      %v2590 = vpop.f32.mrf.mxu0
      %v2591 = vadd.f32 %v2454, %v2590
      %2592 = vmatmul.bf16.gmra.mxu0 %v2266
      %v2593 = vpop.f32.mrf.mxu0
      %v2594 = vadd.f32 %v2457, %v2593
      %v2595 = vpop.f32.mrf.mxu0
      %v2596 = vadd.f32 %v2459, %v2595
      %2597 = vmatmul.bf16.gmra.mxu0 %v2267
      %v2598 = vpop.f32.mrf.mxu0
      %v2599 = vadd.f32 %v2462, %v2598
      %v2600 = vpop.f32.mrf.mxu0
      %v2601 = vadd.f32 %v2464, %v2600
      %2602 = vmatmul.bf16.gmra.mxu0 %v2268
      %v2603 = vpop.f32.mrf.mxu0
      %v2604 = vadd.f32 %v2467, %v2603
      %v2605 = vpop.f32.mrf.mxu0
      %v2606 = vadd.f32 %v2469, %v2605
      %2607 = vmatmul.bf16.gmra.mxu0 %v2269
      %v2608 = vpop.f32.mrf.mxu0
      %v2609 = vadd.f32 %v2472, %v2608
      %v2610 = vpop.f32.mrf.mxu0
      %v2611 = vadd.f32 %v2474, %v2610
      %2612 = vmatmul.bf16.gmra.mxu0 %v2270
      %v2613 = vpop.f32.mrf.mxu0
      %v2614 = vadd.f32 %v2477, %v2613
      %v2615 = vpop.f32.mrf.mxu0
      %v2616 = vadd.f32 %v2479, %v2615
      %2617 = vmatmul.bf16.gmra.mxu0 %v2271
      %v2618 = vpop.f32.mrf.mxu0
      %v2619 = vadd.f32 %v2482, %v2618
      %v2620 = vpop.f32.mrf.mxu0
      %v2621 = vadd.f32 %v2484, %v2620
      %2622 = vmatmul.bf16.gmra.mxu0 %v2272
      %v2623 = vpop.f32.mrf.mxu0
      %v2624 = vadd.f32 %v2487, %v2623
      %v2625 = vpop.f32.mrf.mxu0
      %v2626 = vadd.f32 %v2489, %v2625
      %2627 = vdwg.mxu0
      %s2628 = scalar_lea.vmem [#allocation2], 32
      %v2629 = vld [vmem:[%s2628] sm:$0xff]
      %v2630 = vld [vmem:[%s2628 + $0x8] sm:$0xff]
      %v2631 = vld [vmem:[%s2628 + $0x10] sm:$0xff]
      %v2632 = vld [vmem:[%s2628 + $0x18] sm:$0xff]
      %v2633 = vld [vmem:[%s2628 + $0x20] sm:$0xff]
      %v2634 = vld [vmem:[%s2628 + $0x28] sm:$0xff]
      %v2635 = vld [vmem:[%s2628 + $0x30] sm:$0xff]
      %v2636 = vld [vmem:[%s2628 + $0x38] sm:$0xff]
      %v2637 = vld [vmem:[%s2628 + $0x40] sm:$0xff]
      %v2638 = vld [vmem:[%s2628 + $0x48] sm:$0xff]
      %v2639 = vld [vmem:[%s2628 + $0x50] sm:$0xff]
      %v2640 = vld [vmem:[%s2628 + $0x58] sm:$0xff]
      %v2641 = vld [vmem:[%s2628 + $0x60] sm:$0xff]
      %v2642 = vld [vmem:[%s2628 + $0x68] sm:$0xff]
      %v2643 = vld [vmem:[%s2628 + $0x70] sm:$0xff]
      %v2644 = vld [vmem:[%s2628 + $0x78] sm:$0xff]
      %v2645 = vld [vmem:[%s2628 + $0x80] sm:$0xff]
      %v2646 = vld [vmem:[%s2628 + $0x88] sm:$0xff]
      %v2647 = vld [vmem:[%s2628 + $0x90] sm:$0xff]
      %v2648 = vld [vmem:[%s2628 + $0x98] sm:$0xff]
      %v2649 = vld [vmem:[%s2628 + $0xa0] sm:$0xff]
      %v2650 = vld [vmem:[%s2628 + $0xa8] sm:$0xff]
      %v2651 = vld [vmem:[%s2628 + $0xb0] sm:$0xff]
      %v2652 = vld [vmem:[%s2628 + $0xb8] sm:$0xff]
      %v2653 = vld [vmem:[%s2628 + $0xc0] sm:$0xff]
      %v2654 = vld [vmem:[%s2628 + $0xc8] sm:$0xff]
      %v2655 = vld [vmem:[%s2628 + $0xd0] sm:$0xff]
      %v2656 = vld [vmem:[%s2628 + $0xd8] sm:$0xff]
      %v2657 = vld [vmem:[%s2628 + $0xe0] sm:$0xff]
      %v2658 = vld [vmem:[%s2628 + $0xe8] sm:$0xff]
      %v2659 = vld [vmem:[%s2628 + $0xf0] sm:$0xff]
      %v2660 = vld [vmem:[%s2628 + $0xf8] sm:$0xff]
      %v2661 = vpack.c.bf16 %v2630, %v2629
      %v2662 = vpack.c.bf16 %v2632, %v2631
      %v2663 = vpack.c.bf16 %v2634, %v2633
      %v2664 = vpack.c.bf16 %v2636, %v2635
      %v2665 = vpack.c.bf16 %v2638, %v2637
      %v2666 = vpack.c.bf16 %v2640, %v2639
      %v2667 = vpack.c.bf16 %v2642, %v2641
      %v2668 = vpack.c.bf16 %v2644, %v2643
      %v2669 = vpack.c.bf16 %v2646, %v2645
      %v2670 = vpack.c.bf16 %v2648, %v2647
      %v2671 = vpack.c.bf16 %v2650, %v2649
      %v2672 = vpack.c.bf16 %v2652, %v2651
      %v2673 = vpack.c.bf16 %v2654, %v2653
      %v2674 = vpack.c.bf16 %v2656, %v2655
      %v2675 = vpack.c.bf16 %v2658, %v2657
      %v2676 = vpack.c.bf16 %v2660, %v2659
      %s2677 = scalar_lea.vmem %s4, 128
      %v2678 = vld [vmem:[%s2677] sm:$0xf]
      %v2679 = vld [vmem:[%s2677 + $0x4] sm:$0xf]
      %v2680 = vld [vmem:[%s2677 + $0x8] sm:$0xf]
      %v2681 = vld [vmem:[%s2677 + $0xc] sm:$0xf]
      %v2682 = vld [vmem:[%s2677 + $0x10] sm:$0xf]
      %v2683 = vld [vmem:[%s2677 + $0x14] sm:$0xf]
      %v2684 = vld [vmem:[%s2677 + $0x18] sm:$0xf]
      %v2685 = vld [vmem:[%s2677 + $0x1c] sm:$0xf]
      %v2686 = vld [vmem:[%s2677 + $0x20] sm:$0xf]
      %v2687 = vld [vmem:[%s2677 + $0x24] sm:$0xf]
      %v2688 = vld [vmem:[%s2677 + $0x28] sm:$0xf]
      %v2689 = vld [vmem:[%s2677 + $0x2c] sm:$0xf]
      %v2690 = vld [vmem:[%s2677 + $0x30] sm:$0xf]
      %v2691 = vld [vmem:[%s2677 + $0x34] sm:$0xf]
      %v2692 = vld [vmem:[%s2677 + $0x38] sm:$0xf]
      %v2693 = vld [vmem:[%s2677 + $0x3c] sm:$0xf]
      %v2710 = vunpack.c.l.b16 %v2678
      %v2711 = vunpack.c.l.b16 %v2679
      %v2712 = vunpack.c.l.b16 %v2680
      %v2713 = vunpack.c.l.b16 %v2681
      %v2714 = vunpack.c.l.b16 %v2682
      %v2715 = vunpack.c.l.b16 %v2683
      %v2716 = vunpack.c.l.b16 %v2684
      %v2717 = vunpack.c.l.b16 %v2685
      %v2718 = vunpack.c.l.b16 %v2686
      %v2719 = vunpack.c.l.b16 %v2687
      %v2720 = vunpack.c.l.b16 %v2688
      %v2721 = vunpack.c.l.b16 %v2689
      %v2722 = vunpack.c.l.b16 %v2690
      %v2723 = vunpack.c.l.b16 %v2691
      %v2724 = vunpack.c.l.b16 %v2692
      %v2725 = vunpack.c.l.b16 %v2693
      %v2726 = vpack.c.b16 %v2711, %v2710
      %v2727 = vpack.c.b16 %v2713, %v2712
      %v2728 = vpack.c.b16 %v2715, %v2714
      %v2729 = vpack.c.b16 %v2717, %v2716
      %v2730 = vpack.c.b16 %v2719, %v2718
      %v2731 = vpack.c.b16 %v2721, %v2720
      %v2732 = vpack.c.b16 %v2723, %v2722
      %v2733 = vpack.c.b16 %v2725, %v2724
      %2742 = vmatpush.bf16.msra.mxu0 %v2733
      %2743 = vmatpush.bf16.msra.mxu0 %v2732
      %2744 = vmatpush.bf16.msra.mxu0 %v2731
      %2745 = vmatpush.bf16.msra.mxu0 %v2730
      %2746 = vmatpush.bf16.msra.mxu0 %v2729
      %2747 = vmatpush.bf16.msra.mxu0 %v2728
      %2748 = vmatpush.bf16.msra.mxu0 %v2727
      %2749 = vmatpush.bf16.msra.mxu0 %v2726
      %2750 = vmatmul.bf16.gmra.mxu0 %v2661
      %v2751 = vpop.f32.mrf.mxu0
      %v2752 = vadd.f32 0.0, %v2751
      %v2753 = vpop.f32.mrf.mxu0
      %v2754 = vadd.f32 0.0, %v2753
      %2755 = vmatmul.bf16.gmra.mxu0 %v2662
      %v2756 = vpop.f32.mrf.mxu0
      %v2757 = vadd.f32 0.0, %v2756
      %v2758 = vpop.f32.mrf.mxu0
      %v2759 = vadd.f32 0.0, %v2758
      %2760 = vmatmul.bf16.gmra.mxu0 %v2663
      %v2761 = vpop.f32.mrf.mxu0
      %v2762 = vadd.f32 0.0, %v2761
      %v2763 = vpop.f32.mrf.mxu0
      %v2764 = vadd.f32 0.0, %v2763
      %2765 = vmatmul.bf16.gmra.mxu0 %v2664
      %v2766 = vpop.f32.mrf.mxu0
      %v2767 = vadd.f32 0.0, %v2766
      %v2768 = vpop.f32.mrf.mxu0
      %v2769 = vadd.f32 0.0, %v2768
      %2770 = vmatmul.bf16.gmra.mxu0 %v2665
      %v2771 = vpop.f32.mrf.mxu0
      %v2772 = vadd.f32 0.0, %v2771
      %v2773 = vpop.f32.mrf.mxu0
      %v2774 = vadd.f32 0.0, %v2773
      %2775 = vmatmul.bf16.gmra.mxu0 %v2666
      %v2776 = vpop.f32.mrf.mxu0
      %v2777 = vadd.f32 0.0, %v2776
      %v2778 = vpop.f32.mrf.mxu0
      %v2779 = vadd.f32 0.0, %v2778
      %2780 = vmatmul.bf16.gmra.mxu0 %v2667
      %v2781 = vpop.f32.mrf.mxu0
      %v2782 = vadd.f32 0.0, %v2781
      %v2783 = vpop.f32.mrf.mxu0
      %v2784 = vadd.f32 0.0, %v2783
      %2785 = vmatmul.bf16.gmra.mxu0 %v2668
      %v2786 = vpop.f32.mrf.mxu0
      %v2787 = vadd.f32 0.0, %v2786
      %v2788 = vpop.f32.mrf.mxu0
      %v2789 = vadd.f32 0.0, %v2788
      %2790 = vmatmul.bf16.gmra.mxu0 %v2669
      %v2791 = vpop.f32.mrf.mxu0
      %v2792 = vadd.f32 0.0, %v2791
      %v2793 = vpop.f32.mrf.mxu0
      %v2794 = vadd.f32 0.0, %v2793
      %2795 = vmatmul.bf16.gmra.mxu0 %v2670
      %v2796 = vpop.f32.mrf.mxu0
      %v2797 = vadd.f32 0.0, %v2796
      %v2798 = vpop.f32.mrf.mxu0
      %v2799 = vadd.f32 0.0, %v2798
      %2800 = vmatmul.bf16.gmra.mxu0 %v2671
      %v2801 = vpop.f32.mrf.mxu0
      %v2802 = vadd.f32 0.0, %v2801
      %v2803 = vpop.f32.mrf.mxu0
      %v2804 = vadd.f32 0.0, %v2803
      %2805 = vmatmul.bf16.gmra.mxu0 %v2672
      %v2806 = vpop.f32.mrf.mxu0
      %v2807 = vadd.f32 0.0, %v2806
      %v2808 = vpop.f32.mrf.mxu0
      %v2809 = vadd.f32 0.0, %v2808
      %2810 = vmatmul.bf16.gmra.mxu0 %v2673
      %v2811 = vpop.f32.mrf.mxu0
      %v2812 = vadd.f32 0.0, %v2811
      %v2813 = vpop.f32.mrf.mxu0
      %v2814 = vadd.f32 0.0, %v2813
      %2815 = vmatmul.bf16.gmra.mxu0 %v2674
      %v2816 = vpop.f32.mrf.mxu0
      %v2817 = vadd.f32 0.0, %v2816
      %v2818 = vpop.f32.mrf.mxu0
      %v2819 = vadd.f32 0.0, %v2818
      %2820 = vmatmul.bf16.gmra.mxu0 %v2675
      %v2821 = vpop.f32.mrf.mxu0
      %v2822 = vadd.f32 0.0, %v2821
      %v2823 = vpop.f32.mrf.mxu0
      %v2824 = vadd.f32 0.0, %v2823
      %2825 = vmatmul.bf16.gmra.mxu0 %v2676
      %v2826 = vpop.f32.mrf.mxu0
      %v2827 = vadd.f32 0.0, %v2826
      %v2828 = vpop.f32.mrf.mxu0
      %v2829 = vadd.f32 0.0, %v2828
      %2830 = vdwg.mxu0
      %v2831 = vadd.f32 %v2549, %v2752
      %v2832 = vadd.f32 %v2551, %v2754
      %v2833 = vadd.f32 %v2554, %v2757
      %v2834 = vadd.f32 %v2556, %v2759
      %v2835 = vadd.f32 %v2559, %v2762
      %v2836 = vadd.f32 %v2561, %v2764
      %v2837 = vadd.f32 %v2564, %v2767
      %v2838 = vadd.f32 %v2566, %v2769
      %v2839 = vadd.f32 %v2569, %v2772
      %v2840 = vadd.f32 %v2571, %v2774
      %v2841 = vadd.f32 %v2574, %v2777
      %v2842 = vadd.f32 %v2576, %v2779
      %v2843 = vadd.f32 %v2579, %v2782
      %v2844 = vadd.f32 %v2581, %v2784
      %v2845 = vadd.f32 %v2584, %v2787
      %v2846 = vadd.f32 %v2586, %v2789
      %v2847 = vadd.f32 %v2589, %v2792
      %v2848 = vadd.f32 %v2591, %v2794
      %v2849 = vadd.f32 %v2594, %v2797
      %v2850 = vadd.f32 %v2596, %v2799
      %v2851 = vadd.f32 %v2599, %v2802
      %v2852 = vadd.f32 %v2601, %v2804
      %v2853 = vadd.f32 %v2604, %v2807
      %v2854 = vadd.f32 %v2606, %v2809
      %v2855 = vadd.f32 %v2609, %v2812
      %v2856 = vadd.f32 %v2611, %v2814
      %v2857 = vadd.f32 %v2614, %v2817
      %v2858 = vadd.f32 %v2616, %v2819
      %v2859 = vadd.f32 %v2619, %v2822
      %v2860 = vadd.f32 %v2621, %v2824
      %v2861 = vadd.f32 %v2624, %v2827
      %v2862 = vadd.f32 %v2626, %v2829
      %v2863 = vld [vmem:[%s5] sm:$0x1]
      %v2865 = vperm.slane %v2863, 0
      %v2867 = vmul.f32 %v2831, %v2865
      %v2868 = vmul.f32 %v2832, %v2865
      %v2869 = vmul.f32 %v2833, %v2865
      %v2870 = vmul.f32 %v2834, %v2865
      %v2871 = vmul.f32 %v2835, %v2865
      %v2872 = vmul.f32 %v2836, %v2865
      %v2873 = vmul.f32 %v2837, %v2865
      %v2874 = vmul.f32 %v2838, %v2865
      %v2875 = vmul.f32 %v2839, %v2865
      %v2876 = vmul.f32 %v2840, %v2865
      %v2877 = vmul.f32 %v2841, %v2865
      %v2878 = vmul.f32 %v2842, %v2865
      %v2879 = vmul.f32 %v2843, %v2865
      %v2880 = vmul.f32 %v2844, %v2865
      %v2881 = vmul.f32 %v2845, %v2865
      %v2882 = vmul.f32 %v2846, %v2865
      %v2883 = vmul.f32 %v2847, %v2865
      %v2884 = vmul.f32 %v2848, %v2865
      %v2885 = vmul.f32 %v2849, %v2865
      %v2886 = vmul.f32 %v2850, %v2865
      %v2887 = vmul.f32 %v2851, %v2865
      %v2888 = vmul.f32 %v2852, %v2865
      %v2889 = vmul.f32 %v2853, %v2865
      %v2890 = vmul.f32 %v2854, %v2865
      %v2891 = vmul.f32 %v2855, %v2865
      %v2892 = vmul.f32 %v2856, %v2865
      %v2893 = vmul.f32 %v2857, %v2865
      %v2894 = vmul.f32 %v2858, %v2865
      %v2895 = vmul.f32 %v2859, %v2865
      %v2896 = vmul.f32 %v2860, %v2865
      %v2897 = vmul.f32 %v2861, %v2865
      %v2898 = vmul.f32 %v2862, %v2865
      %v2899 = vld [vmem:[%s6] sm:$0x1]
      %v2901 = vperm.slane %v2899, 0
      %v2903 = vadd.f32 %v2867, %v2901
      %v2904 = vadd.f32 %v2868, %v2901
      %v2905 = vadd.f32 %v2869, %v2901
      %v2906 = vadd.f32 %v2870, %v2901
      %v2907 = vadd.f32 %v2871, %v2901
      %v2908 = vadd.f32 %v2872, %v2901
      %v2909 = vadd.f32 %v2873, %v2901
      %v2910 = vadd.f32 %v2874, %v2901
      %v2911 = vadd.f32 %v2875, %v2901
      %v2912 = vadd.f32 %v2876, %v2901
      %v2913 = vadd.f32 %v2877, %v2901
      %v2914 = vadd.f32 %v2878, %v2901
      %v2915 = vadd.f32 %v2879, %v2901
      %v2916 = vadd.f32 %v2880, %v2901
      %v2917 = vadd.f32 %v2881, %v2901
      %v2918 = vadd.f32 %v2882, %v2901
      %v2919 = vadd.f32 %v2883, %v2901
      %v2920 = vadd.f32 %v2884, %v2901
      %v2921 = vadd.f32 %v2885, %v2901
      %v2922 = vadd.f32 %v2886, %v2901
      %v2923 = vadd.f32 %v2887, %v2901
      %v2924 = vadd.f32 %v2888, %v2901
      %v2925 = vadd.f32 %v2889, %v2901
      %v2926 = vadd.f32 %v2890, %v2901
      %v2927 = vadd.f32 %v2891, %v2901
      %v2928 = vadd.f32 %v2892, %v2901
      %v2929 = vadd.f32 %v2893, %v2901
      %v2930 = vadd.f32 %v2894, %v2901
      %v2931 = vadd.f32 %v2895, %v2901
      %v2932 = vadd.f32 %v2896, %v2901
      %v2933 = vadd.f32 %v2897, %v2901
      %v2934 = vadd.f32 %v2898, %v2901
      %v2935 = vmax.f32 %v2903, 0.0
      %v2936 = vmax.f32 %v2904, 0.0
      %v2937 = vmax.f32 %v2905, 0.0
      %v2938 = vmax.f32 %v2906, 0.0
      %v2939 = vmax.f32 %v2907, 0.0
      %v2940 = vmax.f32 %v2908, 0.0
      %v2941 = vmax.f32 %v2909, 0.0
      %v2942 = vmax.f32 %v2910, 0.0
      %v2943 = vmax.f32 %v2911, 0.0
      %v2944 = vmax.f32 %v2912, 0.0
      %v2945 = vmax.f32 %v2913, 0.0
      %v2946 = vmax.f32 %v2914, 0.0
      %v2947 = vmax.f32 %v2915, 0.0
      %v2948 = vmax.f32 %v2916, 0.0
      %v2949 = vmax.f32 %v2917, 0.0
      %v2950 = vmax.f32 %v2918, 0.0
      %v2951 = vmax.f32 %v2919, 0.0
      %v2952 = vmax.f32 %v2920, 0.0
      %v2953 = vmax.f32 %v2921, 0.0
      %v2954 = vmax.f32 %v2922, 0.0
      %v2955 = vmax.f32 %v2923, 0.0
      %v2956 = vmax.f32 %v2924, 0.0
      %v2957 = vmax.f32 %v2925, 0.0
      %v2958 = vmax.f32 %v2926, 0.0
      %v2959 = vmax.f32 %v2927, 0.0
      %v2960 = vmax.f32 %v2928, 0.0
      %v2961 = vmax.f32 %v2929, 0.0
      %v2962 = vmax.f32 %v2930, 0.0
      %v2963 = vmax.f32 %v2931, 0.0
      %v2964 = vmax.f32 %v2932, 0.0
      %v2965 = vmax.f32 %v2933, 0.0
      %v2966 = vmax.f32 %v2934, 0.0
      %2967 = vst.msk [vmem:[%s1899 + $0x1] sm:$0xff] %vm1900, %v2935
      %2968 = vst.msk [vmem:[%s1899 + $0x9] sm:$0x7f] %vm1902, %v2936
      %2969 = vst.msk [vmem:[%s1899 + $0x11] sm:$0xff] %vm1900, %v2937
      %2970 = vst.msk [vmem:[%s1899 + $0x19] sm:$0x7f] %vm1902, %v2938
      %2971 = vst.msk [vmem:[%s1899 + $0x21] sm:$0xff] %vm1900, %v2939
      %2972 = vst.msk [vmem:[%s1899 + $0x29] sm:$0x7f] %vm1902, %v2940
      %2973 = vst.msk [vmem:[%s1899 + $0x31] sm:$0xff] %vm1900, %v2941
      %2974 = vst.msk [vmem:[%s1899 + $0x39] sm:$0x7f] %vm1902, %v2942
      %2975 = vst.msk [vmem:[%s1899 + $0x41] sm:$0xff] %vm1900, %v2943
      %2976 = vst.msk [vmem:[%s1899 + $0x49] sm:$0x7f] %vm1902, %v2944
      %2977 = vst.msk [vmem:[%s1899 + $0x51] sm:$0xff] %vm1900, %v2945
      %2978 = vst.msk [vmem:[%s1899 + $0x59] sm:$0x7f] %vm1902, %v2946
      %2979 = vst.msk [vmem:[%s1899 + $0x61] sm:$0xff] %vm1900, %v2947
      %2980 = vst.msk [vmem:[%s1899 + $0x69] sm:$0x7f] %vm1902, %v2948
      %2981 = vst.msk [vmem:[%s1899 + $0x71] sm:$0xff] %vm1900, %v2949
      %2982 = vst.msk [vmem:[%s1899 + $0x79] sm:$0x7f] %vm1902, %v2950
      %2983 = vst.msk [vmem:[%s1899 + $0x81] sm:$0xff] %vm1900, %v2951
      %2984 = vst.msk [vmem:[%s1899 + $0x89] sm:$0x7f] %vm1902, %v2952
      %2985 = vst.msk [vmem:[%s1899 + $0x91] sm:$0xff] %vm1900, %v2953
      %2986 = vst.msk [vmem:[%s1899 + $0x99] sm:$0x7f] %vm1902, %v2954
      %2987 = vst.msk [vmem:[%s1899 + $0xa1] sm:$0xff] %vm1900, %v2955
      %2988 = vst.msk [vmem:[%s1899 + $0xa9] sm:$0x7f] %vm1902, %v2956
      %2989 = vst.msk [vmem:[%s1899 + $0xb1] sm:$0xff] %vm1900, %v2957
      %2990 = vst.msk [vmem:[%s1899 + $0xb9] sm:$0x7f] %vm1902, %v2958
      %2991 = vst.msk [vmem:[%s1899 + $0xc1] sm:$0xff] %vm1900, %v2959
      %2992 = vst.msk [vmem:[%s1899 + $0xc9] sm:$0x7f] %vm1902, %v2960
      %2993 = vst.msk [vmem:[%s1899 + $0xd1] sm:$0xff] %vm1900, %v2961
      %2994 = vst.msk [vmem:[%s1899 + $0xd9] sm:$0x7f] %vm1902, %v2962
      %2995 = vst.msk [vmem:[%s1899 + $0xe1] sm:$0xff] %vm1900, %v2963
      %2996 = vst.msk [vmem:[%s1899 + $0xe9] sm:$0x7f] %vm1902, %v2964
      %2997 = vst.msk [vmem:[%s1899 + $0xf1] sm:$0xff] %vm1900, %v2965
      %2998 = vst.msk [vmem:[%s1899 + $0xf9] sm:$0x7f] %vm1902, %v2966
      %3031 = vrot.lane.b32.xlu0 %v2935, 32
      %v3032 = vpop.permute.xlu0 %3031
      %3033 = vrot.lane.b32.xlu0 %v2936, 32
      %v3034 = vpop.permute.xlu0 %3033
      %3035 = vrot.lane.b32.xlu0 %v2937, 32
      %v3036 = vpop.permute.xlu0 %3035
      %3037 = vrot.lane.b32.xlu0 %v2938, 32
      %v3038 = vpop.permute.xlu0 %3037
      %3039 = vrot.lane.b32.xlu0 %v2939, 32
      %v3040 = vpop.permute.xlu0 %3039
      %3041 = vrot.lane.b32.xlu0 %v2940, 32
      %v3042 = vpop.permute.xlu0 %3041
      %3043 = vrot.lane.b32.xlu0 %v2941, 32
      %v3044 = vpop.permute.xlu0 %3043
      %3045 = vrot.lane.b32.xlu0 %v2942, 32
      %v3046 = vpop.permute.xlu0 %3045
      %3047 = vrot.lane.b32.xlu0 %v2943, 32
      %v3048 = vpop.permute.xlu0 %3047
      %3049 = vrot.lane.b32.xlu0 %v2944, 32
      %v3050 = vpop.permute.xlu0 %3049
      %3051 = vrot.lane.b32.xlu0 %v2945, 32
      %v3052 = vpop.permute.xlu0 %3051
      %3053 = vrot.lane.b32.xlu0 %v2946, 32
      %v3054 = vpop.permute.xlu0 %3053
      %3055 = vrot.lane.b32.xlu0 %v2947, 32
      %v3056 = vpop.permute.xlu0 %3055
      %3057 = vrot.lane.b32.xlu0 %v2948, 32
      %v3058 = vpop.permute.xlu0 %3057
      %3059 = vrot.lane.b32.xlu0 %v2949, 32
      %v3060 = vpop.permute.xlu0 %3059
      %3061 = vrot.lane.b32.xlu0 %v2950, 32
      %v3062 = vpop.permute.xlu0 %3061
      %3063 = vrot.lane.b32.xlu0 %v2951, 32
      %v3064 = vpop.permute.xlu0 %3063
      %3065 = vrot.lane.b32.xlu0 %v2952, 32
      %v3066 = vpop.permute.xlu0 %3065
      %3067 = vrot.lane.b32.xlu0 %v2953, 32
      %v3068 = vpop.permute.xlu0 %3067
      %3069 = vrot.lane.b32.xlu0 %v2954, 32
      %v3070 = vpop.permute.xlu0 %3069
      %3071 = vrot.lane.b32.xlu0 %v2955, 32
      %v3072 = vpop.permute.xlu0 %3071
      %3073 = vrot.lane.b32.xlu0 %v2956, 32
      %v3074 = vpop.permute.xlu0 %3073
      %3075 = vrot.lane.b32.xlu0 %v2957, 32
      %v3076 = vpop.permute.xlu0 %3075
      %3077 = vrot.lane.b32.xlu0 %v2958, 32
      %v3078 = vpop.permute.xlu0 %3077
      %3079 = vrot.lane.b32.xlu0 %v2959, 32
      %v3080 = vpop.permute.xlu0 %3079
      %3081 = vrot.lane.b32.xlu0 %v2960, 32
      %v3082 = vpop.permute.xlu0 %3081
      %3083 = vrot.lane.b32.xlu0 %v2961, 32
      %v3084 = vpop.permute.xlu0 %3083
      %3085 = vrot.lane.b32.xlu0 %v2962, 32
      %v3086 = vpop.permute.xlu0 %3085
      %3087 = vrot.lane.b32.xlu0 %v2963, 32
      %v3088 = vpop.permute.xlu0 %3087
      %3089 = vrot.lane.b32.xlu0 %v2964, 32
      %v3090 = vpop.permute.xlu0 %3089
      %3091 = vrot.lane.b32.xlu0 %v2965, 32
      %v3092 = vpop.permute.xlu0 %3091
      %3093 = vrot.lane.b32.xlu0 %v2966, 32
      %v3094 = vpop.permute.xlu0 %3093
      %3127 = vst.msk [vmem:[%s1899] sm:$0xff] %vm2062, %v3032
      %3128 = vst.msk [vmem:[%s1899 + $0x8] sm:$0xff] %vm2062, %v3034
      %3129 = vst.msk [vmem:[%s1899 + $0x10] sm:$0xff] %vm2062, %v3036
      %3130 = vst.msk [vmem:[%s1899 + $0x18] sm:$0xff] %vm2062, %v3038
      %3131 = vst.msk [vmem:[%s1899 + $0x20] sm:$0xff] %vm2062, %v3040
      %3132 = vst.msk [vmem:[%s1899 + $0x28] sm:$0xff] %vm2062, %v3042
      %3133 = vst.msk [vmem:[%s1899 + $0x30] sm:$0xff] %vm2062, %v3044
      %3134 = vst.msk [vmem:[%s1899 + $0x38] sm:$0xff] %vm2062, %v3046
      %3135 = vst.msk [vmem:[%s1899 + $0x40] sm:$0xff] %vm2062, %v3048
      %3136 = vst.msk [vmem:[%s1899 + $0x48] sm:$0xff] %vm2062, %v3050
      %3137 = vst.msk [vmem:[%s1899 + $0x50] sm:$0xff] %vm2062, %v3052
      %3138 = vst.msk [vmem:[%s1899 + $0x58] sm:$0xff] %vm2062, %v3054
      %3139 = vst.msk [vmem:[%s1899 + $0x60] sm:$0xff] %vm2062, %v3056
      %3140 = vst.msk [vmem:[%s1899 + $0x68] sm:$0xff] %vm2062, %v3058
      %3141 = vst.msk [vmem:[%s1899 + $0x70] sm:$0xff] %vm2062, %v3060
      %3142 = vst.msk [vmem:[%s1899 + $0x78] sm:$0xff] %vm2062, %v3062
      %3143 = vst.msk [vmem:[%s1899 + $0x80] sm:$0xff] %vm2062, %v3064
      %3144 = vst.msk [vmem:[%s1899 + $0x88] sm:$0xff] %vm2062, %v3066
      %3145 = vst.msk [vmem:[%s1899 + $0x90] sm:$0xff] %vm2062, %v3068
      %3146 = vst.msk [vmem:[%s1899 + $0x98] sm:$0xff] %vm2062, %v3070
      %3147 = vst.msk [vmem:[%s1899 + $0xa0] sm:$0xff] %vm2062, %v3072
      %3148 = vst.msk [vmem:[%s1899 + $0xa8] sm:$0xff] %vm2062, %v3074
      %3149 = vst.msk [vmem:[%s1899 + $0xb0] sm:$0xff] %vm2062, %v3076
      %3150 = vst.msk [vmem:[%s1899 + $0xb8] sm:$0xff] %vm2062, %v3078
      %3151 = vst.msk [vmem:[%s1899 + $0xc0] sm:$0xff] %vm2062, %v3080
      %3152 = vst.msk [vmem:[%s1899 + $0xc8] sm:$0xff] %vm2062, %v3082
      %3153 = vst.msk [vmem:[%s1899 + $0xd0] sm:$0xff] %vm2062, %v3084
      %3154 = vst.msk [vmem:[%s1899 + $0xd8] sm:$0xff] %vm2062, %v3086
      %3155 = vst.msk [vmem:[%s1899 + $0xe0] sm:$0xff] %vm2062, %v3088
      %3156 = vst.msk [vmem:[%s1899 + $0xe8] sm:$0xff] %vm2062, %v3090
      %3157 = vst.msk [vmem:[%s1899 + $0xf0] sm:$0xff] %vm2062, %v3092
      %3158 = vst.msk [vmem:[%s1899 + $0xf8] sm:$0xff] %vm2062, %v3094
      %3159 = vrot.lane.b32.xlu0 %v2935, 64
      %v3160 = vpop.permute.xlu0 %3159
      %3161 = vrot.lane.b32.xlu0 %v2936, 64
      %v3162 = vpop.permute.xlu0 %3161
      %3163 = vrot.lane.b32.xlu0 %v2937, 64
      %v3164 = vpop.permute.xlu0 %3163
      %3165 = vrot.lane.b32.xlu0 %v2938, 64
      %v3166 = vpop.permute.xlu0 %3165
      %3167 = vrot.lane.b32.xlu0 %v2939, 64
      %v3168 = vpop.permute.xlu0 %3167
      %3169 = vrot.lane.b32.xlu0 %v2940, 64
      %v3170 = vpop.permute.xlu0 %3169
      %3171 = vrot.lane.b32.xlu0 %v2941, 64
      %v3172 = vpop.permute.xlu0 %3171
      %3173 = vrot.lane.b32.xlu0 %v2942, 64
      %v3174 = vpop.permute.xlu0 %3173
      %3175 = vrot.lane.b32.xlu0 %v2943, 64
      %v3176 = vpop.permute.xlu0 %3175
      %3177 = vrot.lane.b32.xlu0 %v2944, 64
      %v3178 = vpop.permute.xlu0 %3177
      %3179 = vrot.lane.b32.xlu0 %v2945, 64
      %v3180 = vpop.permute.xlu0 %3179
      %3181 = vrot.lane.b32.xlu0 %v2946, 64
      %v3182 = vpop.permute.xlu0 %3181
      %3183 = vrot.lane.b32.xlu0 %v2947, 64
      %v3184 = vpop.permute.xlu0 %3183
      %3185 = vrot.lane.b32.xlu0 %v2948, 64
      %v3186 = vpop.permute.xlu0 %3185
      %3187 = vrot.lane.b32.xlu0 %v2949, 64
      %v3188 = vpop.permute.xlu0 %3187
      %3189 = vrot.lane.b32.xlu0 %v2950, 64
      %v3190 = vpop.permute.xlu0 %3189
      %3191 = vrot.lane.b32.xlu0 %v2951, 64
      %v3192 = vpop.permute.xlu0 %3191
      %3193 = vrot.lane.b32.xlu0 %v2952, 64
      %v3194 = vpop.permute.xlu0 %3193
      %3195 = vrot.lane.b32.xlu0 %v2953, 64
      %v3196 = vpop.permute.xlu0 %3195
      %3197 = vrot.lane.b32.xlu0 %v2954, 64
      %v3198 = vpop.permute.xlu0 %3197
      %3199 = vrot.lane.b32.xlu0 %v2955, 64
      %v3200 = vpop.permute.xlu0 %3199
      %3201 = vrot.lane.b32.xlu0 %v2956, 64
      %v3202 = vpop.permute.xlu0 %3201
      %3203 = vrot.lane.b32.xlu0 %v2957, 64
      %v3204 = vpop.permute.xlu0 %3203
      %3205 = vrot.lane.b32.xlu0 %v2958, 64
      %v3206 = vpop.permute.xlu0 %3205
      %3207 = vrot.lane.b32.xlu0 %v2959, 64
      %v3208 = vpop.permute.xlu0 %3207
      %3209 = vrot.lane.b32.xlu0 %v2960, 64
      %v3210 = vpop.permute.xlu0 %3209
      %3211 = vrot.lane.b32.xlu0 %v2961, 64
      %v3212 = vpop.permute.xlu0 %3211
      %3213 = vrot.lane.b32.xlu0 %v2962, 64
      %v3214 = vpop.permute.xlu0 %3213
      %3215 = vrot.lane.b32.xlu0 %v2963, 64
      %v3216 = vpop.permute.xlu0 %3215
      %3217 = vrot.lane.b32.xlu0 %v2964, 64
      %v3218 = vpop.permute.xlu0 %3217
      %3219 = vrot.lane.b32.xlu0 %v2965, 64
      %v3220 = vpop.permute.xlu0 %3219
      %3221 = vrot.lane.b32.xlu0 %v2966, 64
      %v3222 = vpop.permute.xlu0 %3221
      %3255 = vst.msk [vmem:[%s1899 - $0x1] sm:$0xfe] %vm2191, %v3160
      %3256 = vst.msk [vmem:[%s1899 + $0x7] sm:$0xff] %vm2193, %v3162
      %3257 = vst.msk [vmem:[%s1899 + $0xf] sm:$0xfe] %vm2191, %v3164
      %3258 = vst.msk [vmem:[%s1899 + $0x17] sm:$0xff] %vm2193, %v3166
      %3259 = vst.msk [vmem:[%s1899 + $0x1f] sm:$0xfe] %vm2191, %v3168
      %3260 = vst.msk [vmem:[%s1899 + $0x27] sm:$0xff] %vm2193, %v3170
      %3261 = vst.msk [vmem:[%s1899 + $0x2f] sm:$0xfe] %vm2191, %v3172
      %3262 = vst.msk [vmem:[%s1899 + $0x37] sm:$0xff] %vm2193, %v3174
      %3263 = vst.msk [vmem:[%s1899 + $0x3f] sm:$0xfe] %vm2191, %v3176
      %3264 = vst.msk [vmem:[%s1899 + $0x47] sm:$0xff] %vm2193, %v3178
      %3265 = vst.msk [vmem:[%s1899 + $0x4f] sm:$0xfe] %vm2191, %v3180
      %3266 = vst.msk [vmem:[%s1899 + $0x57] sm:$0xff] %vm2193, %v3182
      %3267 = vst.msk [vmem:[%s1899 + $0x5f] sm:$0xfe] %vm2191, %v3184
      %3268 = vst.msk [vmem:[%s1899 + $0x67] sm:$0xff] %vm2193, %v3186
      %3269 = vst.msk [vmem:[%s1899 + $0x6f] sm:$0xfe] %vm2191, %v3188
      %3270 = vst.msk [vmem:[%s1899 + $0x77] sm:$0xff] %vm2193, %v3190
      %3271 = vst.msk [vmem:[%s1899 + $0x7f] sm:$0xfe] %vm2191, %v3192
      %3272 = vst.msk [vmem:[%s1899 + $0x87] sm:$0xff] %vm2193, %v3194
      %3273 = vst.msk [vmem:[%s1899 + $0x8f] sm:$0xfe] %vm2191, %v3196
      %3274 = vst.msk [vmem:[%s1899 + $0x97] sm:$0xff] %vm2193, %v3198
      %3275 = vst.msk [vmem:[%s1899 + $0x9f] sm:$0xfe] %vm2191, %v3200
      %3276 = vst.msk [vmem:[%s1899 + $0xa7] sm:$0xff] %vm2193, %v3202
      %3277 = vst.msk [vmem:[%s1899 + $0xaf] sm:$0xfe] %vm2191, %v3204
      %3278 = vst.msk [vmem:[%s1899 + $0xb7] sm:$0xff] %vm2193, %v3206
      %3279 = vst.msk [vmem:[%s1899 + $0xbf] sm:$0xfe] %vm2191, %v3208
      %3280 = vst.msk [vmem:[%s1899 + $0xc7] sm:$0xff] %vm2193, %v3210
      %3281 = vst.msk [vmem:[%s1899 + $0xcf] sm:$0xfe] %vm2191, %v3212
      %3282 = vst.msk [vmem:[%s1899 + $0xd7] sm:$0xff] %vm2193, %v3214
      %3283 = vst.msk [vmem:[%s1899 + $0xdf] sm:$0xfe] %vm2191, %v3216
      %3284 = vst.msk [vmem:[%s1899 + $0xe7] sm:$0xff] %vm2193, %v3218
      %3285 = vst.msk [vmem:[%s1899 + $0xef] sm:$0xfe] %vm2191, %v3220
      %3286 = vst.msk [vmem:[%s1899 + $0xf7] sm:$0xff] %vm2193, %v3222
      %v3287 = vld [vmem:[#allocation2] sm:$0xff]
      %v3288 = vld [vmem:[#allocation2 + $0x8] sm:$0xff]
      %v3289 = vld [vmem:[#allocation2 + $0x10] sm:$0xff]
      %v3290 = vld [vmem:[#allocation2 + $0x18] sm:$0xff]
      %v3291 = vld [vmem:[#allocation2 + $0x20] sm:$0xff]
      %v3292 = vld [vmem:[#allocation2 + $0x28] sm:$0xff]
      %v3293 = vld [vmem:[#allocation2 + $0x30] sm:$0xff]
      %v3294 = vld [vmem:[#allocation2 + $0x38] sm:$0xff]
      %v3295 = vld [vmem:[#allocation2 + $0x40] sm:$0xff]
      %v3296 = vld [vmem:[#allocation2 + $0x48] sm:$0xff]
      %v3297 = vld [vmem:[#allocation2 + $0x50] sm:$0xff]
      %v3298 = vld [vmem:[#allocation2 + $0x58] sm:$0xff]
      %v3299 = vld [vmem:[#allocation2 + $0x60] sm:$0xff]
      %v3300 = vld [vmem:[#allocation2 + $0x68] sm:$0xff]
      %v3301 = vld [vmem:[#allocation2 + $0x70] sm:$0xff]
      %v3302 = vld [vmem:[#allocation2 + $0x78] sm:$0xff]
      %v3303 = vld [vmem:[#allocation2 + $0x80] sm:$0xff]
      %v3304 = vld [vmem:[#allocation2 + $0x88] sm:$0xff]
      %v3305 = vld [vmem:[#allocation2 + $0x90] sm:$0xff]
      %v3306 = vld [vmem:[#allocation2 + $0x98] sm:$0xff]
      %v3307 = vld [vmem:[#allocation2 + $0xa0] sm:$0xff]
      %v3308 = vld [vmem:[#allocation2 + $0xa8] sm:$0xff]
      %v3309 = vld [vmem:[#allocation2 + $0xb0] sm:$0xff]
      %v3310 = vld [vmem:[#allocation2 + $0xb8] sm:$0xff]
      %v3311 = vld [vmem:[#allocation2 + $0xc0] sm:$0xff]
      %v3312 = vld [vmem:[#allocation2 + $0xc8] sm:$0xff]
      %v3313 = vld [vmem:[#allocation2 + $0xd0] sm:$0xff]
      %v3314 = vld [vmem:[#allocation2 + $0xd8] sm:$0xff]
      %v3315 = vld [vmem:[#allocation2 + $0xe0] sm:$0xff]
      %v3316 = vld [vmem:[#allocation2 + $0xe8] sm:$0xff]
      %v3317 = vld [vmem:[#allocation2 + $0xf0] sm:$0xff]
      %v3318 = vld [vmem:[#allocation2 + $0xf8] sm:$0xff]
      %v3319 = vpack.c.bf16 %v3288, %v3287
      %v3320 = vpack.c.bf16 %v3290, %v3289
      %v3321 = vpack.c.bf16 %v3292, %v3291
      %v3322 = vpack.c.bf16 %v3294, %v3293
      %v3323 = vpack.c.bf16 %v3296, %v3295
      %v3324 = vpack.c.bf16 %v3298, %v3297
      %v3325 = vpack.c.bf16 %v3300, %v3299
      %v3326 = vpack.c.bf16 %v3302, %v3301
      %v3327 = vpack.c.bf16 %v3304, %v3303
      %v3328 = vpack.c.bf16 %v3306, %v3305
      %v3329 = vpack.c.bf16 %v3308, %v3307
      %v3330 = vpack.c.bf16 %v3310, %v3309
      %v3331 = vpack.c.bf16 %v3312, %v3311
      %v3332 = vpack.c.bf16 %v3314, %v3313
      %v3333 = vpack.c.bf16 %v3316, %v3315
      %v3334 = vpack.c.bf16 %v3318, %v3317
      %v3335 = vld [vmem:[%s7] sm:$0xf]
      %v3336 = vld [vmem:[%s7 + $0x4] sm:$0xf]
      %v3337 = vld [vmem:[%s7 + $0x8] sm:$0xf]
      %v3338 = vld [vmem:[%s7 + $0xc] sm:$0xf]
      %v3339 = vld [vmem:[%s7 + $0x10] sm:$0xf]
      %v3340 = vld [vmem:[%s7 + $0x14] sm:$0xf]
      %v3341 = vld [vmem:[%s7 + $0x18] sm:$0xf]
      %v3342 = vld [vmem:[%s7 + $0x1c] sm:$0xf]
      %v3343 = vld [vmem:[%s7 + $0x20] sm:$0xf]
      %v3344 = vld [vmem:[%s7 + $0x24] sm:$0xf]
      %v3345 = vld [vmem:[%s7 + $0x28] sm:$0xf]
      %v3346 = vld [vmem:[%s7 + $0x2c] sm:$0xf]
      %v3347 = vld [vmem:[%s7 + $0x30] sm:$0xf]
      %v3348 = vld [vmem:[%s7 + $0x34] sm:$0xf]
      %v3349 = vld [vmem:[%s7 + $0x38] sm:$0xf]
      %v3350 = vld [vmem:[%s7 + $0x3c] sm:$0xf]
      %v3351 = vld [vmem:[%s1899] sm:$0xff]
      %v3352 = vld [vmem:[%s1899 + $0x8] sm:$0xff]
      %v3353 = vld [vmem:[%s1899 + $0x10] sm:$0xff]
      %v3354 = vld [vmem:[%s1899 + $0x18] sm:$0xff]
      %v3355 = vld [vmem:[%s1899 + $0x20] sm:$0xff]
      %v3356 = vld [vmem:[%s1899 + $0x28] sm:$0xff]
      %v3357 = vld [vmem:[%s1899 + $0x30] sm:$0xff]
      %v3358 = vld [vmem:[%s1899 + $0x38] sm:$0xff]
      %v3359 = vld [vmem:[%s1899 + $0x40] sm:$0xff]
      %v3360 = vld [vmem:[%s1899 + $0x48] sm:$0xff]
      %v3361 = vld [vmem:[%s1899 + $0x50] sm:$0xff]
      %v3362 = vld [vmem:[%s1899 + $0x58] sm:$0xff]
      %v3363 = vld [vmem:[%s1899 + $0x60] sm:$0xff]
      %v3364 = vld [vmem:[%s1899 + $0x68] sm:$0xff]
      %v3365 = vld [vmem:[%s1899 + $0x70] sm:$0xff]
      %v3366 = vld [vmem:[%s1899 + $0x78] sm:$0xff]
      %v3367 = vld [vmem:[%s1899 + $0x80] sm:$0xff]
      %v3368 = vld [vmem:[%s1899 + $0x88] sm:$0xff]
      %v3369 = vld [vmem:[%s1899 + $0x90] sm:$0xff]
      %v3370 = vld [vmem:[%s1899 + $0x98] sm:$0xff]
      %v3371 = vld [vmem:[%s1899 + $0xa0] sm:$0xff]
      %v3372 = vld [vmem:[%s1899 + $0xa8] sm:$0xff]
      %v3373 = vld [vmem:[%s1899 + $0xb0] sm:$0xff]
      %v3374 = vld [vmem:[%s1899 + $0xb8] sm:$0xff]
      %v3375 = vld [vmem:[%s1899 + $0xc0] sm:$0xff]
      %v3376 = vld [vmem:[%s1899 + $0xc8] sm:$0xff]
      %v3377 = vld [vmem:[%s1899 + $0xd0] sm:$0xff]
      %v3378 = vld [vmem:[%s1899 + $0xd8] sm:$0xff]
      %v3379 = vld [vmem:[%s1899 + $0xe0] sm:$0xff]
      %v3380 = vld [vmem:[%s1899 + $0xe8] sm:$0xff]
      %v3381 = vld [vmem:[%s1899 + $0xf0] sm:$0xff]
      %v3382 = vld [vmem:[%s1899 + $0xf8] sm:$0xff]
      %v3383 = vpack.c.bf16 %v3352, %v3351
      %v3384 = vpack.c.bf16 %v3354, %v3353
      %v3385 = vpack.c.bf16 %v3356, %v3355
      %v3386 = vpack.c.bf16 %v3358, %v3357
      %v3387 = vpack.c.bf16 %v3360, %v3359
      %v3388 = vpack.c.bf16 %v3362, %v3361
      %v3389 = vpack.c.bf16 %v3364, %v3363
      %v3390 = vpack.c.bf16 %v3366, %v3365
      %v3391 = vpack.c.bf16 %v3368, %v3367
      %v3392 = vpack.c.bf16 %v3370, %v3369
      %v3393 = vpack.c.bf16 %v3372, %v3371
      %v3394 = vpack.c.bf16 %v3374, %v3373
      %v3395 = vpack.c.bf16 %v3376, %v3375
      %v3396 = vpack.c.bf16 %v3378, %v3377
      %v3397 = vpack.c.bf16 %v3380, %v3379
      %v3398 = vpack.c.bf16 %v3382, %v3381
      %s3399 = scalar_lea.vmem %s7, 64
      %v3400 = vld [vmem:[%s3399] sm:$0xf]
      %v3401 = vld [vmem:[%s3399 + $0x4] sm:$0xf]
      %v3402 = vld [vmem:[%s3399 + $0x8] sm:$0xf]
      %v3403 = vld [vmem:[%s3399 + $0xc] sm:$0xf]
      %v3404 = vld [vmem:[%s3399 + $0x10] sm:$0xf]
      %v3405 = vld [vmem:[%s3399 + $0x14] sm:$0xf]
      %v3406 = vld [vmem:[%s3399 + $0x18] sm:$0xf]
      %v3407 = vld [vmem:[%s3399 + $0x1c] sm:$0xf]
      %v3408 = vld [vmem:[%s3399 + $0x20] sm:$0xf]
      %v3409 = vld [vmem:[%s3399 + $0x24] sm:$0xf]
      %v3410 = vld [vmem:[%s3399 + $0x28] sm:$0xf]
      %v3411 = vld [vmem:[%s3399 + $0x2c] sm:$0xf]
      %v3412 = vld [vmem:[%s3399 + $0x30] sm:$0xf]
      %v3413 = vld [vmem:[%s3399 + $0x34] sm:$0xf]
      %v3414 = vld [vmem:[%s3399 + $0x38] sm:$0xf]
      %v3415 = vld [vmem:[%s3399 + $0x3c] sm:$0xf]
      %v3432 = vunpack.c.l.b16 %v3400
      %v3433 = vunpack.c.l.b16 %v3401
      %v3434 = vunpack.c.l.b16 %v3402
      %v3435 = vunpack.c.l.b16 %v3403
      %v3436 = vunpack.c.l.b16 %v3404
      %v3437 = vunpack.c.l.b16 %v3405
      %v3438 = vunpack.c.l.b16 %v3406
      %v3439 = vunpack.c.l.b16 %v3407
      %v3440 = vunpack.c.l.b16 %v3408
      %v3441 = vunpack.c.l.b16 %v3409
      %v3442 = vunpack.c.l.b16 %v3410
      %v3443 = vunpack.c.l.b16 %v3411
      %v3444 = vunpack.c.l.b16 %v3412
      %v3445 = vunpack.c.l.b16 %v3413
      %v3446 = vunpack.c.l.b16 %v3414
      %v3447 = vunpack.c.l.b16 %v3415
      %v3448 = vpack.c.b16 %v3433, %v3432
      %v3449 = vpack.c.b16 %v3435, %v3434
      %v3450 = vpack.c.b16 %v3437, %v3436
      %v3451 = vpack.c.b16 %v3439, %v3438
      %v3452 = vpack.c.b16 %v3441, %v3440
      %v3453 = vpack.c.b16 %v3443, %v3442
      %v3454 = vpack.c.b16 %v3445, %v3444
      %v3455 = vpack.c.b16 %v3447, %v3446
      %3464 = vmatpush.bf16.msra.mxu0 %v3455
      %3465 = vmatpush.bf16.msra.mxu0 %v3454
      %3466 = vmatpush.bf16.msra.mxu0 %v3453
      %3467 = vmatpush.bf16.msra.mxu0 %v3452
      %3468 = vmatpush.bf16.msra.mxu0 %v3451
      %3469 = vmatpush.bf16.msra.mxu0 %v3450
      %3470 = vmatpush.bf16.msra.mxu0 %v3449
      %3471 = vmatpush.bf16.msra.mxu0 %v3448
      %3472 = vmatmul.bf16.gmra.mxu0 %v3383
      %v3473 = vpop.f32.mrf.mxu0
      %v3474 = vadd.f32 0.0, %v3473
      %v3475 = vpop.f32.mrf.mxu0
      %v3476 = vadd.f32 0.0, %v3475
      %3477 = vmatmul.bf16.gmra.mxu0 %v3384
      %v3478 = vpop.f32.mrf.mxu0
      %v3479 = vadd.f32 0.0, %v3478
      %v3480 = vpop.f32.mrf.mxu0
      %v3481 = vadd.f32 0.0, %v3480
      %3482 = vmatmul.bf16.gmra.mxu0 %v3385
      %v3483 = vpop.f32.mrf.mxu0
      %v3484 = vadd.f32 0.0, %v3483
      %v3485 = vpop.f32.mrf.mxu0
      %v3486 = vadd.f32 0.0, %v3485
      %3487 = vmatmul.bf16.gmra.mxu0 %v3386
      %v3488 = vpop.f32.mrf.mxu0
      %v3489 = vadd.f32 0.0, %v3488
      %v3490 = vpop.f32.mrf.mxu0
      %v3491 = vadd.f32 0.0, %v3490
      %3492 = vmatmul.bf16.gmra.mxu0 %v3387
      %v3493 = vpop.f32.mrf.mxu0
      %v3494 = vadd.f32 0.0, %v3493
      %v3495 = vpop.f32.mrf.mxu0
      %v3496 = vadd.f32 0.0, %v3495
      %3497 = vmatmul.bf16.gmra.mxu0 %v3388
      %v3498 = vpop.f32.mrf.mxu0
      %v3499 = vadd.f32 0.0, %v3498
      %v3500 = vpop.f32.mrf.mxu0
      %v3501 = vadd.f32 0.0, %v3500
      %3502 = vmatmul.bf16.gmra.mxu0 %v3389
      %v3503 = vpop.f32.mrf.mxu0
      %v3504 = vadd.f32 0.0, %v3503
      %v3505 = vpop.f32.mrf.mxu0
      %v3506 = vadd.f32 0.0, %v3505
      %3507 = vmatmul.bf16.gmra.mxu0 %v3390
      %v3508 = vpop.f32.mrf.mxu0
      %v3509 = vadd.f32 0.0, %v3508
      %v3510 = vpop.f32.mrf.mxu0
      %v3511 = vadd.f32 0.0, %v3510
      %3512 = vmatmul.bf16.gmra.mxu0 %v3391
      %v3513 = vpop.f32.mrf.mxu0
      %v3514 = vadd.f32 0.0, %v3513
      %v3515 = vpop.f32.mrf.mxu0
      %v3516 = vadd.f32 0.0, %v3515
      %3517 = vmatmul.bf16.gmra.mxu0 %v3392
      %v3518 = vpop.f32.mrf.mxu0
      %v3519 = vadd.f32 0.0, %v3518
      %v3520 = vpop.f32.mrf.mxu0
      %v3521 = vadd.f32 0.0, %v3520
      %3522 = vmatmul.bf16.gmra.mxu0 %v3393
      %v3523 = vpop.f32.mrf.mxu0
      %v3524 = vadd.f32 0.0, %v3523
      %v3525 = vpop.f32.mrf.mxu0
      %v3526 = vadd.f32 0.0, %v3525
      %3527 = vmatmul.bf16.gmra.mxu0 %v3394
      %v3528 = vpop.f32.mrf.mxu0
      %v3529 = vadd.f32 0.0, %v3528
      %v3530 = vpop.f32.mrf.mxu0
      %v3531 = vadd.f32 0.0, %v3530
      %3532 = vmatmul.bf16.gmra.mxu0 %v3395
      %v3533 = vpop.f32.mrf.mxu0
      %v3534 = vadd.f32 0.0, %v3533
      %v3535 = vpop.f32.mrf.mxu0
      %v3536 = vadd.f32 0.0, %v3535
      %3537 = vmatmul.bf16.gmra.mxu0 %v3396
      %v3538 = vpop.f32.mrf.mxu0
      %v3539 = vadd.f32 0.0, %v3538
      %v3540 = vpop.f32.mrf.mxu0
      %v3541 = vadd.f32 0.0, %v3540
      %3542 = vmatmul.bf16.gmra.mxu0 %v3397
      %v3543 = vpop.f32.mrf.mxu0
      %v3544 = vadd.f32 0.0, %v3543
      %v3545 = vpop.f32.mrf.mxu0
      %v3546 = vadd.f32 0.0, %v3545
      %3547 = vmatmul.bf16.gmra.mxu0 %v3398
      %v3548 = vpop.f32.mrf.mxu0
      %v3549 = vadd.f32 0.0, %v3548
      %v3550 = vpop.f32.mrf.mxu0
      %v3551 = vadd.f32 0.0, %v3550
      %3552 = vdwg.mxu0
      %v3569 = vunpack.c.l.b16 %v3335
      %v3570 = vunpack.c.l.b16 %v3336
      %v3571 = vunpack.c.l.b16 %v3337
      %v3572 = vunpack.c.l.b16 %v3338
      %v3573 = vunpack.c.l.b16 %v3339
      %v3574 = vunpack.c.l.b16 %v3340
      %v3575 = vunpack.c.l.b16 %v3341
      %v3576 = vunpack.c.l.b16 %v3342
      %v3577 = vunpack.c.l.b16 %v3343
      %v3578 = vunpack.c.l.b16 %v3344
      %v3579 = vunpack.c.l.b16 %v3345
      %v3580 = vunpack.c.l.b16 %v3346
      %v3581 = vunpack.c.l.b16 %v3347
      %v3582 = vunpack.c.l.b16 %v3348
      %v3583 = vunpack.c.l.b16 %v3349
      %v3584 = vunpack.c.l.b16 %v3350
      %v3585 = vpack.c.b16 %v3570, %v3569
      %v3586 = vpack.c.b16 %v3572, %v3571
      %v3587 = vpack.c.b16 %v3574, %v3573
      %v3588 = vpack.c.b16 %v3576, %v3575
      %v3589 = vpack.c.b16 %v3578, %v3577
      %v3590 = vpack.c.b16 %v3580, %v3579
      %v3591 = vpack.c.b16 %v3582, %v3581
      %v3592 = vpack.c.b16 %v3584, %v3583
      %3601 = vmatpush.bf16.msra.mxu0 %v3592
      %3602 = vmatpush.bf16.msra.mxu0 %v3591
      %3603 = vmatpush.bf16.msra.mxu0 %v3590
      %3604 = vmatpush.bf16.msra.mxu0 %v3589
      %3605 = vmatpush.bf16.msra.mxu0 %v3588
      %3606 = vmatpush.bf16.msra.mxu0 %v3587
      %3607 = vmatpush.bf16.msra.mxu0 %v3586
      %3608 = vmatpush.bf16.msra.mxu0 %v3585
      %3609 = vmatmul.bf16.gmra.mxu0 %v3319
      %v3610 = vpop.f32.mrf.mxu0
      %v3611 = vadd.f32 %v3474, %v3610
      %v3612 = vpop.f32.mrf.mxu0
      %v3613 = vadd.f32 %v3476, %v3612
      %3614 = vmatmul.bf16.gmra.mxu0 %v3320
      %v3615 = vpop.f32.mrf.mxu0
      %v3616 = vadd.f32 %v3479, %v3615
      %v3617 = vpop.f32.mrf.mxu0
      %v3618 = vadd.f32 %v3481, %v3617
      %3619 = vmatmul.bf16.gmra.mxu0 %v3321
      %v3620 = vpop.f32.mrf.mxu0
      %v3621 = vadd.f32 %v3484, %v3620
      %v3622 = vpop.f32.mrf.mxu0
      %v3623 = vadd.f32 %v3486, %v3622
      %3624 = vmatmul.bf16.gmra.mxu0 %v3322
      %v3625 = vpop.f32.mrf.mxu0
      %v3626 = vadd.f32 %v3489, %v3625
      %v3627 = vpop.f32.mrf.mxu0
      %v3628 = vadd.f32 %v3491, %v3627
      %3629 = vmatmul.bf16.gmra.mxu0 %v3323
      %v3630 = vpop.f32.mrf.mxu0
      %v3631 = vadd.f32 %v3494, %v3630
      %v3632 = vpop.f32.mrf.mxu0
      %v3633 = vadd.f32 %v3496, %v3632
      %3634 = vmatmul.bf16.gmra.mxu0 %v3324
      %v3635 = vpop.f32.mrf.mxu0
      %v3636 = vadd.f32 %v3499, %v3635
      %v3637 = vpop.f32.mrf.mxu0
      %v3638 = vadd.f32 %v3501, %v3637
      %3639 = vmatmul.bf16.gmra.mxu0 %v3325
      %v3640 = vpop.f32.mrf.mxu0
      %v3641 = vadd.f32 %v3504, %v3640
      %v3642 = vpop.f32.mrf.mxu0
      %v3643 = vadd.f32 %v3506, %v3642
      %3644 = vmatmul.bf16.gmra.mxu0 %v3326
      %v3645 = vpop.f32.mrf.mxu0
      %v3646 = vadd.f32 %v3509, %v3645
      %v3647 = vpop.f32.mrf.mxu0
      %v3648 = vadd.f32 %v3511, %v3647
      %3649 = vmatmul.bf16.gmra.mxu0 %v3327
      %v3650 = vpop.f32.mrf.mxu0
      %v3651 = vadd.f32 %v3514, %v3650
      %v3652 = vpop.f32.mrf.mxu0
      %v3653 = vadd.f32 %v3516, %v3652
      %3654 = vmatmul.bf16.gmra.mxu0 %v3328
      %v3655 = vpop.f32.mrf.mxu0
      %v3656 = vadd.f32 %v3519, %v3655
      %v3657 = vpop.f32.mrf.mxu0
      %v3658 = vadd.f32 %v3521, %v3657
      %3659 = vmatmul.bf16.gmra.mxu0 %v3329
      %v3660 = vpop.f32.mrf.mxu0
      %v3661 = vadd.f32 %v3524, %v3660
      %v3662 = vpop.f32.mrf.mxu0
      %v3663 = vadd.f32 %v3526, %v3662
      %3664 = vmatmul.bf16.gmra.mxu0 %v3330
      %v3665 = vpop.f32.mrf.mxu0
      %v3666 = vadd.f32 %v3529, %v3665
      %v3667 = vpop.f32.mrf.mxu0
      %v3668 = vadd.f32 %v3531, %v3667
      %3669 = vmatmul.bf16.gmra.mxu0 %v3331
      %v3670 = vpop.f32.mrf.mxu0
      %v3671 = vadd.f32 %v3534, %v3670
      %v3672 = vpop.f32.mrf.mxu0
      %v3673 = vadd.f32 %v3536, %v3672
      %3674 = vmatmul.bf16.gmra.mxu0 %v3332
      %v3675 = vpop.f32.mrf.mxu0
      %v3676 = vadd.f32 %v3539, %v3675
      %v3677 = vpop.f32.mrf.mxu0
      %v3678 = vadd.f32 %v3541, %v3677
      %3679 = vmatmul.bf16.gmra.mxu0 %v3333
      %v3680 = vpop.f32.mrf.mxu0
      %v3681 = vadd.f32 %v3544, %v3680
      %v3682 = vpop.f32.mrf.mxu0
      %v3683 = vadd.f32 %v3546, %v3682
      %3684 = vmatmul.bf16.gmra.mxu0 %v3334
      %v3685 = vpop.f32.mrf.mxu0
      %v3686 = vadd.f32 %v3549, %v3685
      %v3687 = vpop.f32.mrf.mxu0
      %v3688 = vadd.f32 %v3551, %v3687
      %3689 = vdwg.mxu0
      %v3690 = vld [vmem:[%s2628] sm:$0xff]
      %v3691 = vld [vmem:[%s2628 + $0x8] sm:$0xff]
      %v3692 = vld [vmem:[%s2628 + $0x10] sm:$0xff]
      %v3693 = vld [vmem:[%s2628 + $0x18] sm:$0xff]
      %v3694 = vld [vmem:[%s2628 + $0x20] sm:$0xff]
      %v3695 = vld [vmem:[%s2628 + $0x28] sm:$0xff]
      %v3696 = vld [vmem:[%s2628 + $0x30] sm:$0xff]
      %v3697 = vld [vmem:[%s2628 + $0x38] sm:$0xff]
      %v3698 = vld [vmem:[%s2628 + $0x40] sm:$0xff]
      %v3699 = vld [vmem:[%s2628 + $0x48] sm:$0xff]
      %v3700 = vld [vmem:[%s2628 + $0x50] sm:$0xff]
      %v3701 = vld [vmem:[%s2628 + $0x58] sm:$0xff]
      %v3702 = vld [vmem:[%s2628 + $0x60] sm:$0xff]
      %v3703 = vld [vmem:[%s2628 + $0x68] sm:$0xff]
      %v3704 = vld [vmem:[%s2628 + $0x70] sm:$0xff]
      %v3705 = vld [vmem:[%s2628 + $0x78] sm:$0xff]
      %v3706 = vld [vmem:[%s2628 + $0x80] sm:$0xff]
      %v3707 = vld [vmem:[%s2628 + $0x88] sm:$0xff]
      %v3708 = vld [vmem:[%s2628 + $0x90] sm:$0xff]
      %v3709 = vld [vmem:[%s2628 + $0x98] sm:$0xff]
      %v3710 = vld [vmem:[%s2628 + $0xa0] sm:$0xff]
      %v3711 = vld [vmem:[%s2628 + $0xa8] sm:$0xff]
      %v3712 = vld [vmem:[%s2628 + $0xb0] sm:$0xff]
      %v3713 = vld [vmem:[%s2628 + $0xb8] sm:$0xff]
      %v3714 = vld [vmem:[%s2628 + $0xc0] sm:$0xff]
      %v3715 = vld [vmem:[%s2628 + $0xc8] sm:$0xff]
      %v3716 = vld [vmem:[%s2628 + $0xd0] sm:$0xff]
      %v3717 = vld [vmem:[%s2628 + $0xd8] sm:$0xff]
      %v3718 = vld [vmem:[%s2628 + $0xe0] sm:$0xff]
      %v3719 = vld [vmem:[%s2628 + $0xe8] sm:$0xff]
      %v3720 = vld [vmem:[%s2628 + $0xf0] sm:$0xff]
      %v3721 = vld [vmem:[%s2628 + $0xf8] sm:$0xff]
      %v3722 = vpack.c.bf16 %v3691, %v3690
      %v3723 = vpack.c.bf16 %v3693, %v3692
      %v3724 = vpack.c.bf16 %v3695, %v3694
      %v3725 = vpack.c.bf16 %v3697, %v3696
      %v3726 = vpack.c.bf16 %v3699, %v3698
      %v3727 = vpack.c.bf16 %v3701, %v3700
      %v3728 = vpack.c.bf16 %v3703, %v3702
      %v3729 = vpack.c.bf16 %v3705, %v3704
      %v3730 = vpack.c.bf16 %v3707, %v3706
      %v3731 = vpack.c.bf16 %v3709, %v3708
      %v3732 = vpack.c.bf16 %v3711, %v3710
      %v3733 = vpack.c.bf16 %v3713, %v3712
      %v3734 = vpack.c.bf16 %v3715, %v3714
      %v3735 = vpack.c.bf16 %v3717, %v3716
      %v3736 = vpack.c.bf16 %v3719, %v3718
      %v3737 = vpack.c.bf16 %v3721, %v3720
      %s3738 = scalar_lea.vmem %s7, 128
      %v3739 = vld [vmem:[%s3738] sm:$0xf]
      %v3740 = vld [vmem:[%s3738 + $0x4] sm:$0xf]
      %v3741 = vld [vmem:[%s3738 + $0x8] sm:$0xf]
      %v3742 = vld [vmem:[%s3738 + $0xc] sm:$0xf]
      %v3743 = vld [vmem:[%s3738 + $0x10] sm:$0xf]
      %v3744 = vld [vmem:[%s3738 + $0x14] sm:$0xf]
      %v3745 = vld [vmem:[%s3738 + $0x18] sm:$0xf]
      %v3746 = vld [vmem:[%s3738 + $0x1c] sm:$0xf]
      %v3747 = vld [vmem:[%s3738 + $0x20] sm:$0xf]
      %v3748 = vld [vmem:[%s3738 + $0x24] sm:$0xf]
      %v3749 = vld [vmem:[%s3738 + $0x28] sm:$0xf]
      %v3750 = vld [vmem:[%s3738 + $0x2c] sm:$0xf]
      %v3751 = vld [vmem:[%s3738 + $0x30] sm:$0xf]
      %v3752 = vld [vmem:[%s3738 + $0x34] sm:$0xf]
      %v3753 = vld [vmem:[%s3738 + $0x38] sm:$0xf]
      %v3754 = vld [vmem:[%s3738 + $0x3c] sm:$0xf]
      %v3771 = vunpack.c.l.b16 %v3739
      %v3772 = vunpack.c.l.b16 %v3740
      %v3773 = vunpack.c.l.b16 %v3741
      %v3774 = vunpack.c.l.b16 %v3742
      %v3775 = vunpack.c.l.b16 %v3743
      %v3776 = vunpack.c.l.b16 %v3744
      %v3777 = vunpack.c.l.b16 %v3745
      %v3778 = vunpack.c.l.b16 %v3746
      %v3779 = vunpack.c.l.b16 %v3747
      %v3780 = vunpack.c.l.b16 %v3748
      %v3781 = vunpack.c.l.b16 %v3749
      %v3782 = vunpack.c.l.b16 %v3750
      %v3783 = vunpack.c.l.b16 %v3751
      %v3784 = vunpack.c.l.b16 %v3752
      %v3785 = vunpack.c.l.b16 %v3753
      %v3786 = vunpack.c.l.b16 %v3754
      %v3787 = vpack.c.b16 %v3772, %v3771
      %v3788 = vpack.c.b16 %v3774, %v3773
      %v3789 = vpack.c.b16 %v3776, %v3775
      %v3790 = vpack.c.b16 %v3778, %v3777
      %v3791 = vpack.c.b16 %v3780, %v3779
      %v3792 = vpack.c.b16 %v3782, %v3781
      %v3793 = vpack.c.b16 %v3784, %v3783
      %v3794 = vpack.c.b16 %v3786, %v3785
      %3803 = vmatpush.bf16.msra.mxu0 %v3794
      %3804 = vmatpush.bf16.msra.mxu0 %v3793
      %3805 = vmatpush.bf16.msra.mxu0 %v3792
      %3806 = vmatpush.bf16.msra.mxu0 %v3791
      %3807 = vmatpush.bf16.msra.mxu0 %v3790
      %3808 = vmatpush.bf16.msra.mxu0 %v3789
      %3809 = vmatpush.bf16.msra.mxu0 %v3788
      %3810 = vmatpush.bf16.msra.mxu0 %v3787
      %3811 = vmatmul.bf16.gmra.mxu0 %v3722
      %v3812 = vpop.f32.mrf.mxu0
      %v3813 = vadd.f32 0.0, %v3812
      %v3814 = vpop.f32.mrf.mxu0
      %v3815 = vadd.f32 0.0, %v3814
      %3816 = vmatmul.bf16.gmra.mxu0 %v3723
      %v3817 = vpop.f32.mrf.mxu0
      %v3818 = vadd.f32 0.0, %v3817
      %v3819 = vpop.f32.mrf.mxu0
      %v3820 = vadd.f32 0.0, %v3819
      %3821 = vmatmul.bf16.gmra.mxu0 %v3724
      %v3822 = vpop.f32.mrf.mxu0
      %v3823 = vadd.f32 0.0, %v3822
      %v3824 = vpop.f32.mrf.mxu0
      %v3825 = vadd.f32 0.0, %v3824
      %3826 = vmatmul.bf16.gmra.mxu0 %v3725
      %v3827 = vpop.f32.mrf.mxu0
      %v3828 = vadd.f32 0.0, %v3827
      %v3829 = vpop.f32.mrf.mxu0
      %v3830 = vadd.f32 0.0, %v3829
      %3831 = vmatmul.bf16.gmra.mxu0 %v3726
      %v3832 = vpop.f32.mrf.mxu0
      %v3833 = vadd.f32 0.0, %v3832
      %v3834 = vpop.f32.mrf.mxu0
      %v3835 = vadd.f32 0.0, %v3834
      %3836 = vmatmul.bf16.gmra.mxu0 %v3727
      %v3837 = vpop.f32.mrf.mxu0
      %v3838 = vadd.f32 0.0, %v3837
      %v3839 = vpop.f32.mrf.mxu0
      %v3840 = vadd.f32 0.0, %v3839
      %3841 = vmatmul.bf16.gmra.mxu0 %v3728
      %v3842 = vpop.f32.mrf.mxu0
      %v3843 = vadd.f32 0.0, %v3842
      %v3844 = vpop.f32.mrf.mxu0
      %v3845 = vadd.f32 0.0, %v3844
      %3846 = vmatmul.bf16.gmra.mxu0 %v3729
      %v3847 = vpop.f32.mrf.mxu0
      %v3848 = vadd.f32 0.0, %v3847
      %v3849 = vpop.f32.mrf.mxu0
      %v3850 = vadd.f32 0.0, %v3849
      %3851 = vmatmul.bf16.gmra.mxu0 %v3730
      %v3852 = vpop.f32.mrf.mxu0
      %v3853 = vadd.f32 0.0, %v3852
      %v3854 = vpop.f32.mrf.mxu0
      %v3855 = vadd.f32 0.0, %v3854
      %3856 = vmatmul.bf16.gmra.mxu0 %v3731
      %v3857 = vpop.f32.mrf.mxu0
      %v3858 = vadd.f32 0.0, %v3857
      %v3859 = vpop.f32.mrf.mxu0
      %v3860 = vadd.f32 0.0, %v3859
      %3861 = vmatmul.bf16.gmra.mxu0 %v3732
      %v3862 = vpop.f32.mrf.mxu0
      %v3863 = vadd.f32 0.0, %v3862
      %v3864 = vpop.f32.mrf.mxu0
      %v3865 = vadd.f32 0.0, %v3864
      %3866 = vmatmul.bf16.gmra.mxu0 %v3733
      %v3867 = vpop.f32.mrf.mxu0
      %v3868 = vadd.f32 0.0, %v3867
      %v3869 = vpop.f32.mrf.mxu0
      %v3870 = vadd.f32 0.0, %v3869
      %3871 = vmatmul.bf16.gmra.mxu0 %v3734
      %v3872 = vpop.f32.mrf.mxu0
      %v3873 = vadd.f32 0.0, %v3872
      %v3874 = vpop.f32.mrf.mxu0
      %v3875 = vadd.f32 0.0, %v3874
      %3876 = vmatmul.bf16.gmra.mxu0 %v3735
      %v3877 = vpop.f32.mrf.mxu0
      %v3878 = vadd.f32 0.0, %v3877
      %v3879 = vpop.f32.mrf.mxu0
      %v3880 = vadd.f32 0.0, %v3879
      %3881 = vmatmul.bf16.gmra.mxu0 %v3736
      %v3882 = vpop.f32.mrf.mxu0
      %v3883 = vadd.f32 0.0, %v3882
      %v3884 = vpop.f32.mrf.mxu0
      %v3885 = vadd.f32 0.0, %v3884
      %3886 = vmatmul.bf16.gmra.mxu0 %v3737
      %v3887 = vpop.f32.mrf.mxu0
      %v3888 = vadd.f32 0.0, %v3887
      %v3889 = vpop.f32.mrf.mxu0
      %v3890 = vadd.f32 0.0, %v3889
      %3891 = vdwg.mxu0
      %v3892 = vadd.f32 %v3611, %v3813
      %v3893 = vadd.f32 %v3613, %v3815
      %v3894 = vadd.f32 %v3616, %v3818
      %v3895 = vadd.f32 %v3618, %v3820
      %v3896 = vadd.f32 %v3621, %v3823
      %v3897 = vadd.f32 %v3623, %v3825
      %v3898 = vadd.f32 %v3626, %v3828
      %v3899 = vadd.f32 %v3628, %v3830
      %v3900 = vadd.f32 %v3631, %v3833
      %v3901 = vadd.f32 %v3633, %v3835
      %v3902 = vadd.f32 %v3636, %v3838
      %v3903 = vadd.f32 %v3638, %v3840
      %v3904 = vadd.f32 %v3641, %v3843
      %v3905 = vadd.f32 %v3643, %v3845
      %v3906 = vadd.f32 %v3646, %v3848
      %v3907 = vadd.f32 %v3648, %v3850
      %v3908 = vadd.f32 %v3651, %v3853
      %v3909 = vadd.f32 %v3653, %v3855
      %v3910 = vadd.f32 %v3656, %v3858
      %v3911 = vadd.f32 %v3658, %v3860
      %v3912 = vadd.f32 %v3661, %v3863
      %v3913 = vadd.f32 %v3663, %v3865
      %v3914 = vadd.f32 %v3666, %v3868
      %v3915 = vadd.f32 %v3668, %v3870
      %v3916 = vadd.f32 %v3671, %v3873
      %v3917 = vadd.f32 %v3673, %v3875
      %v3918 = vadd.f32 %v3676, %v3878
      %v3919 = vadd.f32 %v3678, %v3880
      %v3920 = vadd.f32 %v3681, %v3883
      %v3921 = vadd.f32 %v3683, %v3885
      %v3922 = vadd.f32 %v3686, %v3888
      %v3923 = vadd.f32 %v3688, %v3890
      %v3924 = vld [vmem:[%s8] sm:$0x1]
      %v3926 = vperm.slane %v3924, 0
      %v3928 = vmul.f32 %v3892, %v3926
      %v3929 = vmul.f32 %v3893, %v3926
      %v3930 = vmul.f32 %v3894, %v3926
      %v3931 = vmul.f32 %v3895, %v3926
      %v3932 = vmul.f32 %v3896, %v3926
      %v3933 = vmul.f32 %v3897, %v3926
      %v3934 = vmul.f32 %v3898, %v3926
      %v3935 = vmul.f32 %v3899, %v3926
      %v3936 = vmul.f32 %v3900, %v3926
      %v3937 = vmul.f32 %v3901, %v3926
      %v3938 = vmul.f32 %v3902, %v3926
      %v3939 = vmul.f32 %v3903, %v3926
      %v3940 = vmul.f32 %v3904, %v3926
      %v3941 = vmul.f32 %v3905, %v3926
      %v3942 = vmul.f32 %v3906, %v3926
      %v3943 = vmul.f32 %v3907, %v3926
      %v3944 = vmul.f32 %v3908, %v3926
      %v3945 = vmul.f32 %v3909, %v3926
      %v3946 = vmul.f32 %v3910, %v3926
      %v3947 = vmul.f32 %v3911, %v3926
      %v3948 = vmul.f32 %v3912, %v3926
      %v3949 = vmul.f32 %v3913, %v3926
      %v3950 = vmul.f32 %v3914, %v3926
      %v3951 = vmul.f32 %v3915, %v3926
      %v3952 = vmul.f32 %v3916, %v3926
      %v3953 = vmul.f32 %v3917, %v3926
      %v3954 = vmul.f32 %v3918, %v3926
      %v3955 = vmul.f32 %v3919, %v3926
      %v3956 = vmul.f32 %v3920, %v3926
      %v3957 = vmul.f32 %v3921, %v3926
      %v3958 = vmul.f32 %v3922, %v3926
      %v3959 = vmul.f32 %v3923, %v3926
      %v3960 = vld [vmem:[%s9] sm:$0x1]
      %v3962 = vperm.slane %v3960, 0
      %v3964 = vadd.f32 %v3928, %v3962
      %v3965 = vadd.f32 %v3929, %v3962
      %v3966 = vadd.f32 %v3930, %v3962
      %v3967 = vadd.f32 %v3931, %v3962
      %v3968 = vadd.f32 %v3932, %v3962
      %v3969 = vadd.f32 %v3933, %v3962
      %v3970 = vadd.f32 %v3934, %v3962
      %v3971 = vadd.f32 %v3935, %v3962
      %v3972 = vadd.f32 %v3936, %v3962
      %v3973 = vadd.f32 %v3937, %v3962
      %v3974 = vadd.f32 %v3938, %v3962
      %v3975 = vadd.f32 %v3939, %v3962
      %v3976 = vadd.f32 %v3940, %v3962
      %v3977 = vadd.f32 %v3941, %v3962
      %v3978 = vadd.f32 %v3942, %v3962
      %v3979 = vadd.f32 %v3943, %v3962
      %v3980 = vadd.f32 %v3944, %v3962
      %v3981 = vadd.f32 %v3945, %v3962
      %v3982 = vadd.f32 %v3946, %v3962
      %v3983 = vadd.f32 %v3947, %v3962
      %v3984 = vadd.f32 %v3948, %v3962
      %v3985 = vadd.f32 %v3949, %v3962
      %v3986 = vadd.f32 %v3950, %v3962
      %v3987 = vadd.f32 %v3951, %v3962
      %v3988 = vadd.f32 %v3952, %v3962
      %v3989 = vadd.f32 %v3953, %v3962
      %v3990 = vadd.f32 %v3954, %v3962
      %v3991 = vadd.f32 %v3955, %v3962
      %v3992 = vadd.f32 %v3956, %v3962
      %v3993 = vadd.f32 %v3957, %v3962
      %v3994 = vadd.f32 %v3958, %v3962
      %v3995 = vadd.f32 %v3959, %v3962
      %v3996 = vmax.f32 %v3964, 0.0
      %v3997 = vmax.f32 %v3965, 0.0
      %v3998 = vmax.f32 %v3966, 0.0
      %v3999 = vmax.f32 %v3967, 0.0
      %v4000 = vmax.f32 %v3968, 0.0
      %v4001 = vmax.f32 %v3969, 0.0
      %v4002 = vmax.f32 %v3970, 0.0
      %v4003 = vmax.f32 %v3971, 0.0
      %v4004 = vmax.f32 %v3972, 0.0
      %v4005 = vmax.f32 %v3973, 0.0
      %v4006 = vmax.f32 %v3974, 0.0
      %v4007 = vmax.f32 %v3975, 0.0
      %v4008 = vmax.f32 %v3976, 0.0
      %v4009 = vmax.f32 %v3977, 0.0
      %v4010 = vmax.f32 %v3978, 0.0
      %v4011 = vmax.f32 %v3979, 0.0
      %v4012 = vmax.f32 %v3980, 0.0
      %v4013 = vmax.f32 %v3981, 0.0
      %v4014 = vmax.f32 %v3982, 0.0
      %v4015 = vmax.f32 %v3983, 0.0
      %v4016 = vmax.f32 %v3984, 0.0
      %v4017 = vmax.f32 %v3985, 0.0
      %v4018 = vmax.f32 %v3986, 0.0
      %v4019 = vmax.f32 %v3987, 0.0
      %v4020 = vmax.f32 %v3988, 0.0
      %v4021 = vmax.f32 %v3989, 0.0
      %v4022 = vmax.f32 %v3990, 0.0
      %v4023 = vmax.f32 %v3991, 0.0
      %v4024 = vmax.f32 %v3992, 0.0
      %v4025 = vmax.f32 %v3993, 0.0
      %v4026 = vmax.f32 %v3994, 0.0
      %v4027 = vmax.f32 %v3995, 0.0
      %v4028 = vld [vmem:[%s12] sm:$0x1]
      %v4029 = vpack.c.bf16 %v3997, %v3996
      %v4030 = vpack.c.bf16 %v3999, %v3998
      %v4031 = vpack.c.bf16 %v4001, %v4000
      %v4032 = vpack.c.bf16 %v4003, %v4002
      %v4033 = vpack.c.bf16 %v4005, %v4004
      %v4034 = vpack.c.bf16 %v4007, %v4006
      %v4035 = vpack.c.bf16 %v4009, %v4008
      %v4036 = vpack.c.bf16 %v4011, %v4010
      %v4037 = vpack.c.bf16 %v4013, %v4012
      %v4038 = vpack.c.bf16 %v4015, %v4014
      %v4039 = vpack.c.bf16 %v4017, %v4016
      %v4040 = vpack.c.bf16 %v4019, %v4018
      %v4041 = vpack.c.bf16 %v4021, %v4020
      %v4042 = vpack.c.bf16 %v4023, %v4022
      %v4043 = vpack.c.bf16 %v4025, %v4024
      %v4044 = vpack.c.bf16 %v4027, %v4026
      %v4045 = vld [vmem:[%s13] sm:$0x3]
      %4047 = vset.pattern.permute.xlu0 0
      %4048 = vperm.xlu0 %4047, %v4045
      %v4049 = vpop.permute.xlu0 %4048
      %v4052 = vsel %vm1900, %v4028, 0
      %v4055 = vsel %vm1900, %v4029, 0
      %v4058 = vsel %vm1900, %v4030, 0
      %v4061 = vsel %vm1900, %v4031, 0
      %v4064 = vsel %vm1900, %v4032, 0
      %v4067 = vsel %vm1900, %v4033, 0
      %v4070 = vsel %vm1900, %v4034, 0
      %v4073 = vsel %vm1900, %v4035, 0
      %v4076 = vsel %vm1900, %v4036, 0
      %v4079 = vsel %vm1900, %v4037, 0
      %v4082 = vsel %vm1900, %v4038, 0
      %v4085 = vsel %vm1900, %v4039, 0
      %v4088 = vsel %vm1900, %v4040, 0
      %v4091 = vsel %vm1900, %v4041, 0
      %v4094 = vsel %vm1900, %v4042, 0
      %v4097 = vsel %vm1900, %v4043, 0
      %v4100 = vsel %vm1900, %v4044, 0
      %4102 = vmatpush.bf16.xpose.msra.mxu0 %v4076
      %4103 = vmatpush.bf16.xpose.msra.mxu0 %v4073
      %4104 = vmatpush.bf16.xpose.msra.mxu0 %v4070
      %4105 = vmatpush.bf16.xpose.msra.mxu0 %v4067
      %4106 = vmatpush.bf16.xpose.msra.mxu0 %v4064
      %4107 = vmatpush.bf16.xpose.msra.mxu0 %v4061
      %4108 = vmatpush.bf16.xpose.msra.mxu0 %v4058
      %4109 = vmatpush.bf16.xpose.msra.mxu0 %v4055
      %4110 = vmatmul.bf16.gmra.mxu0 %v4052
      %v4111 = vpop.f32.mrf.mxu0
      %v4112 = vadd.f32 %v4049, %v4111
      %v4113 = vpop.f32.mrf.mxu0
      %4114 = vdwg.mxu0
      %4115 = vmatpush.bf16.xpose.msra.mxu0 %v4100
      %4116 = vmatpush.bf16.xpose.msra.mxu0 %v4097
      %4117 = vmatpush.bf16.xpose.msra.mxu0 %v4094
      %4118 = vmatpush.bf16.xpose.msra.mxu0 %v4091
      %4119 = vmatpush.bf16.xpose.msra.mxu0 %v4088
      %4120 = vmatpush.bf16.xpose.msra.mxu0 %v4085
      %4121 = vmatpush.bf16.xpose.msra.mxu0 %v4082
      %4122 = vmatpush.bf16.xpose.msra.mxu0 %v4079
      %4123 = vmatmul.bf16.gmra.mxu0 %v4052
      %v4124 = vpop.f32.mrf.mxu0
      %v4125 = vadd.f32 %v4049, %v4124
      %v4126 = vpop.f32.mrf.mxu0
      %4127 = vdwg.mxu0
      %v4128 = vsub.f32 0.0, %v4112
      %v4129 = vsub.f32 0.0, %v4125
      %v4130 = vmul.f32 %v4128, 1.442695
      %v4131 = vpow.pop %v4130
      %v4132 = vmul.f32 %v4129, 1.442695
      %v4133 = vpow.pop %v4132
      %v4134 = vadd.f32 %v4131, 1.0
      %v4135 = vadd.f32 %v4133, 1.0
      %v4136 = vrcp.pop %v4134
      %v4137 = vrcp.pop %v4135
      %v4138 = vmul.f32 %v1847, 1.442695
      %v4139 = vpow.pop %v4138
      %v4140 = vmul.f32 %v1860, 1.442695
      %v4141 = vpow.pop %v4140
      %v4142 = vsub.f32 0.0, %v1847
      %v4143 = vsub.f32 0.0, %v1860
      %v4144 = vmul.f32 %v4142, 1.442695
      %v4145 = vpow.pop %v4144
      %v4146 = vmul.f32 %v4143, 1.442695
      %v4147 = vpow.pop %v4146
      %v4148 = vadd.f32 %v4145, 1.0
      %v4149 = vadd.f32 %v4147, 1.0
      %v4150 = vrcp.pop %v4148
      %v4151 = vrcp.pop %v4149
      %v4154 = vrot.slane %v4139, 6
      %v4155 = vrot.slane %v4141, 6
      %v4160 = vrot.slane %v1847, 6
      %v4161 = vrot.slane %v1860, 6
      %v4166 = vrot.slane %v4150, 6
      %v4167 = vrot.slane %v4151, 6
      %vm4170 = vcmask 1041408
      %v4171 = vsel %vm4170, %v4136, %v4154
      %v4172 = vsel %vm4170, %v4137, %v4155
      %vm4173 = vcmask 1042432
      %v4174 = vsel %vm4173, %v4171, %v4160
      %v4175 = vsel %vm4173, %v4172, %v4161
      %vm4176 = vcmask 1043456
      %v4177 = vsel %vm4176, %v4174, %v4166
      %v4178 = vsel %vm4176, %v4175, %v4167
      %4179 = vst [vmem:[%s467] sm:$0xff] %v4177
      %4180 = vst [vmem:[%s467 + $0x8] sm:$0xff] %v4178
      %p4181 = scmp.lt.s32.totalorder %s25, 1
      %s4182 = scalar_select %p4181, %s25, 1
      %s4183 = smul.addr %s4182, 2
      %s4184 = smul.addr %s4183, 8
      %s4185 = scalar_lea.vmem %s14, %s4184
      // Predicated region
      $region77: #{_lambda_.1} parent=75 // pred_check
        %p4186 = pneg %p342
      $region78: #{_lambda_.1} parent=75 // pred_check_branch
        %4188 = sbr.rel (%p4186) target = $region80
      $region79: #{_lambda_.1} parent=75 // pred_region
        _
      $region80: #{_lambda_.1} parent=75 // pred_fallthru
        _
    $region76: #{_lambda_.1} parent=5 // pred_fallthru
      _
    %p4189 = scmp.le.s32.totalorder 2, %s20
    // Predicated region
    $region81: #{_lambda_.1} parent=5 // pred_check
      %p4190 = pneg %p4189
    $region82: #{_lambda_.1} parent=5 // pred_check_branch
      %4192 = sbr.rel (%p4190) target = $region84
    $region83: #{_lambda_.1} parent=5 // pred_region
      %s4193 = ssub.s32 %s20, 2
      // Predicated region
      $region85: #{_lambda_.1} parent=83 // pred_check
        %p4194 = pneg %p348
      $region86: #{_lambda_.1} parent=83 // pred_check_branch
        %4196 = sbr.rel (%p4194) target = $region88
      $region87: #{_lambda_.1} parent=83 // pred_region
        %p4197 = scmp.lt.s32.totalorder %s26, 1
        %s4198 = scalar_select %p4197, %s26, 1
        %s4199 = smul.addr %s4198, 2
        %s4200 = smul.addr %s4199, 8
        %s4201 = scalar_lea.vmem %s14, %s4200
      $region88: #{_lambda_.1} parent=83 // pred_fallthru
        _
    $region84: #{_lambda_.1} parent=5 // pred_fallthru
      _
  $region6: #{_lambda_.1} parent=0 // loop_footer
    %s24 = sadd.s32 1, %s20
  $region7: #{_lambda_.1} parent=0 // loop_footer_branch
    %19 = sbr.rel target = $region3
  $region8: #{_lambda_.1} parent=0 // loop_exit
    _

</llo_original>
